<compile_context>
chip_gen: v7x
topology: tpu7x:2x2x1
jax: 0.10.0
libtpu: 0.0.40
codegen_flags: <defaults>
</compile_context>

<pallas_src>
import functools

import jax
import jax.numpy as jnp
from jax import lax
from jax.experimental import pallas as pl
from jax.experimental.pallas import tpu as pltpu


# ----------------------------------------------------------------------------
# Shared math helpers (used identically by kernel and pure-JAX reference).
# ----------------------------------------------------------------------------
def _layer_norm(h, gamma, beta, eps=1e-5):
    mu = jnp.mean(h, axis=-1, keepdims=True)
    d = h - mu
    var = jnp.mean(d * d, axis=-1, keepdims=True)
    return d * lax.rsqrt(var + eps) * gamma + beta


def _gelu(x):
    # TODO(synk): pytext uses exact erf-GeLU; tanh approximation used here
    # (matches the accelerator's NNPIUseGeluLUT spirit); reference uses the same.
    c = 0.7978845608028654  # sqrt(2/pi)
    return 0.5 * x * (1.0 + jnp.tanh(c * (x + 0.044715 * x * x * x)))


# Row indices inside the coalesced per-layer [L, 9, E] vector slab.
_BQ, _BK, _BV, _BO, _G1, _BE1, _G2, _BE2, _B2 = range(9)


# ----------------------------------------------------------------------------
# Pallas kernel: full transformer-layer stack, grid = (layer,).
# ----------------------------------------------------------------------------
def _transformer_stack_kernel(x_ref, mask_ref,
                              wq_ref, wk_ref, wv_ref, wo_ref,
                              w1_ref, w2_ref, vecE_ref, vecF_ref,
                              out_ref, x_sc, attn_sc,
                              *, num_heads, batch, seq):
    layer = pl.program_id(0)

    # Load the encoder input into the VMEM carry at layer 0; subsequent layers
    # consume the carried activation (no HBM round-trips for intermediates).
    @pl.when(layer == 0)
    def _():
        x_sc[...] = x_ref[...].astype(jnp.float32)

    x = x_sc[...]                                # [B*T, E] f32
    xb = x.astype(jnp.bfloat16)

    BT, E = x.shape
    T = seq
    dh = E // num_heads

    vec = vecE_ref[0]                            # [9, E] f32 coalesced vectors
    bq = vec[_BQ:_BQ + 1, :]
    bk = vec[_BK:_BK + 1, :]
    bv = vec[_BV:_BV + 1, :]
    bo = vec[_BO:_BO + 1, :]
    g1 = vec[_G1:_G1 + 1, :]
    be1 = vec[_BE1:_BE1 + 1, :]
    g2 = vec[_G2:_G2 + 1, :]
    be2 = vec[_BE2:_BE2 + 1, :]
    b2 = vec[_B2:_B2 + 1, :]
    b1 = vecF_ref[0]                             # [1, F] f32

    # --- QKV projections on the whole [B*T, E] slab (bf16 MXU, f32 acc) ------
    # 1/sqrt(dh) is already folded into wq / bq at packing time.
    q = jnp.dot(xb, wq_ref[0], preferred_element_type=jnp.float32) + bq
    k = jnp.dot(xb, wk_ref[0], preferred_element_type=jnp.float32) + bk
    v = jnp.dot(xb, wv_ref[0], preferred_element_type=jnp.float32) + bv

    # --- Per-example, per-head attention --------------------------------------
    # TODO(synk): for dh < 128 the score matmul underfills the MXU contraction;
    # packing ceil(128/dh) heads per MXU call would improve fill at large T/H.
    for b in range(batch):
        r0 = b * T
        bias = mask_ref[b]                       # [1, T] additive key-padding bias
        attn_b = None
        for h in range(num_heads):
            lo = h * dh
            qh = q[r0:r0 + T, lo:lo + dh].astype(jnp.bfloat16)
            kh = k[r0:r0 + T, lo:lo + dh].astype(jnp.bfloat16)
            vh = v[r0:r0 + T, lo:lo + dh].astype(jnp.bfloat16)
            # scores = qh @ kh^T (contract last dims, no explicit transpose)
            s = lax.dot_general(qh, kh, (((1,), (1,)), ((), ())),
                                preferred_element_type=jnp.float32)   # [T, T]
            s = s + bias
            s = s - jnp.max(s, axis=-1, keepdims=True)
            e = jnp.exp(s)
            p = e * pl.reciprocal(jnp.sum(e, axis=-1, keepdims=True), approx=True)
            ctx = jnp.dot(p.astype(jnp.bfloat16), vh,
                          preferred_element_type=jnp.float32)         # [T, dh]
            # Per-head slab of the output projection (head-major weight layout).
            part = jnp.dot(ctx.astype(jnp.bfloat16), wo_ref[0, h],
                           preferred_element_type=jnp.float32)        # [T, E]
            attn_b = part if attn_b is None else attn_b + part
        attn_sc[r0:r0 + T, :] = attn_b + bo

    y1 = _layer_norm(x + attn_sc[...], g1, be1)

    # --- Residual MLP (Linear -> GeLU -> Linear) + final LayerNorm ------------
    hmid = jnp.dot(y1.astype(jnp.bfloat16), w1_ref[0],
                   preferred_element_type=jnp.float32) + b1
    hmid = _gelu(hmid)
    ffn = jnp.dot(hmid.astype(jnp.bfloat16), w2_ref[0],
                  preferred_element_type=jnp.float32) + b2
    y2 = _layer_norm(y1 + ffn, g2, be2)

    # Carry forward to the next layer and emit this layer's state.
    x_sc[...] = y2
    out_ref[0] = y2.astype(out_ref.dtype)


def _run_transformer_stack(x_flat, mask_bias, packed, num_heads, batch, seq):
    """x_flat: [B*T, E] f32; mask_bias: [B, 1, T] additive f32 mask;
    packed: kernel-ready stacked weights. Returns states [L, B*T, E]."""
    wq, wk, wv, wo_h, w1, w2, vecE, vecF = packed
    BT, E = x_flat.shape
    L = wq.shape[0]
    F = w1.shape[-1]
    B, T, H = batch, seq, num_heads
    dh = E // H

    kernel = functools.partial(_transformer_stack_kernel,
                               num_heads=num_heads, batch=batch, seq=seq)

    w2d = lambda l: (l, 0, 0)
    w3d = lambda l: (l, 0, 0, 0)

    in_specs = [
        pl.BlockSpec((BT, E), lambda l: (0, 0)),        # encoder input
        pl.BlockSpec((B, 1, T), lambda l: (0, 0, 0)),   # key-padding bias
        pl.BlockSpec((1, E, E), w2d),                   # wq (pre-scaled, bf16)
        pl.BlockSpec((1, E, E), w2d),                   # wk
        pl.BlockSpec((1, E, E), w2d),                   # wv
        pl.BlockSpec((1, H, dh, E), w3d),               # wo, head-major
        pl.BlockSpec((1, E, F), w2d),                   # w1
        pl.BlockSpec((1, F, E), w2d),                   # w2
        pl.BlockSpec((1, 9, E), w2d),                   # coalesced E-vectors
        pl.BlockSpec((1, 1, F), w2d),                   # b1
    ]
    out_specs = pl.BlockSpec((1, BT, E), lambda l: (l, 0, 0))

    # Explicit VMEM budget: bf16 weights (double-buffered) + activation carries.
    wbytes = 2 * (3 * E * E + H * dh * E + 2 * E * F)       # bf16 matrices
    vbytes = 4 * (9 * E + F)                                # f32 vector slabs
    iobytes = 4 * (2 * BT * E + B * T)                      # x block, out block, mask
    est = 2 * (wbytes + vbytes + iobytes) + 2 * 4 * BT * E + (8 << 20)
    vmem_limit = int(min(64 * 1024 * 1024, max(32 * 1024 * 1024, est)))

    grid_spec = pltpu.PrefetchScalarGridSpec(
        num_scalar_prefetch=0,
        grid=(L,),
        in_specs=in_specs,
        out_specs=out_specs,
        scratch_shapes=[pltpu.VMEM((BT, E), jnp.float32),   # activation carry
                        pltpu.VMEM((BT, E), jnp.float32)],  # attention buffer
    )

    return pl.pallas_call(
        kernel,
        out_shape=jax.ShapeDtypeStruct((L, BT, E), x_flat.dtype),
        grid_spec=grid_spec,
        compiler_params=pltpu.CompilerParams(
            dimension_semantics=("arbitrary",),  # layer axis carries a recurrence
            vmem_limit_bytes=vmem_limit,
        ),
    )(x_flat, mask_bias, wq, wk, wv, wo_h, w1, w2, vecE, vecF)


# ----------------------------------------------------------------------------
# Module wrapper: AcceleratorTransformerLayers.forward
# ----------------------------------------------------------------------------
@functools.partial(jax.jit, static_argnames=("num_heads",))
def accelerator_transformer_layers_forward(encoded, padding_mask, packed, num_heads):
    """encoded: [T, B, E] f32; padding_mask: [B, T] bool (True = padded).
    Returns list of L+1 states, each [T, B, E]; states[0] == encoded."""
    T, B, E = encoded.shape
    x_flat = jnp.transpose(encoded, (1, 0, 2)).reshape(B * T, E)     # [B*T, E]
    mask_bias = jnp.where(padding_mask, -1e9, 0.0).astype(jnp.float32)[:, None, :]
    states_flat = _run_transformer_stack(x_flat, mask_bias, packed,
                                         num_heads, B, T)            # [L, B*T, E]
    L = states_flat.shape[0]
    # One relayout for the whole stack ([L,B,T,E] -> [L,T,B,E]), then unstack.
    states_ltbe = jnp.transpose(states_flat.reshape(L, B, T, E), (0, 2, 1, 3))
    return [encoded] + [states_ltbe[l] for l in range(L)]


# ----------------------------------------------------------------------------
# Deterministic parameter init, kernel-ready packing, pure-JAX reference.
# ----------------------------------------------------------------------------
def init_transformer_params(key, embed_dim, ffn_dim, num_layers):
    params = []
    s_e = 1.0 / (embed_dim ** 0.5)
    s_f = 1.0 / (ffn_dim ** 0.5)

    def u(k, shape, s):
        return jax.random.uniform(k, shape, jnp.float32, -s, s)

    for _ in range(num_layers):
        key, *ks = jax.random.split(key, 17)
        wq = u(ks[0], (embed_dim, embed_dim), s_e); bq = u(ks[1], (1, embed_dim), s_e)
        wk = u(ks[2], (embed_dim, embed_dim), s_e); bk = u(ks[3], (1, embed_dim), s_e)
        wv = u(ks[4], (embed_dim, embed_dim), s_e); bv = u(ks[5], (1, embed_dim), s_e)
        wo = u(ks[6], (embed_dim, embed_dim), s_e); bo = u(ks[7], (1, embed_dim), s_e)
        w1 = u(ks[8], (embed_dim, ffn_dim), s_e);   b1 = u(ks[9], (1, ffn_dim), s_e)
        w2 = u(ks[10], (ffn_dim, embed_dim), s_f);  b2 = u(ks[11], (1, embed_dim), s_f)
        g1 = 1.0 + 0.1 * u(ks[12], (1, embed_dim), 1.0)
        be1 = 0.1 * u(ks[13], (1, embed_dim), 1.0)
        g2 = 1.0 + 0.1 * u(ks[14], (1, embed_dim), 1.0)
        be2 = 0.1 * u(ks[15], (1, embed_dim), 1.0)
        params.append((wq, wk, wv, wo, bq, bk, bv, bo,
                       g1, be1, g2, be2, w1, b1, w2, b2))
    return params


def pack_layer_params(params, num_heads):
    """Pack per-layer params into kernel-ready stacked arrays: bf16 matrices
    (with 1/sqrt(dh) folded into wq/bq), head-major wo, and coalesced f32
    bias/LayerNorm vector slabs."""
    E = params[0][0].shape[0]
    H = num_heads
    dh = E // H
    scale = 1.0 / float(dh) ** 0.5

    wqs, wks, wvs, wos, w1s, w2s, vEs, vFs = ([] for _ in range(8))
    for (wq, wk, wv, wo, bq, bk, bv, bo,
         g1, be1, g2, be2, w1, b1, w2, b2) in params:
        wqs.append((wq * scale).astype(jnp.bfloat16))
        wks.append(wk.astype(jnp.bfloat16))
        wvs.append(wv.astype(jnp.bfloat16))
        wos.append(wo.reshape(H, dh, E).astype(jnp.bfloat16))
        w1s.append(w1.astype(jnp.bfloat16))
        w2s.append(w2.astype(jnp.bfloat16))
        vEs.append(jnp.concatenate(
            [bq * scale, bk, bv, bo, g1, be1, g2, be2, b2], axis=0))   # [9, E]
        vFs.append(b1)                                                  # [1, F]

    stack = lambda xs: jnp.stack(xs, axis=0)
    return (stack(wqs), stack(wks), stack(wvs), stack(wos),
            stack(w1s), stack(w2s), stack(vEs), stack(vFs))


def _reference_forward(encoded, padding_mask, params, num_heads):
    """Pure-JAX f32 reference of the transformer-layer stack (same math)."""
    T, B, E = encoded.shape
    H = num_heads
    dh = E // H
    scale = 1.0 / float(dh) ** 0.5
    bias = jnp.where(padding_mask, -1e9, 0.0).astype(jnp.float32)   # [B, T]

    states = [encoded]
    x = jnp.transpose(encoded, (1, 0, 2))                           # [B, T, E]
    for (wq, wk, wv, wo, bq, bk, bv, bo, g1, be1, g2, be2, w1, b1, w2, b2) in params:
        q = x @ wq + bq
        k = x @ wk + bk
        v = x @ wv + bv

        def split(a):
            return a.reshape(B, T, H, dh).transpose(0, 2, 1, 3)     # [B, H, T, dh]

        qh, kh, vh = split(q) * scale, split(k), split(v)
        s = jnp.einsum('bhqd,bhkd->bhqk', qh, kh) + bias[:, None, None, :]
        s = s - jnp.max(s, axis=-1, keepdims=True)
        e = jnp.exp(s)
        p = e / jnp.sum(e, axis=-1, keepdims=True)
        ctx = jnp.einsum('bhqk,bhkd->bhqd', p, vh)
        ctx = ctx.transpose(0, 2, 1, 3).reshape(B, T, E)
        attn = ctx @ wo + bo

        y1 = _layer_norm(x + attn, g1, be1)
        hmid = _gelu(y1 @ w1 + b1)
        y2 = _layer_norm(y1 + hmid @ w2 + b2, g2, be2)
        x = y2
        states.append(jnp.transpose(x, (1, 0, 2)))
    return states


if __name__ == "__main__":
    # Small shapes consistent with accelerator_transformerLayers_inputs:
    #   encoded [seq_len, batch_size, embedding_dim], padding_mask [batch, seq].
    seq, batch, emb_dim = 8, 2, 32
    num_heads, ffn_dim, num_layers = 4, 64, 2

    key = jax.random.PRNGKey(0)
    k_x, k_p = jax.random.split(key)
    encoded = jax.random.normal(k_x, (seq, batch, emb_dim), jnp.float32)
    lengths = jnp.array([seq, seq - 3])                             # one padded seq
    padding_mask = jnp.arange(seq)[None, :] >= lengths[:, None]     # [B, T] bool

    params = init_transformer_params(k_p, emb_dim, ffn_dim, num_layers)
    packed = pack_layer_params(params, num_heads)

    states = accelerator_transformer_layers_forward(encoded, padding_mask,
                                                    packed, num_heads)
    jax.block_until_ready(states)

    # Sanity check against the pure-JAX f32 reference (bf16 MXU path -> looser tol).
    ref_states = _reference_forward(encoded, padding_mask, params, num_heads)
    assert len(states) == num_layers + 1
    for got, ref in zip(states, ref_states):
        assert got.shape == (seq, batch, emb_dim)
        err = float(jnp.max(jnp.abs(got - ref)))
        assert jnp.allclose(got, ref, atol=5e-2, rtol=5e-2), f"max abs err {err}"

    print("KERNEL_OK")
</pallas_src>

<mosaic_0001>
module attributes {stable_mosaic.version = 11 : i64} {
  func.func @_transformer_stack_kernel(%arg0: i32, %arg1: memref<16x32xf32, #tpu.memory_space<vmem>>, %arg2: memref<2x1x8xf32, #tpu.memory_space<vmem>>, %arg3: memref<1x32x32xbf16, #tpu.memory_space<vmem>>, %arg4: memref<1x32x32xbf16, #tpu.memory_space<vmem>>, %arg5: memref<1x32x32xbf16, #tpu.memory_space<vmem>>, %arg6: memref<1x4x8x32xbf16, #tpu.memory_space<vmem>>, %arg7: memref<1x32x64xbf16, #tpu.memory_space<vmem>>, %arg8: memref<1x64x32xbf16, #tpu.memory_space<vmem>>, %arg9: memref<1x9x32xf32, #tpu.memory_space<vmem>>, %arg10: memref<1x1x64xf32, #tpu.memory_space<vmem>>, %arg11: memref<1x16x32xf32, #tpu.memory_space<vmem>>, %arg12: memref<16x32xf32, #tpu.memory_space<vmem>>, %arg13: memref<16x32xf32, #tpu.memory_space<vmem>>) attributes {dimension_semantics = [#tpu.dimension_semantics<arbitrary>], iteration_bounds = array<i64: 2>, scalar_prefetch = 0 : i64, scratch_operands = 2 : i64, tpu.core_type = #tpu.core_type<tc>, window_params = [{pipeline_mode = #tpu.pipeline_mode<synchronous>, transform_indices = @transform_0, window_bounds = array<i64: 16, 32>}, {pipeline_mode = #tpu.pipeline_mode<synchronous>, transform_indices = @transform_1, window_bounds = array<i64: 2, 1, 8>}, {transform_indices = @transform_2, window_bounds = array<i64: 1, 32, 32>}, {transform_indices = @transform_3, window_bounds = array<i64: 1, 32, 32>}, {transform_indices = @transform_4, window_bounds = array<i64: 1, 32, 32>}, {transform_indices = @transform_5, window_bounds = array<i64: 1, 4, 8, 32>}, {transform_indices = @transform_6, window_bounds = array<i64: 1, 32, 64>}, {transform_indices = @transform_7, window_bounds = array<i64: 1, 64, 32>}, {transform_indices = @transform_8, window_bounds = array<i64: 1, 9, 32>}, {transform_indices = @transform_9, window_bounds = array<i64: 1, 1, 64>}, {transform_indices = @transform_10, window_bounds = array<i64: 1, 16, 32>}]} {
    %c0_i32 = arith.constant 0 : i32
    %0 = arith.cmpi eq, %arg0, %c0_i32 : i32
    %1 = arith.extui %0 : i1 to i32
    %c0_i32_0 = arith.constant 0 : i32
    %2 = arith.cmpi ne, %1, %c0_i32_0 : i32
    scf.if %2 {
      %c0_126 = arith.constant 0 : index
      %c0_127 = arith.constant 0 : index
      %321 = vector.load %arg1[%c0_126, %c0_127] : memref<16x32xf32, #tpu.memory_space<vmem>>, vector<16x32xf32>
      %c0_128 = arith.constant 0 : index
      %c0_129 = arith.constant 0 : index
      %322 = vector.load %arg12[%c0_128, %c0_129] : memref<16x32xf32, #tpu.memory_space<vmem>>, vector<16x32xf32>
      tpu.vector_store %arg12[%c0_128, %c0_129], %321 {strides = array<i32>} : memref<16x32xf32, #tpu.memory_space<vmem>>, vector<16x32xf32>,
    } else {
    }
    %c0 = arith.constant 0 : index
    %c0_1 = arith.constant 0 : index
    %3 = vector.load %arg12[%c0, %c0_1] : memref<16x32xf32, #tpu.memory_space<vmem>>, vector<16x32xf32>
    %4 = arith.truncf %3 : vector<16x32xf32> to vector<16x32xbf16>
    %c0_2 = arith.constant 0 : index
    %c0_3 = arith.constant 0 : index
    %c0_4 = arith.constant 0 : index
    %5 = vector.load %arg9[%c0_2, %c0_3, %c0_4] : memref<1x9x32xf32, #tpu.memory_space<vmem>>, vector<1x9x32xf32>
    %6 = vector.shape_cast %5 : vector<1x9x32xf32> to vector<9x32xf32>
    %7 = vector.extract_strided_slice %6 {offsets = [0, 0], sizes = [1, 32], strides = [1, 1]} : vector<9x32xf32> to vector<1x32xf32>
    %8 = vector.extract_strided_slice %6 {offsets = [1, 0], sizes = [1, 32], strides = [1, 1]} : vector<9x32xf32> to vector<1x32xf32>
    %9 = vector.extract_strided_slice %6 {offsets = [2, 0], sizes = [1, 32], strides = [1, 1]} : vector<9x32xf32> to vector<1x32xf32>
    %10 = vector.extract_strided_slice %6 {offsets = [3, 0], sizes = [1, 32], strides = [1, 1]} : vector<9x32xf32> to vector<1x32xf32>
    %11 = vector.extract_strided_slice %6 {offsets = [4, 0], sizes = [1, 32], strides = [1, 1]} : vector<9x32xf32> to vector<1x32xf32>
    %12 = vector.extract_strided_slice %6 {offsets = [5, 0], sizes = [1, 32], strides = [1, 1]} : vector<9x32xf32> to vector<1x32xf32>
    %13 = vector.extract_strided_slice %6 {offsets = [6, 0], sizes = [1, 32], strides = [1, 1]} : vector<9x32xf32> to vector<1x32xf32>
    %14 = vector.extract_strided_slice %6 {offsets = [7, 0], sizes = [1, 32], strides = [1, 1]} : vector<9x32xf32> to vector<1x32xf32>
    %15 = vector.extract_strided_slice %6 {offsets = [8, 0], sizes = [1, 32], strides = [1, 1]} : vector<9x32xf32> to vector<1x32xf32>
    %c0_5 = arith.constant 0 : index
    %c0_6 = arith.constant 0 : index
    %c0_7 = arith.constant 0 : index
    %16 = vector.load %arg10[%c0_5, %c0_6, %c0_7] : memref<1x1x64xf32, #tpu.memory_space<vmem>>, vector<1x1x64xf32>
    %17 = vector.shape_cast %16 : vector<1x1x64xf32> to vector<1x64xf32>
    %c0_8 = arith.constant 0 : index
    %c0_9 = arith.constant 0 : index
    %c0_10 = arith.constant 0 : index
    %18 = vector.load %arg3[%c0_8, %c0_9, %c0_10] : memref<1x32x32xbf16, #tpu.memory_space<vmem>>, vector<1x32x32xbf16>
    %19 = vector.shape_cast %18 : vector<1x32x32xbf16> to vector<32x32xbf16>
    %cst = arith.constant dense<0.000000e+00> : vector<16x32xf32>
    %20 = tpu.matmul %4, %19, %cst {dimension_numbers = #tpu.dot_dimension_numbers<[1], [0], [0], [1], [0, 0, 1, 1], [], []>} : vector<16x32xbf16>, vector<32x32xbf16>, vector<16x32xf32> -> vector<16x32xf32>
    %21 = vector.broadcast %7 : vector<1x32xf32> to vector<16x32xf32>
    %22 = arith.addf %20, %21 : vector<16x32xf32>
    %c0_11 = arith.constant 0 : index
    %c0_12 = arith.constant 0 : index
    %c0_13 = arith.constant 0 : index
    %23 = vector.load %arg4[%c0_11, %c0_12, %c0_13] : memref<1x32x32xbf16, #tpu.memory_space<vmem>>, vector<1x32x32xbf16>
    %24 = vector.shape_cast %23 : vector<1x32x32xbf16> to vector<32x32xbf16>
    %cst_14 = arith.constant dense<0.000000e+00> : vector<16x32xf32>
    %25 = tpu.matmul %4, %24, %cst_14 {dimension_numbers = #tpu.dot_dimension_numbers<[1], [0], [0], [1], [0, 0, 1, 1], [], []>} : vector<16x32xbf16>, vector<32x32xbf16>, vector<16x32xf32> -> vector<16x32xf32>
    %26 = vector.broadcast %8 : vector<1x32xf32> to vector<16x32xf32>
    %27 = arith.addf %25, %26 : vector<16x32xf32>
    %c0_15 = arith.constant 0 : index
    %c0_16 = arith.constant 0 : index
    %c0_17 = arith.constant 0 : index
    %28 = vector.load %arg5[%c0_15, %c0_16, %c0_17] : memref<1x32x32xbf16, #tpu.memory_space<vmem>>, vector<1x32x32xbf16>
    %29 = vector.shape_cast %28 : vector<1x32x32xbf16> to vector<32x32xbf16>
    %cst_18 = arith.constant dense<0.000000e+00> : vector<16x32xf32>
    %30 = tpu.matmul %4, %29, %cst_18 {dimension_numbers = #tpu.dot_dimension_numbers<[1], [0], [0], [1], [0, 0, 1, 1], [], []>} : vector<16x32xbf16>, vector<32x32xbf16>, vector<16x32xf32> -> vector<16x32xf32>
    %31 = vector.broadcast %9 : vector<1x32xf32> to vector<16x32xf32>
    %32 = arith.addf %30, %31 : vector<16x32xf32>
    %c0_19 = arith.constant 0 : index
    %c0_20 = arith.constant 0 : index
    %c0_21 = arith.constant 0 : index
    %33 = vector.load %arg2[%c0_19, %c0_20, %c0_21] : memref<2x1x8xf32, #tpu.memory_space<vmem>>, vector<1x1x8xf32>
    %34 = vector.shape_cast %33 : vector<1x1x8xf32> to vector<1x8xf32>
    %35 = vector.extract_strided_slice %22 {offsets = [0, 0], sizes = [8, 8], strides = [1, 1]} : vector<16x32xf32> to vector<8x8xf32>
    %36 = arith.truncf %35 : vector<8x8xf32> to vector<8x8xbf16>
    %37 = vector.extract_strided_slice %27 {offsets = [0, 0], sizes = [8, 8], strides = [1, 1]} : vector<16x32xf32> to vector<8x8xf32>
    %38 = arith.truncf %37 : vector<8x8xf32> to vector<8x8xbf16>
    %39 = vector.extract_strided_slice %32 {offsets = [0, 0], sizes = [8, 8], strides = [1, 1]} : vector<16x32xf32> to vector<8x8xf32>
    %40 = arith.truncf %39 : vector<8x8xf32> to vector<8x8xbf16>
    %cst_22 = arith.constant dense<0.000000e+00> : vector<8x8xf32>
    %41 = tpu.matmul %36, %38, %cst_22 {dimension_numbers = #tpu.dot_dimension_numbers<[1], [1], [0], [0], [0, 0, 1, 0], [], []>} : vector<8x8xbf16>, vector<8x8xbf16>, vector<8x8xf32> -> vector<8x8xf32>
    %42 = vector.broadcast %34 : vector<1x8xf32> to vector<8x8xf32>
    %43 = arith.addf %41, %42 : vector<8x8xf32>
    %cst_23 = arith.constant dense<0xFF800000> : vector<8xf32>
    %44 = vector.multi_reduction <maximumf>, %43, %cst_23 [1] : vector<8x8xf32> to vector<8xf32>
    %45 = vector.shape_cast %44 : vector<8xf32> to vector<8x1xf32>
    %46 = vector.broadcast %45 : vector<8x1xf32> to vector<8x8xf32>
    %47 = arith.subf %43, %46 : vector<8x8xf32>
    %48 = math.exp %47 : vector<8x8xf32>
    %cst_24 = arith.constant dense<0.000000e+00> : vector<8xf32>
    %49 = vector.multi_reduction <add>, %48, %cst_24 [1] : vector<8x8xf32> to vector<8xf32>
    %50 = vector.shape_cast %49 : vector<8xf32> to vector<8x1xf32>
    %51 = tpu.reciprocal %50 {approx = true} : vector<8x1xf32> -> vector<8x1xf32>
    %52 = vector.broadcast %51 : vector<8x1xf32> to vector<8x8xf32>
    %53 = arith.mulf %48, %52 : vector<8x8xf32>
    %54 = arith.truncf %53 : vector<8x8xf32> to vector<8x8xbf16>
    %cst_25 = arith.constant dense<0.000000e+00> : vector<8x8xf32>
    %55 = tpu.matmul %54, %40, %cst_25 {dimension_numbers = #tpu.dot_dimension_numbers<[1], [0], [0], [1], [0, 0, 1, 1], [], []>} : vector<8x8xbf16>, vector<8x8xbf16>, vector<8x8xf32> -> vector<8x8xf32>
    %56 = arith.truncf %55 : vector<8x8xf32> to vector<8x8xbf16>
    %c0_26 = arith.constant 0 : index
    %c0_27 = arith.constant 0 : index
    %c0_28 = arith.constant 0 : index
    %c0_29 = arith.constant 0 : index
    %57 = vector.load %arg6[%c0_26, %c0_27, %c0_28, %c0_29] : memref<1x4x8x32xbf16, #tpu.memory_space<vmem>>, vector<1x1x8x32xbf16>
    %58 = vector.shape_cast %57 : vector<1x1x8x32xbf16> to vector<8x32xbf16>
    %cst_30 = arith.constant dense<0.000000e+00> : vector<8x32xf32>
    %59 = tpu.matmul %56, %58, %cst_30 {dimension_numbers = #tpu.dot_dimension_numbers<[1], [0], [0], [1], [0, 0, 1, 1], [], []>} : vector<8x8xbf16>, vector<8x32xbf16>, vector<8x32xf32> -> vector<8x32xf32>
    %60 = vector.extract_strided_slice %22 {offsets = [0, 8], sizes = [8, 8], strides = [1, 1]} : vector<16x32xf32> to vector<8x8xf32>
    %61 = arith.truncf %60 : vector<8x8xf32> to vector<8x8xbf16>
    %62 = vector.extract_strided_slice %27 {offsets = [0, 8], sizes = [8, 8], strides = [1, 1]} : vector<16x32xf32> to vector<8x8xf32>
    %63 = arith.truncf %62 : vector<8x8xf32> to vector<8x8xbf16>
    %64 = vector.extract_strided_slice %32 {offsets = [0, 8], sizes = [8, 8], strides = [1, 1]} : vector<16x32xf32> to vector<8x8xf32>
    %65 = arith.truncf %64 : vector<8x8xf32> to vector<8x8xbf16>
    %cst_31 = arith.constant dense<0.000000e+00> : vector<8x8xf32>
    %66 = tpu.matmul %61, %63, %cst_31 {dimension_numbers = #tpu.dot_dimension_numbers<[1], [1], [0], [0], [0, 0, 1, 0], [], []>} : vector<8x8xbf16>, vector<8x8xbf16>, vector<8x8xf32> -> vector<8x8xf32>
    %67 = vector.broadcast %34 : vector<1x8xf32> to vector<8x8xf32>
    %68 = arith.addf %66, %67 : vector<8x8xf32>
    %cst_32 = arith.constant dense<0xFF800000> : vector<8xf32>
    %69 = vector.multi_reduction <maximumf>, %68, %cst_32 [1] : vector<8x8xf32> to vector<8xf32>
    %70 = vector.shape_cast %69 : vector<8xf32> to vector<8x1xf32>
    %71 = vector.broadcast %70 : vector<8x1xf32> to vector<8x8xf32>
    %72 = arith.subf %68, %71 : vector<8x8xf32>
    %73 = math.exp %72 : vector<8x8xf32>
    %cst_33 = arith.constant dense<0.000000e+00> : vector<8xf32>
    %74 = vector.multi_reduction <add>, %73, %cst_33 [1] : vector<8x8xf32> to vector<8xf32>
    %75 = vector.shape_cast %74 : vector<8xf32> to vector<8x1xf32>
    %76 = tpu.reciprocal %75 {approx = true} : vector<8x1xf32> -> vector<8x1xf32>
    %77 = vector.broadcast %76 : vector<8x1xf32> to vector<8x8xf32>
    %78 = arith.mulf %73, %77 : vector<8x8xf32>
    %79 = arith.truncf %78 : vector<8x8xf32> to vector<8x8xbf16>
    %cst_34 = arith.constant dense<0.000000e+00> : vector<8x8xf32>
    %80 = tpu.matmul %79, %65, %cst_34 {dimension_numbers = #tpu.dot_dimension_numbers<[1], [0], [0], [1], [0, 0, 1, 1], [], []>} : vector<8x8xbf16>, vector<8x8xbf16>, vector<8x8xf32> -> vector<8x8xf32>
    %81 = arith.truncf %80 : vector<8x8xf32> to vector<8x8xbf16>
    %c0_35 = arith.constant 0 : index
    %c1 = arith.constant 1 : index
    %c0_36 = arith.constant 0 : index
    %c0_37 = arith.constant 0 : index
    %82 = vector.load %arg6[%c0_35, %c1, %c0_36, %c0_37] : memref<1x4x8x32xbf16, #tpu.memory_space<vmem>>, vector<1x1x8x32xbf16>
    %83 = vector.shape_cast %82 : vector<1x1x8x32xbf16> to vector<8x32xbf16>
    %cst_38 = arith.constant dense<0.000000e+00> : vector<8x32xf32>
    %84 = tpu.matmul %81, %83, %cst_38 {dimension_numbers = #tpu.dot_dimension_numbers<[1], [0], [0], [1], [0, 0, 1, 1], [], []>} : vector<8x8xbf16>, vector<8x32xbf16>, vector<8x32xf32> -> vector<8x32xf32>
    %85 = arith.addf %59, %84 : vector<8x32xf32>
    %86 = vector.extract_strided_slice %22 {offsets = [0, 16], sizes = [8, 8], strides = [1, 1]} : vector<16x32xf32> to vector<8x8xf32>
    %87 = arith.truncf %86 : vector<8x8xf32> to vector<8x8xbf16>
    %88 = vector.extract_strided_slice %27 {offsets = [0, 16], sizes = [8, 8], strides = [1, 1]} : vector<16x32xf32> to vector<8x8xf32>
    %89 = arith.truncf %88 : vector<8x8xf32> to vector<8x8xbf16>
    %90 = vector.extract_strided_slice %32 {offsets = [0, 16], sizes = [8, 8], strides = [1, 1]} : vector<16x32xf32> to vector<8x8xf32>
    %91 = arith.truncf %90 : vector<8x8xf32> to vector<8x8xbf16>
    %cst_39 = arith.constant dense<0.000000e+00> : vector<8x8xf32>
    %92 = tpu.matmul %87, %89, %cst_39 {dimension_numbers = #tpu.dot_dimension_numbers<[1], [1], [0], [0], [0, 0, 1, 0], [], []>} : vector<8x8xbf16>, vector<8x8xbf16>, vector<8x8xf32> -> vector<8x8xf32>
    %93 = vector.broadcast %34 : vector<1x8xf32> to vector<8x8xf32>
    %94 = arith.addf %92, %93 : vector<8x8xf32>
    %cst_40 = arith.constant dense<0xFF800000> : vector<8xf32>
    %95 = vector.multi_reduction <maximumf>, %94, %cst_40 [1] : vector<8x8xf32> to vector<8xf32>
    %96 = vector.shape_cast %95 : vector<8xf32> to vector<8x1xf32>
    %97 = vector.broadcast %96 : vector<8x1xf32> to vector<8x8xf32>
    %98 = arith.subf %94, %97 : vector<8x8xf32>
    %99 = math.exp %98 : vector<8x8xf32>
    %cst_41 = arith.constant dense<0.000000e+00> : vector<8xf32>
    %100 = vector.multi_reduction <add>, %99, %cst_41 [1] : vector<8x8xf32> to vector<8xf32>
    %101 = vector.shape_cast %100 : vector<8xf32> to vector<8x1xf32>
    %102 = tpu.reciprocal %101 {approx = true} : vector<8x1xf32> -> vector<8x1xf32>
    %103 = vector.broadcast %102 : vector<8x1xf32> to vector<8x8xf32>
    %104 = arith.mulf %99, %103 : vector<8x8xf32>
    %105 = arith.truncf %104 : vector<8x8xf32> to vector<8x8xbf16>
    %cst_42 = arith.constant dense<0.000000e+00> : vector<8x8xf32>
    %106 = tpu.matmul %105, %91, %cst_42 {dimension_numbers = #tpu.dot_dimension_numbers<[1], [0], [0], [1], [0, 0, 1, 1], [], []>} : vector<8x8xbf16>, vector<8x8xbf16>, vector<8x8xf32> -> vector<8x8xf32>
    %107 = arith.truncf %106 : vector<8x8xf32> to vector<8x8xbf16>
    %c0_43 = arith.constant 0 : index
    %c2 = arith.constant 2 : index
    %c0_44 = arith.constant 0 : index
    %c0_45 = arith.constant 0 : index
    %108 = vector.load %arg6[%c0_43, %c2, %c0_44, %c0_45] : memref<1x4x8x32xbf16, #tpu.memory_space<vmem>>, vector<1x1x8x32xbf16>
    %109 = vector.shape_cast %108 : vector<1x1x8x32xbf16> to vector<8x32xbf16>
    %cst_46 = arith.constant dense<0.000000e+00> : vector<8x32xf32>
    %110 = tpu.matmul %107, %109, %cst_46 {dimension_numbers = #tpu.dot_dimension_numbers<[1], [0], [0], [1], [0, 0, 1, 1], [], []>} : vector<8x8xbf16>, vector<8x32xbf16>, vector<8x32xf32> -> vector<8x32xf32>
    %111 = arith.addf %85, %110 : vector<8x32xf32>
    %112 = vector.extract_strided_slice %22 {offsets = [0, 24], sizes = [8, 8], strides = [1, 1]} : vector<16x32xf32> to vector<8x8xf32>
    %113 = arith.truncf %112 : vector<8x8xf32> to vector<8x8xbf16>
    %114 = vector.extract_strided_slice %27 {offsets = [0, 24], sizes = [8, 8], strides = [1, 1]} : vector<16x32xf32> to vector<8x8xf32>
    %115 = arith.truncf %114 : vector<8x8xf32> to vector<8x8xbf16>
    %116 = vector.extract_strided_slice %32 {offsets = [0, 24], sizes = [8, 8], strides = [1, 1]} : vector<16x32xf32> to vector<8x8xf32>
    %117 = arith.truncf %116 : vector<8x8xf32> to vector<8x8xbf16>
    %cst_47 = arith.constant dense<0.000000e+00> : vector<8x8xf32>
    %118 = tpu.matmul %113, %115, %cst_47 {dimension_numbers = #tpu.dot_dimension_numbers<[1], [1], [0], [0], [0, 0, 1, 0], [], []>} : vector<8x8xbf16>, vector<8x8xbf16>, vector<8x8xf32> -> vector<8x8xf32>
    %119 = vector.broadcast %34 : vector<1x8xf32> to vector<8x8xf32>
    %120 = arith.addf %118, %119 : vector<8x8xf32>
    %cst_48 = arith.constant dense<0xFF800000> : vector<8xf32>
    %121 = vector.multi_reduction <maximumf>, %120, %cst_48 [1] : vector<8x8xf32> to vector<8xf32>
    %122 = vector.shape_cast %121 : vector<8xf32> to vector<8x1xf32>
    %123 = vector.broadcast %122 : vector<8x1xf32> to vector<8x8xf32>
    %124 = arith.subf %120, %123 : vector<8x8xf32>
    %125 = math.exp %124 : vector<8x8xf32>
    %cst_49 = arith.constant dense<0.000000e+00> : vector<8xf32>
    %126 = vector.multi_reduction <add>, %125, %cst_49 [1] : vector<8x8xf32> to vector<8xf32>
    %127 = vector.shape_cast %126 : vector<8xf32> to vector<8x1xf32>
    %128 = tpu.reciprocal %127 {approx = true} : vector<8x1xf32> -> vector<8x1xf32>
    %129 = vector.broadcast %128 : vector<8x1xf32> to vector<8x8xf32>
    %130 = arith.mulf %125, %129 : vector<8x8xf32>
    %131 = arith.truncf %130 : vector<8x8xf32> to vector<8x8xbf16>
    %cst_50 = arith.constant dense<0.000000e+00> : vector<8x8xf32>
    %132 = tpu.matmul %131, %117, %cst_50 {dimension_numbers = #tpu.dot_dimension_numbers<[1], [0], [0], [1], [0, 0, 1, 1], [], []>} : vector<8x8xbf16>, vector<8x8xbf16>, vector<8x8xf32> -> vector<8x8xf32>
    %133 = arith.truncf %132 : vector<8x8xf32> to vector<8x8xbf16>
    %c0_51 = arith.constant 0 : index
    %c3 = arith.constant 3 : index
    %c0_52 = arith.constant 0 : index
    %c0_53 = arith.constant 0 : index
    %134 = vector.load %arg6[%c0_51, %c3, %c0_52, %c0_53] : memref<1x4x8x32xbf16, #tpu.memory_space<vmem>>, vector<1x1x8x32xbf16>
    %135 = vector.shape_cast %134 : vector<1x1x8x32xbf16> to vector<8x32xbf16>
    %cst_54 = arith.constant dense<0.000000e+00> : vector<8x32xf32>
    %136 = tpu.matmul %133, %135, %cst_54 {dimension_numbers = #tpu.dot_dimension_numbers<[1], [0], [0], [1], [0, 0, 1, 1], [], []>} : vector<8x8xbf16>, vector<8x32xbf16>, vector<8x32xf32> -> vector<8x32xf32>
    %137 = arith.addf %111, %136 : vector<8x32xf32>
    %138 = vector.broadcast %10 : vector<1x32xf32> to vector<8x32xf32>
    %139 = arith.addf %137, %138 : vector<8x32xf32>
    %c0_55 = arith.constant 0 : index
    %c0_56 = arith.constant 0 : index
    %140 = vector.load %arg13[%c0_55, %c0_56] : memref<16x32xf32, #tpu.memory_space<vmem>>, vector<8x32xf32>
    tpu.vector_store %arg13[%c0_55, %c0_56], %139 {strides = array<i32>} : memref<16x32xf32, #tpu.memory_space<vmem>>, vector<8x32xf32>,
    %c1_57 = arith.constant 1 : index
    %c0_58 = arith.constant 0 : index
    %c0_59 = arith.constant 0 : index
    %141 = vector.load %arg2[%c1_57, %c0_58, %c0_59] : memref<2x1x8xf32, #tpu.memory_space<vmem>>, vector<1x1x8xf32>
    %142 = vector.shape_cast %141 : vector<1x1x8xf32> to vector<1x8xf32>
    %143 = vector.extract_strided_slice %22 {offsets = [8, 0], sizes = [8, 8], strides = [1, 1]} : vector<16x32xf32> to vector<8x8xf32>
    %144 = arith.truncf %143 : vector<8x8xf32> to vector<8x8xbf16>
    %145 = vector.extract_strided_slice %27 {offsets = [8, 0], sizes = [8, 8], strides = [1, 1]} : vector<16x32xf32> to vector<8x8xf32>
    %146 = arith.truncf %145 : vector<8x8xf32> to vector<8x8xbf16>
    %147 = vector.extract_strided_slice %32 {offsets = [8, 0], sizes = [8, 8], strides = [1, 1]} : vector<16x32xf32> to vector<8x8xf32>
    %148 = arith.truncf %147 : vector<8x8xf32> to vector<8x8xbf16>
    %cst_60 = arith.constant dense<0.000000e+00> : vector<8x8xf32>
    %149 = tpu.matmul %144, %146, %cst_60 {dimension_numbers = #tpu.dot_dimension_numbers<[1], [1], [0], [0], [0, 0, 1, 0], [], []>} : vector<8x8xbf16>, vector<8x8xbf16>, vector<8x8xf32> -> vector<8x8xf32>
    %150 = vector.broadcast %142 : vector<1x8xf32> to vector<8x8xf32>
    %151 = arith.addf %149, %150 : vector<8x8xf32>
    %cst_61 = arith.constant dense<0xFF800000> : vector<8xf32>
    %152 = vector.multi_reduction <maximumf>, %151, %cst_61 [1] : vector<8x8xf32> to vector<8xf32>
    %153 = vector.shape_cast %152 : vector<8xf32> to vector<8x1xf32>
    %154 = vector.broadcast %153 : vector<8x1xf32> to vector<8x8xf32>
    %155 = arith.subf %151, %154 : vector<8x8xf32>
    %156 = math.exp %155 : vector<8x8xf32>
    %cst_62 = arith.constant dense<0.000000e+00> : vector<8xf32>
    %157 = vector.multi_reduction <add>, %156, %cst_62 [1] : vector<8x8xf32> to vector<8xf32>
    %158 = vector.shape_cast %157 : vector<8xf32> to vector<8x1xf32>
    %159 = tpu.reciprocal %158 {approx = true} : vector<8x1xf32> -> vector<8x1xf32>
    %160 = vector.broadcast %159 : vector<8x1xf32> to vector<8x8xf32>
    %161 = arith.mulf %156, %160 : vector<8x8xf32>
    %162 = arith.truncf %161 : vector<8x8xf32> to vector<8x8xbf16>
    %cst_63 = arith.constant dense<0.000000e+00> : vector<8x8xf32>
    %163 = tpu.matmul %162, %148, %cst_63 {dimension_numbers = #tpu.dot_dimension_numbers<[1], [0], [0], [1], [0, 0, 1, 1], [], []>} : vector<8x8xbf16>, vector<8x8xbf16>, vector<8x8xf32> -> vector<8x8xf32>
    %164 = arith.truncf %163 : vector<8x8xf32> to vector<8x8xbf16>
    %c0_64 = arith.constant 0 : index
    %c0_65 = arith.constant 0 : index
    %c0_66 = arith.constant 0 : index
    %c0_67 = arith.constant 0 : index
    %165 = vector.load %arg6[%c0_64, %c0_65, %c0_66, %c0_67] : memref<1x4x8x32xbf16, #tpu.memory_space<vmem>>, vector<1x1x8x32xbf16>
    %166 = vector.shape_cast %165 : vector<1x1x8x32xbf16> to vector<8x32xbf16>
    %cst_68 = arith.constant dense<0.000000e+00> : vector<8x32xf32>
    %167 = tpu.matmul %164, %166, %cst_68 {dimension_numbers = #tpu.dot_dimension_numbers<[1], [0], [0], [1], [0, 0, 1, 1], [], []>} : vector<8x8xbf16>, vector<8x32xbf16>, vector<8x32xf32> -> vector<8x32xf32>
    %168 = vector.extract_strided_slice %22 {offsets = [8, 8], sizes = [8, 8], strides = [1, 1]} : vector<16x32xf32> to vector<8x8xf32>
    %169 = arith.truncf %168 : vector<8x8xf32> to vector<8x8xbf16>
    %170 = vector.extract_strided_slice %27 {offsets = [8, 8], sizes = [8, 8], strides = [1, 1]} : vector<16x32xf32> to vector<8x8xf32>
    %171 = arith.truncf %170 : vector<8x8xf32> to vector<8x8xbf16>
    %172 = vector.extract_strided_slice %32 {offsets = [8, 8], sizes = [8, 8], strides = [1, 1]} : vector<16x32xf32> to vector<8x8xf32>
    %173 = arith.truncf %172 : vector<8x8xf32> to vector<8x8xbf16>
    %cst_69 = arith.constant dense<0.000000e+00> : vector<8x8xf32>
    %174 = tpu.matmul %169, %171, %cst_69 {dimension_numbers = #tpu.dot_dimension_numbers<[1], [1], [0], [0], [0, 0, 1, 0], [], []>} : vector<8x8xbf16>, vector<8x8xbf16>, vector<8x8xf32> -> vector<8x8xf32>
    %175 = vector.broadcast %142 : vector<1x8xf32> to vector<8x8xf32>
    %176 = arith.addf %174, %175 : vector<8x8xf32>
    %cst_70 = arith.constant dense<0xFF800000> : vector<8xf32>
    %177 = vector.multi_reduction <maximumf>, %176, %cst_70 [1] : vector<8x8xf32> to vector<8xf32>
    %178 = vector.shape_cast %177 : vector<8xf32> to vector<8x1xf32>
    %179 = vector.broadcast %178 : vector<8x1xf32> to vector<8x8xf32>
    %180 = arith.subf %176, %179 : vector<8x8xf32>
    %181 = math.exp %180 : vector<8x8xf32>
    %cst_71 = arith.constant dense<0.000000e+00> : vector<8xf32>
    %182 = vector.multi_reduction <add>, %181, %cst_71 [1] : vector<8x8xf32> to vector<8xf32>
    %183 = vector.shape_cast %182 : vector<8xf32> to vector<8x1xf32>
    %184 = tpu.reciprocal %183 {approx = true} : vector<8x1xf32> -> vector<8x1xf32>
    %185 = vector.broadcast %184 : vector<8x1xf32> to vector<8x8xf32>
    %186 = arith.mulf %181, %185 : vector<8x8xf32>
    %187 = arith.truncf %186 : vector<8x8xf32> to vector<8x8xbf16>
    %cst_72 = arith.constant dense<0.000000e+00> : vector<8x8xf32>
    %188 = tpu.matmul %187, %173, %cst_72 {dimension_numbers = #tpu.dot_dimension_numbers<[1], [0], [0], [1], [0, 0, 1, 1], [], []>} : vector<8x8xbf16>, vector<8x8xbf16>, vector<8x8xf32> -> vector<8x8xf32>
    %189 = arith.truncf %188 : vector<8x8xf32> to vector<8x8xbf16>
    %c0_73 = arith.constant 0 : index
    %c1_74 = arith.constant 1 : index
    %c0_75 = arith.constant 0 : index
    %c0_76 = arith.constant 0 : index
    %190 = vector.load %arg6[%c0_73, %c1_74, %c0_75, %c0_76] : memref<1x4x8x32xbf16, #tpu.memory_space<vmem>>, vector<1x1x8x32xbf16>
    %191 = vector.shape_cast %190 : vector<1x1x8x32xbf16> to vector<8x32xbf16>
    %cst_77 = arith.constant dense<0.000000e+00> : vector<8x32xf32>
    %192 = tpu.matmul %189, %191, %cst_77 {dimension_numbers = #tpu.dot_dimension_numbers<[1], [0], [0], [1], [0, 0, 1, 1], [], []>} : vector<8x8xbf16>, vector<8x32xbf16>, vector<8x32xf32> -> vector<8x32xf32>
    %193 = arith.addf %167, %192 : vector<8x32xf32>
    %194 = vector.extract_strided_slice %22 {offsets = [8, 16], sizes = [8, 8], strides = [1, 1]} : vector<16x32xf32> to vector<8x8xf32>
    %195 = arith.truncf %194 : vector<8x8xf32> to vector<8x8xbf16>
    %196 = vector.extract_strided_slice %27 {offsets = [8, 16], sizes = [8, 8], strides = [1, 1]} : vector<16x32xf32> to vector<8x8xf32>
    %197 = arith.truncf %196 : vector<8x8xf32> to vector<8x8xbf16>
    %198 = vector.extract_strided_slice %32 {offsets = [8, 16], sizes = [8, 8], strides = [1, 1]} : vector<16x32xf32> to vector<8x8xf32>
    %199 = arith.truncf %198 : vector<8x8xf32> to vector<8x8xbf16>
    %cst_78 = arith.constant dense<0.000000e+00> : vector<8x8xf32>
    %200 = tpu.matmul %195, %197, %cst_78 {dimension_numbers = #tpu.dot_dimension_numbers<[1], [1], [0], [0], [0, 0, 1, 0], [], []>} : vector<8x8xbf16>, vector<8x8xbf16>, vector<8x8xf32> -> vector<8x8xf32>
    %201 = vector.broadcast %142 : vector<1x8xf32> to vector<8x8xf32>
    %202 = arith.addf %200, %201 : vector<8x8xf32>
    %cst_79 = arith.constant dense<0xFF800000> : vector<8xf32>
    %203 = vector.multi_reduction <maximumf>, %202, %cst_79 [1] : vector<8x8xf32> to vector<8xf32>
    %204 = vector.shape_cast %203 : vector<8xf32> to vector<8x1xf32>
    %205 = vector.broadcast %204 : vector<8x1xf32> to vector<8x8xf32>
    %206 = arith.subf %202, %205 : vector<8x8xf32>
    %207 = math.exp %206 : vector<8x8xf32>
    %cst_80 = arith.constant dense<0.000000e+00> : vector<8xf32>
    %208 = vector.multi_reduction <add>, %207, %cst_80 [1] : vector<8x8xf32> to vector<8xf32>
    %209 = vector.shape_cast %208 : vector<8xf32> to vector<8x1xf32>
    %210 = tpu.reciprocal %209 {approx = true} : vector<8x1xf32> -> vector<8x1xf32>
    %211 = vector.broadcast %210 : vector<8x1xf32> to vector<8x8xf32>
    %212 = arith.mulf %207, %211 : vector<8x8xf32>
    %213 = arith.truncf %212 : vector<8x8xf32> to vector<8x8xbf16>
    %cst_81 = arith.constant dense<0.000000e+00> : vector<8x8xf32>
    %214 = tpu.matmul %213, %199, %cst_81 {dimension_numbers = #tpu.dot_dimension_numbers<[1], [0], [0], [1], [0, 0, 1, 1], [], []>} : vector<8x8xbf16>, vector<8x8xbf16>, vector<8x8xf32> -> vector<8x8xf32>
    %215 = arith.truncf %214 : vector<8x8xf32> to vector<8x8xbf16>
    %c0_82 = arith.constant 0 : index
    %c2_83 = arith.constant 2 : index
    %c0_84 = arith.constant 0 : index
    %c0_85 = arith.constant 0 : index
    %216 = vector.load %arg6[%c0_82, %c2_83, %c0_84, %c0_85] : memref<1x4x8x32xbf16, #tpu.memory_space<vmem>>, vector<1x1x8x32xbf16>
    %217 = vector.shape_cast %216 : vector<1x1x8x32xbf16> to vector<8x32xbf16>
    %cst_86 = arith.constant dense<0.000000e+00> : vector<8x32xf32>
    %218 = tpu.matmul %215, %217, %cst_86 {dimension_numbers = #tpu.dot_dimension_numbers<[1], [0], [0], [1], [0, 0, 1, 1], [], []>} : vector<8x8xbf16>, vector<8x32xbf16>, vector<8x32xf32> -> vector<8x32xf32>
    %219 = arith.addf %193, %218 : vector<8x32xf32>
    %220 = vector.extract_strided_slice %22 {offsets = [8, 24], sizes = [8, 8], strides = [1, 1]} : vector<16x32xf32> to vector<8x8xf32>
    %221 = arith.truncf %220 : vector<8x8xf32> to vector<8x8xbf16>
    %222 = vector.extract_strided_slice %27 {offsets = [8, 24], sizes = [8, 8], strides = [1, 1]} : vector<16x32xf32> to vector<8x8xf32>
    %223 = arith.truncf %222 : vector<8x8xf32> to vector<8x8xbf16>
    %224 = vector.extract_strided_slice %32 {offsets = [8, 24], sizes = [8, 8], strides = [1, 1]} : vector<16x32xf32> to vector<8x8xf32>
    %225 = arith.truncf %224 : vector<8x8xf32> to vector<8x8xbf16>
    %cst_87 = arith.constant dense<0.000000e+00> : vector<8x8xf32>
    %226 = tpu.matmul %221, %223, %cst_87 {dimension_numbers = #tpu.dot_dimension_numbers<[1], [1], [0], [0], [0, 0, 1, 0], [], []>} : vector<8x8xbf16>, vector<8x8xbf16>, vector<8x8xf32> -> vector<8x8xf32>
    %227 = vector.broadcast %142 : vector<1x8xf32> to vector<8x8xf32>
    %228 = arith.addf %226, %227 : vector<8x8xf32>
    %cst_88 = arith.constant dense<0xFF800000> : vector<8xf32>
    %229 = vector.multi_reduction <maximumf>, %228, %cst_88 [1] : vector<8x8xf32> to vector<8xf32>
    %230 = vector.shape_cast %229 : vector<8xf32> to vector<8x1xf32>
    %231 = vector.broadcast %230 : vector<8x1xf32> to vector<8x8xf32>
    %232 = arith.subf %228, %231 : vector<8x8xf32>
    %233 = math.exp %232 : vector<8x8xf32>
    %cst_89 = arith.constant dense<0.000000e+00> : vector<8xf32>
    %234 = vector.multi_reduction <add>, %233, %cst_89 [1] : vector<8x8xf32> to vector<8xf32>
    %235 = vector.shape_cast %234 : vector<8xf32> to vector<8x1xf32>
    %236 = tpu.reciprocal %235 {approx = true} : vector<8x1xf32> -> vector<8x1xf32>
    %237 = vector.broadcast %236 : vector<8x1xf32> to vector<8x8xf32>
    %238 = arith.mulf %233, %237 : vector<8x8xf32>
    %239 = arith.truncf %238 : vector<8x8xf32> to vector<8x8xbf16>
    %cst_90 = arith.constant dense<0.000000e+00> : vector<8x8xf32>
    %240 = tpu.matmul %239, %225, %cst_90 {dimension_numbers = #tpu.dot_dimension_numbers<[1], [0], [0], [1], [0, 0, 1, 1], [], []>} : vector<8x8xbf16>, vector<8x8xbf16>, vector<8x8xf32> -> vector<8x8xf32>
    %241 = arith.truncf %240 : vector<8x8xf32> to vector<8x8xbf16>
    %c0_91 = arith.constant 0 : index
    %c3_92 = arith.constant 3 : index
    %c0_93 = arith.constant 0 : index
    %c0_94 = arith.constant 0 : index
    %242 = vector.load %arg6[%c0_91, %c3_92, %c0_93, %c0_94] : memref<1x4x8x32xbf16, #tpu.memory_space<vmem>>, vector<1x1x8x32xbf16>
    %243 = vector.shape_cast %242 : vector<1x1x8x32xbf16> to vector<8x32xbf16>
    %cst_95 = arith.constant dense<0.000000e+00> : vector<8x32xf32>
    %244 = tpu.matmul %241, %243, %cst_95 {dimension_numbers = #tpu.dot_dimension_numbers<[1], [0], [0], [1], [0, 0, 1, 1], [], []>} : vector<8x8xbf16>, vector<8x32xbf16>, vector<8x32xf32> -> vector<8x32xf32>
    %245 = arith.addf %219, %244 : vector<8x32xf32>
    %246 = vector.broadcast %10 : vector<1x32xf32> to vector<8x32xf32>
    %247 = arith.addf %245, %246 : vector<8x32xf32>
    %c8 = arith.constant 8 : index
    %c0_96 = arith.constant 0 : index
    %248 = vector.load %arg13[%c8, %c0_96] : memref<16x32xf32, #tpu.memory_space<vmem>>, vector<8x32xf32>
    tpu.vector_store %arg13[%c8, %c0_96], %247 {strides = array<i32>} : memref<16x32xf32, #tpu.memory_space<vmem>>, vector<8x32xf32>,
    %c0_97 = arith.constant 0 : index
    %c0_98 = arith.constant 0 : index
    %249 = vector.load %arg13[%c0_97, %c0_98] : memref<16x32xf32, #tpu.memory_space<vmem>>, vector<16x32xf32>
    %250 = arith.addf %3, %249 : vector<16x32xf32>
    %cst_99 = arith.constant dense<0.000000e+00> : vector<16xf32>
    %251 = vector.multi_reduction <add>, %250, %cst_99 [1] : vector<16x32xf32> to vector<16xf32>
    %252 = vector.shape_cast %251 : vector<16xf32> to vector<16x1xf32>
    %cst_100 = arith.constant 3.200000e+01 : f32
    %253 = vector.broadcast %cst_100 : f32 to vector<16x1xf32>
    %254 = arith.divf %252, %253 : vector<16x1xf32>
    %255 = vector.broadcast %254 : vector<16x1xf32> to vector<16x32xf32>
    %256 = arith.subf %250, %255 : vector<16x32xf32>
    %257 = arith.mulf %256, %256 : vector<16x32xf32>
    %cst_101 = arith.constant dense<0.000000e+00> : vector<16xf32>
    %258 = vector.multi_reduction <add>, %257, %cst_101 [1] : vector<16x32xf32> to vector<16xf32>
    %259 = vector.shape_cast %258 : vector<16xf32> to vector<16x1xf32>
    %cst_102 = arith.constant 3.200000e+01 : f32
    %260 = vector.broadcast %cst_102 : f32 to vector<16x1xf32>
    %261 = arith.divf %259, %260 : vector<16x1xf32>
    %cst_103 = arith.constant 9.99999974E-6 : f32
    %262 = vector.broadcast %cst_103 : f32 to vector<16x1xf32>
    %263 = arith.addf %261, %262 : vector<16x1xf32>
    %264 = math.rsqrt %263 : vector<16x1xf32>
    %265 = vector.broadcast %264 : vector<16x1xf32> to vector<16x32xf32>
    %266 = arith.mulf %256, %265 : vector<16x32xf32>
    %267 = vector.broadcast %11 : vector<1x32xf32> to vector<16x32xf32>
    %268 = arith.mulf %266, %267 : vector<16x32xf32>
    %269 = vector.broadcast %12 : vector<1x32xf32> to vector<16x32xf32>
    %270 = arith.addf %268, %269 : vector<16x32xf32>
    %271 = arith.truncf %270 : vector<16x32xf32> to vector<16x32xbf16>
    %c0_104 = arith.constant 0 : index
    %c0_105 = arith.constant 0 : index
    %c0_106 = arith.constant 0 : index
    %272 = vector.load %arg7[%c0_104, %c0_105, %c0_106] : memref<1x32x64xbf16, #tpu.memory_space<vmem>>, vector<1x32x64xbf16>
    %273 = vector.shape_cast %272 : vector<1x32x64xbf16> to vector<32x64xbf16>
    %cst_107 = arith.constant dense<0.000000e+00> : vector<16x64xf32>
    %274 = tpu.matmul %271, %273, %cst_107 {dimension_numbers = #tpu.dot_dimension_numbers<[1], [0], [0], [1], [0, 0, 1, 1], [], []>} : vector<16x32xbf16>, vector<32x64xbf16>, vector<16x64xf32> -> vector<16x64xf32>
    %275 = vector.broadcast %17 : vector<1x64xf32> to vector<16x64xf32>
    %276 = arith.addf %274, %275 : vector<16x64xf32>
    %cst_108 = arith.constant 5.000000e-01 : f32
    %277 = vector.broadcast %cst_108 : f32 to vector<16x64xf32>
    %278 = arith.mulf %277, %276 : vector<16x64xf32>
    %cst_109 = arith.constant 4.471500e-02 : f32
    %279 = vector.broadcast %cst_109 : f32 to vector<16x64xf32>
    %280 = arith.mulf %279, %276 : vector<16x64xf32>
    %281 = arith.mulf %280, %276 : vector<16x64xf32>
    %282 = arith.mulf %281, %276 : vector<16x64xf32>
    %283 = arith.addf %276, %282 : vector<16x64xf32>
    %cst_110 = arith.constant 0.797884583 : f32
    %284 = vector.broadcast %cst_110 : f32 to vector<16x64xf32>
    %285 = arith.mulf %284, %283 : vector<16x64xf32>
    %286 = math.tanh %285 : vector<16x64xf32>
    %cst_111 = arith.constant 1.000000e+00 : f32
    %287 = vector.broadcast %cst_111 : f32 to vector<16x64xf32>
    %288 = arith.addf %287, %286 : vector<16x64xf32>
    %289 = arith.mulf %278, %288 : vector<16x64xf32>
    %290 = arith.truncf %289 : vector<16x64xf32> to vector<16x64xbf16>
    %c0_112 = arith.constant 0 : index
    %c0_113 = arith.constant 0 : index
    %c0_114 = arith.constant 0 : index
    %291 = vector.load %arg8[%c0_112, %c0_113, %c0_114] : memref<1x64x32xbf16, #tpu.memory_space<vmem>>, vector<1x64x32xbf16>
    %292 = vector.shape_cast %291 : vector<1x64x32xbf16> to vector<64x32xbf16>
    %cst_115 = arith.constant dense<0.000000e+00> : vector<16x32xf32>
    %293 = tpu.matmul %290, %292, %cst_115 {dimension_numbers = #tpu.dot_dimension_numbers<[1], [0], [0], [1], [0, 0, 1, 1], [], []>} : vector<16x64xbf16>, vector<64x32xbf16>, vector<16x32xf32> -> vector<16x32xf32>
    %294 = vector.broadcast %15 : vector<1x32xf32> to vector<16x32xf32>
    %295 = arith.addf %293, %294 : vector<16x32xf32>
    %296 = arith.addf %270, %295 : vector<16x32xf32>
    %cst_116 = arith.constant dense<0.000000e+00> : vector<16xf32>
    %297 = vector.multi_reduction <add>, %296, %cst_116 [1] : vector<16x32xf32> to vector<16xf32>
    %298 = vector.shape_cast %297 : vector<16xf32> to vector<16x1xf32>
    %cst_117 = arith.constant 3.200000e+01 : f32
    %299 = vector.broadcast %cst_117 : f32 to vector<16x1xf32>
    %300 = arith.divf %298, %299 : vector<16x1xf32>
    %301 = vector.broadcast %300 : vector<16x1xf32> to vector<16x32xf32>
    %302 = arith.subf %296, %301 : vector<16x32xf32>
    %303 = arith.mulf %302, %302 : vector<16x32xf32>
    %cst_118 = arith.constant dense<0.000000e+00> : vector<16xf32>
    %304 = vector.multi_reduction <add>, %303, %cst_118 [1] : vector<16x32xf32> to vector<16xf32>
    %305 = vector.shape_cast %304 : vector<16xf32> to vector<16x1xf32>
    %cst_119 = arith.constant 3.200000e+01 : f32
    %306 = vector.broadcast %cst_119 : f32 to vector<16x1xf32>
    %307 = arith.divf %305, %306 : vector<16x1xf32>
    %cst_120 = arith.constant 9.99999974E-6 : f32
    %308 = vector.broadcast %cst_120 : f32 to vector<16x1xf32>
    %309 = arith.addf %307, %308 : vector<16x1xf32>
    %310 = math.rsqrt %309 : vector<16x1xf32>
    %311 = vector.broadcast %310 : vector<16x1xf32> to vector<16x32xf32>
    %312 = arith.mulf %302, %311 : vector<16x32xf32>
    %313 = vector.broadcast %13 : vector<1x32xf32> to vector<16x32xf32>
    %314 = arith.mulf %312, %313 : vector<16x32xf32>
    %315 = vector.broadcast %14 : vector<1x32xf32> to vector<16x32xf32>
    %316 = arith.addf %314, %315 : vector<16x32xf32>
    %c0_121 = arith.constant 0 : index
    %c0_122 = arith.constant 0 : index
    %317 = vector.load %arg12[%c0_121, %c0_122] : memref<16x32xf32, #tpu.memory_space<vmem>>, vector<16x32xf32>
    tpu.vector_store %arg12[%c0_121, %c0_122], %316 {strides = array<i32>} : memref<16x32xf32, #tpu.memory_space<vmem>>, vector<16x32xf32>,
    %c0_123 = arith.constant 0 : index
    %c0_124 = arith.constant 0 : index
    %c0_125 = arith.constant 0 : index
    %318 = vector.load %arg11[%c0_123, %c0_124, %c0_125] : memref<1x16x32xf32, #tpu.memory_space<vmem>>, vector<1x16x32xf32>
    %319 = vector.shape_cast %318 : vector<1x16x32xf32> to vector<16x32xf32>
    %320 = vector.shape_cast %316 : vector<16x32xf32> to vector<1x16x32xf32>
    tpu.vector_store %arg11[%c0_123, %c0_124, %c0_125], %320 {strides = array<i32>} : memref<1x16x32xf32, #tpu.memory_space<vmem>>, vector<1x16x32xf32>,
    return
  }
  func.func @transform_0(%arg0: i32) -> (i32, i32) {
    %c0_i32 = arith.constant 0 : i32
    %c0_i32_0 = arith.constant 0 : i32
    %c0_i32_1 = arith.constant 0 : i32
    return %c0_i32, %c0_i32_0 : i32, i32
  }
  func.func @transform_1(%arg0: i32) -> (i32, i32, i32) {
    %c0_i32 = arith.constant 0 : i32
    %c0_i32_0 = arith.constant 0 : i32
    %c0_i32_1 = arith.constant 0 : i32
    %c0_i32_2 = arith.constant 0 : i32
    return %c0_i32, %c0_i32_0, %c0_i32_1 : i32, i32, i32
  }
  func.func @transform_2(%arg0: i32) -> (i32, i32, i32) {
    %c0_i32 = arith.constant 0 : i32
    %c0_i32_0 = arith.constant 0 : i32
    %c0_i32_1 = arith.constant 0 : i32
    return %arg0, %c0_i32, %c0_i32_0 : i32, i32, i32
  }
  func.func @transform_3(%arg0: i32) -> (i32, i32, i32) {
    %c0_i32 = arith.constant 0 : i32
    %c0_i32_0 = arith.constant 0 : i32
    %c0_i32_1 = arith.constant 0 : i32
    return %arg0, %c0_i32, %c0_i32_0 : i32, i32, i32
  }
  func.func @transform_4(%arg0: i32) -> (i32, i32, i32) {
    %c0_i32 = arith.constant 0 : i32
    %c0_i32_0 = arith.constant 0 : i32
    %c0_i32_1 = arith.constant 0 : i32
    return %arg0, %c0_i32, %c0_i32_0 : i32, i32, i32
  }
  func.func @transform_5(%arg0: i32) -> (i32, i32, i32, i32) {
    %c0_i32 = arith.constant 0 : i32
    %c0_i32_0 = arith.constant 0 : i32
    %c0_i32_1 = arith.constant 0 : i32
    %c0_i32_2 = arith.constant 0 : i32
    return %arg0, %c0_i32, %c0_i32_0, %c0_i32_1 : i32, i32, i32, i32
  }
  func.func @transform_6(%arg0: i32) -> (i32, i32, i32) {
    %c0_i32 = arith.constant 0 : i32
    %c0_i32_0 = arith.constant 0 : i32
    %c0_i32_1 = arith.constant 0 : i32
    return %arg0, %c0_i32, %c0_i32_0 : i32, i32, i32
  }
  func.func @transform_7(%arg0: i32) -> (i32, i32, i32) {
    %c0_i32 = arith.constant 0 : i32
    %c0_i32_0 = arith.constant 0 : i32
    %c0_i32_1 = arith.constant 0 : i32
    return %arg0, %c0_i32, %c0_i32_0 : i32, i32, i32
  }
  func.func @transform_8(%arg0: i32) -> (i32, i32, i32) {
    %c0_i32 = arith.constant 0 : i32
    %c0_i32_0 = arith.constant 0 : i32
    %c0_i32_1 = arith.constant 0 : i32
    return %arg0, %c0_i32, %c0_i32_0 : i32, i32, i32
  }
  func.func @transform_9(%arg0: i32) -> (i32, i32, i32) {
    %c0_i32 = arith.constant 0 : i32
    %c0_i32_0 = arith.constant 0 : i32
    %c0_i32_1 = arith.constant 0 : i32
    return %arg0, %c0_i32, %c0_i32_0 : i32, i32, i32
  }
  func.func @transform_10(%arg0: i32) -> (i32, i32, i32) {
    %c0_i32 = arith.constant 0 : i32
    %c0_i32_0 = arith.constant 0 : i32
    %c0_i32_1 = arith.constant 0 : i32
    return %arg0, %c0_i32, %c0_i32_0 : i32, i32, i32
  }
}

</mosaic_0001>

<llo_original>
// kernel: accelerator_transformer_layers_forward.1
$region0: #{accelerator_transformer_layers_forward.1}
  #allocation0 [shape = 'u32[]', space=smem, size = 0x4, offset = 0x4, fixed_abs, tag = 'smem constant byte address 0x4 - core index']
  #allocation1 [shape = 'u32[144,128]{1,0:T(1,128)}', space=vmem, size = 0x12000, scoped, tag = 'internal scratch']
  #allocation2 [shape = 'f32[16,32]{1,0:T(8,128)}', space=vmem, size = 0x2000, scoped, tag = 'scratch operand']
  #allocation3 [shape = 'f32[16,32]{1,0:T(8,128)}', space=vmem, size = 0x2000, scoped, tag = 'scratch operand']
  %s0 = inlined_call_operand.vmem [shape: f32[16,32], index: 0, kind: input, shape index: {}]
  %s1 = inlined_call_operand.vmem [shape: f32[2,1,8], index: 1, kind: input, shape index: {}]
  %s2 = inlined_call_operand.vmem [shape: bf16[2,32,32], index: 2, kind: input, shape index: {}]
  %s3 = inlined_call_operand.vmem [shape: bf16[2,32,32], index: 3, kind: input, shape index: {}]
  %s4 = inlined_call_operand.vmem [shape: bf16[2,32,32], index: 4, kind: input, shape index: {}]
  %s5 = inlined_call_operand.vmem [shape: bf16[2,4,8,32], index: 5, kind: input, shape index: {}]
  %s6 = inlined_call_operand.vmem [shape: bf16[2,32,64], index: 6, kind: input, shape index: {}]
  %s7 = inlined_call_operand.vmem [shape: bf16[2,64,32], index: 7, kind: input, shape index: {}]
  %s8 = inlined_call_operand.vmem [shape: f32[2,9,32], index: 8, kind: input, shape index: {}]
  %s9 = inlined_call_operand.vmem [shape: f32[2,1,64], index: 9, kind: input, shape index: {}]
  %s10 = inlined_call_operand.vmem [shape: f32[2,16,32], index: 10, kind: output, shape index: {}]
  %s11 = sld [smem:[#allocation0]]
  $region77: #{accelerator_transformer_layers_forward.1} parent=0
    _
  %s13 = ssub.s32 1, %s11
  %s14 = scalar_select 0, %s13, %s11
  loop: start=0, step=1, limit=4
  $region2: #{accelerator_transformer_layers_forward.1} parent=0 // loop_pre_header
    _
  $region3: #{accelerator_transformer_layers_forward.1} parent=0 // loop_header
    %s16 = sphi 0, %s20
    %p17 = scmp.ge.s32.totalorder %s16, 4
    %s24 = sphi 0, %s24
    %s26 = sphi 0, %s24
    %s27 = sphi 0, %s26
    %s41 = sphi 0, %s27
    %s45 = sphi 0, %s45
    %s47 = sphi 0, %s45
    %s48 = sphi 0, %s47
    %s62 = sphi 0, %s48
    %s68 = sphi 0, %s70
    %s71 = sphi 0, %s68
    %s72 = sphi 0, %s71
    %s88 = sphi 0, %s72
    %s94 = sphi 0, %s96
    %s97 = sphi 0, %s94
    %s98 = sphi 0, %s97
    %s114 = sphi 0, %s98
    %s120 = sphi 0, %s122
    %s123 = sphi 0, %s120
    %s124 = sphi 0, %s123
    %s140 = sphi 0, %s124
    %s146 = sphi 0, %s148
    %s149 = sphi 0, %s146
    %s150 = sphi 0, %s149
    %s166 = sphi 0, %s150
    %s172 = sphi 0, %s174
    %s175 = sphi 0, %s172
    %s176 = sphi 0, %s175
    %s192 = sphi 0, %s176
    %s198 = sphi 0, %s200
    %s201 = sphi 0, %s198
    %s202 = sphi 0, %s201
    %s218 = sphi 0, %s202
    %s224 = sphi 0, %s226
    %s227 = sphi 0, %s224
    %s228 = sphi 0, %s227
    %s244 = sphi 0, %s228
    %s250 = sphi 0, %s252
    %s253 = sphi 0, %s250
    %s254 = sphi 0, %s253
    %s270 = sphi 0, %s254
    %s276 = sphi 0, %s278
    %s279 = sphi 0, %s276
    %s280 = sphi 0, %s279
    %s296 = sphi 0, %s280
  $region4: #{accelerator_transformer_layers_forward.1} parent=0 // loop_header_branch
    %19 = sbr.rel (%p17) target = $region8
  $region5: #{accelerator_transformer_layers_forward.1} parent=0 // loop_body
    %s21 = ssub.s32 %s16, 1
    %s22 = ssub.s32 %s16, 2
    %s23 = sadd.s32 %s16, 1
    %s25 = sadd.s32 %s24, 1
    %p28 = scmp.eq.s32.totalorder %s16, 1
    %p29 = scmp.ne.s32.totalorder %s24, %s26
    %p30 = scmp.eq.s32.totalorder %s16, 0
    %p31 = por %p29, %p30
    %p32 = scmp.ne.s32.totalorder %s24, %s26
    %p33 = scmp.eq.s32.totalorder %s21, 1
    %p34 = por %p32, %p33
    %p35 = scmp.ne.s32.totalorder %s26, %s27
    %p36 = scmp.eq.s32.totalorder %s21, 0
    %p37 = por %p35, %p36
    %p38 = scmp.ne.s32.totalorder %s26, %s27
    %p39 = scmp.eq.s32.totalorder %s22, 1
    %p40 = por %p38, %p39
    %p42 = scmp.ne.s32.totalorder %s27, %s41
    %p43 = scmp.eq.s32.totalorder %s22, 0
    %p44 = por %p42, %p43
    %s46 = sadd.s32 %s45, 1
    %p49 = scmp.eq.s32.totalorder %s16, 1
    %p50 = scmp.ne.s32.totalorder %s45, %s47
    %p51 = scmp.eq.s32.totalorder %s16, 0
    %p52 = por %p50, %p51
    %p53 = scmp.ne.s32.totalorder %s45, %s47
    %p54 = scmp.eq.s32.totalorder %s21, 1
    %p55 = por %p53, %p54
    %p56 = scmp.ne.s32.totalorder %s47, %s48
    %p57 = scmp.eq.s32.totalorder %s21, 0
    %p58 = por %p56, %p57
    %p59 = scmp.ne.s32.totalorder %s47, %s48
    %p60 = scmp.eq.s32.totalorder %s22, 1
    %p61 = por %p59, %p60
    %p63 = scmp.ne.s32.totalorder %s48, %s62
    %p64 = scmp.eq.s32.totalorder %s22, 0
    %p65 = por %p63, %p64
    %s66 = ssub.s32 %s16, %s23
    %p67 = scmp.eq.s32.totalorder %s66, 0
    %s69 = sadd.s32 %s68, 1
    %s70 = scalar_select %p67, %s68, %s69
    %p73 = pneg %p67
    %p74 = scmp.eq.s32.totalorder %s16, 1
    %p75 = por %p73, %p74
    %p76 = scmp.ne.s32.totalorder %s68, %s71
    %p77 = scmp.eq.s32.totalorder %s16, 0
    %p78 = por %p76, %p77
    %p79 = scmp.ne.s32.totalorder %s68, %s71
    %p80 = scmp.eq.s32.totalorder %s21, 1
    %p81 = por %p79, %p80
    %p82 = scmp.ne.s32.totalorder %s71, %s72
    %p83 = scmp.eq.s32.totalorder %s21, 0
    %p84 = por %p82, %p83
    %p85 = scmp.ne.s32.totalorder %s71, %s72
    %p86 = scmp.eq.s32.totalorder %s22, 1
    %p87 = por %p85, %p86
    %p89 = scmp.ne.s32.totalorder %s72, %s88
    %p90 = scmp.eq.s32.totalorder %s22, 0
    %p91 = por %p89, %p90
    %s92 = ssub.s32 %s16, %s23
    %p93 = scmp.eq.s32.totalorder %s92, 0
    %s95 = sadd.s32 %s94, 1
    %s96 = scalar_select %p93, %s94, %s95
    %p99 = pneg %p93
    %p100 = scmp.eq.s32.totalorder %s16, 1
    %p101 = por %p99, %p100
    %p102 = scmp.ne.s32.totalorder %s94, %s97
    %p103 = scmp.eq.s32.totalorder %s16, 0
    %p104 = por %p102, %p103
    %p105 = scmp.ne.s32.totalorder %s94, %s97
    %p106 = scmp.eq.s32.totalorder %s21, 1
    %p107 = por %p105, %p106
    %p108 = scmp.ne.s32.totalorder %s97, %s98
    %p109 = scmp.eq.s32.totalorder %s21, 0
    %p110 = por %p108, %p109
    %p111 = scmp.ne.s32.totalorder %s97, %s98
    %p112 = scmp.eq.s32.totalorder %s22, 1
    %p113 = por %p111, %p112
    %p115 = scmp.ne.s32.totalorder %s98, %s114
    %p116 = scmp.eq.s32.totalorder %s22, 0
    %p117 = por %p115, %p116
    %s118 = ssub.s32 %s16, %s23
    %p119 = scmp.eq.s32.totalorder %s118, 0
    %s121 = sadd.s32 %s120, 1
    %s122 = scalar_select %p119, %s120, %s121
    %p125 = pneg %p119
    %p126 = scmp.eq.s32.totalorder %s16, 1
    %p127 = por %p125, %p126
    %p128 = scmp.ne.s32.totalorder %s120, %s123
    %p129 = scmp.eq.s32.totalorder %s16, 0
    %p130 = por %p128, %p129
    %p131 = scmp.ne.s32.totalorder %s120, %s123
    %p132 = scmp.eq.s32.totalorder %s21, 1
    %p133 = por %p131, %p132
    %p134 = scmp.ne.s32.totalorder %s123, %s124
    %p135 = scmp.eq.s32.totalorder %s21, 0
    %p136 = por %p134, %p135
    %p137 = scmp.ne.s32.totalorder %s123, %s124
    %p138 = scmp.eq.s32.totalorder %s22, 1
    %p139 = por %p137, %p138
    %p141 = scmp.ne.s32.totalorder %s124, %s140
    %p142 = scmp.eq.s32.totalorder %s22, 0
    %p143 = por %p141, %p142
    %s144 = ssub.s32 %s16, %s23
    %p145 = scmp.eq.s32.totalorder %s144, 0
    %s147 = sadd.s32 %s146, 1
    %s148 = scalar_select %p145, %s146, %s147
    %p151 = pneg %p145
    %p152 = scmp.eq.s32.totalorder %s16, 1
    %p153 = por %p151, %p152
    %p154 = scmp.ne.s32.totalorder %s146, %s149
    %p155 = scmp.eq.s32.totalorder %s16, 0
    %p156 = por %p154, %p155
    %p157 = scmp.ne.s32.totalorder %s146, %s149
    %p158 = scmp.eq.s32.totalorder %s21, 1
    %p159 = por %p157, %p158
    %p160 = scmp.ne.s32.totalorder %s149, %s150
    %p161 = scmp.eq.s32.totalorder %s21, 0
    %p162 = por %p160, %p161
    %p163 = scmp.ne.s32.totalorder %s149, %s150
    %p164 = scmp.eq.s32.totalorder %s22, 1
    %p165 = por %p163, %p164
    %p167 = scmp.ne.s32.totalorder %s150, %s166
    %p168 = scmp.eq.s32.totalorder %s22, 0
    %p169 = por %p167, %p168
    %s170 = ssub.s32 %s16, %s23
    %p171 = scmp.eq.s32.totalorder %s170, 0
    %s173 = sadd.s32 %s172, 1
    %s174 = scalar_select %p171, %s172, %s173
    %p177 = pneg %p171
    %p178 = scmp.eq.s32.totalorder %s16, 1
    %p179 = por %p177, %p178
    %p180 = scmp.ne.s32.totalorder %s172, %s175
    %p181 = scmp.eq.s32.totalorder %s16, 0
    %p182 = por %p180, %p181
    %p183 = scmp.ne.s32.totalorder %s172, %s175
    %p184 = scmp.eq.s32.totalorder %s21, 1
    %p185 = por %p183, %p184
    %p186 = scmp.ne.s32.totalorder %s175, %s176
    %p187 = scmp.eq.s32.totalorder %s21, 0
    %p188 = por %p186, %p187
    %p189 = scmp.ne.s32.totalorder %s175, %s176
    %p190 = scmp.eq.s32.totalorder %s22, 1
    %p191 = por %p189, %p190
    %p193 = scmp.ne.s32.totalorder %s176, %s192
    %p194 = scmp.eq.s32.totalorder %s22, 0
    %p195 = por %p193, %p194
    %s196 = ssub.s32 %s16, %s23
    %p197 = scmp.eq.s32.totalorder %s196, 0
    %s199 = sadd.s32 %s198, 1
    %s200 = scalar_select %p197, %s198, %s199
    %p203 = pneg %p197
    %p204 = scmp.eq.s32.totalorder %s16, 1
    %p205 = por %p203, %p204
    %p206 = scmp.ne.s32.totalorder %s198, %s201
    %p207 = scmp.eq.s32.totalorder %s16, 0
    %p208 = por %p206, %p207
    %p209 = scmp.ne.s32.totalorder %s198, %s201
    %p210 = scmp.eq.s32.totalorder %s21, 1
    %p211 = por %p209, %p210
    %p212 = scmp.ne.s32.totalorder %s201, %s202
    %p213 = scmp.eq.s32.totalorder %s21, 0
    %p214 = por %p212, %p213
    %p215 = scmp.ne.s32.totalorder %s201, %s202
    %p216 = scmp.eq.s32.totalorder %s22, 1
    %p217 = por %p215, %p216
    %p219 = scmp.ne.s32.totalorder %s202, %s218
    %p220 = scmp.eq.s32.totalorder %s22, 0
    %p221 = por %p219, %p220
    %s222 = ssub.s32 %s16, %s23
    %p223 = scmp.eq.s32.totalorder %s222, 0
    %s225 = sadd.s32 %s224, 1
    %s226 = scalar_select %p223, %s224, %s225
    %p229 = pneg %p223
    %p230 = scmp.eq.s32.totalorder %s16, 1
    %p231 = por %p229, %p230
    %p232 = scmp.ne.s32.totalorder %s224, %s227
    %p233 = scmp.eq.s32.totalorder %s16, 0
    %p234 = por %p232, %p233
    %p235 = scmp.ne.s32.totalorder %s224, %s227
    %p236 = scmp.eq.s32.totalorder %s21, 1
    %p237 = por %p235, %p236
    %p238 = scmp.ne.s32.totalorder %s227, %s228
    %p239 = scmp.eq.s32.totalorder %s21, 0
    %p240 = por %p238, %p239
    %p241 = scmp.ne.s32.totalorder %s227, %s228
    %p242 = scmp.eq.s32.totalorder %s22, 1
    %p243 = por %p241, %p242
    %p245 = scmp.ne.s32.totalorder %s228, %s244
    %p246 = scmp.eq.s32.totalorder %s22, 0
    %p247 = por %p245, %p246
    %s248 = ssub.s32 %s16, %s23
    %p249 = scmp.eq.s32.totalorder %s248, 0
    %s251 = sadd.s32 %s250, 1
    %s252 = scalar_select %p249, %s250, %s251
    %p255 = pneg %p249
    %p256 = scmp.eq.s32.totalorder %s16, 1
    %p257 = por %p255, %p256
    %p258 = scmp.ne.s32.totalorder %s250, %s253
    %p259 = scmp.eq.s32.totalorder %s16, 0
    %p260 = por %p258, %p259
    %p261 = scmp.ne.s32.totalorder %s250, %s253
    %p262 = scmp.eq.s32.totalorder %s21, 1
    %p263 = por %p261, %p262
    %p264 = scmp.ne.s32.totalorder %s253, %s254
    %p265 = scmp.eq.s32.totalorder %s21, 0
    %p266 = por %p264, %p265
    %p267 = scmp.ne.s32.totalorder %s253, %s254
    %p268 = scmp.eq.s32.totalorder %s22, 1
    %p269 = por %p267, %p268
    %p271 = scmp.ne.s32.totalorder %s254, %s270
    %p272 = scmp.eq.s32.totalorder %s22, 0
    %p273 = por %p271, %p272
    %s274 = ssub.s32 %s16, %s23
    %p275 = scmp.eq.s32.totalorder %s274, 0
    %s277 = sadd.s32 %s276, 1
    %s278 = scalar_select %p275, %s276, %s277
    %p281 = pneg %p275
    %p282 = scmp.eq.s32.totalorder %s16, 1
    %p283 = por %p281, %p282
    %p284 = scmp.ne.s32.totalorder %s276, %s279
    %p285 = scmp.eq.s32.totalorder %s16, 0
    %p286 = por %p284, %p285
    %p287 = scmp.ne.s32.totalorder %s276, %s279
    %p288 = scmp.eq.s32.totalorder %s21, 1
    %p289 = por %p287, %p288
    %p290 = scmp.ne.s32.totalorder %s279, %s280
    %p291 = scmp.eq.s32.totalorder %s21, 0
    %p292 = por %p290, %p291
    %p293 = scmp.ne.s32.totalorder %s279, %s280
    %p294 = scmp.eq.s32.totalorder %s22, 1
    %p295 = por %p293, %p294
    %p297 = scmp.ne.s32.totalorder %s280, %s296
    %p298 = scmp.eq.s32.totalorder %s22, 0
    %p299 = por %p297, %p298
    %p300 = scmp.le.s32.totalorder 1, %s16
    %p301 = scmp.lt.s32.totalorder %s16, 3
    %p302 = pnand %p300, %p301
    %p303 = pneg %p302
    // Predicated region
    $region9: #{accelerator_transformer_layers_forward.1} parent=5 // pred_check
      _
    $region10: #{accelerator_transformer_layers_forward.1} parent=5 // pred_check_branch
      %305 = sbr.rel (%p302) target = $region12
    $region11: #{accelerator_transformer_layers_forward.1} parent=5 // pred_region
      %s306 = ssub.s32 %s16, 1
      // Predicated region
      $region13: #{accelerator_transformer_layers_forward.1} parent=11 // pred_check
        %p307 = pneg %p37
      $region14: #{accelerator_transformer_layers_forward.1} parent=11 // pred_check_branch
        %309 = sbr.rel (%p307) target = $region16
      $region15: #{accelerator_transformer_layers_forward.1} parent=11 // pred_region
        _
      $region16: #{accelerator_transformer_layers_forward.1} parent=11 // pred_fallthru
        _
      // Predicated region
      $region17: #{accelerator_transformer_layers_forward.1} parent=11 // pred_check
        %p310 = pneg %p58
      $region18: #{accelerator_transformer_layers_forward.1} parent=11 // pred_check_branch
        %312 = sbr.rel (%p310) target = $region20
      $region19: #{accelerator_transformer_layers_forward.1} parent=11 // pred_region
        _
      $region20: #{accelerator_transformer_layers_forward.1} parent=11 // pred_fallthru
        _
    $region12: #{accelerator_transformer_layers_forward.1} parent=5 // pred_fallthru
      _
    %p313 = scmp.lt.s32.totalorder %s16, 2
    // Predicated region
    $region21: #{accelerator_transformer_layers_forward.1} parent=5 // pred_check
      %p314 = pneg %p313
    $region22: #{accelerator_transformer_layers_forward.1} parent=5 // pred_check_branch
      %316 = sbr.rel (%p314) target = $region24
    $region23: #{accelerator_transformer_layers_forward.1} parent=5 // pred_region
      // Predicated region
      $region25: #{accelerator_transformer_layers_forward.1} parent=23 // pred_check
        %p317 = pneg %p78
      $region26: #{accelerator_transformer_layers_forward.1} parent=23 // pred_check_branch
        %319 = sbr.rel (%p317) target = $region28
      $region27: #{accelerator_transformer_layers_forward.1} parent=23 // pred_region
        %p320 = scmp.lt.s32.totalorder %s16, 1
        %s321 = scalar_select %p320, %s16, 1
        %s322 = smul.addr %s321, 4
        %s323 = smul.addr %s322, 4
        %s324 = scalar_lea.vmem %s2, %s323
      $region28: #{accelerator_transformer_layers_forward.1} parent=23 // pred_fallthru
        _
      // Predicated region
      $region29: #{accelerator_transformer_layers_forward.1} parent=23 // pred_check
        %p325 = pneg %p104
      $region30: #{accelerator_transformer_layers_forward.1} parent=23 // pred_check_branch
        %327 = sbr.rel (%p325) target = $region32
      $region31: #{accelerator_transformer_layers_forward.1} parent=23 // pred_region
        %p328 = scmp.lt.s32.totalorder %s16, 1
        %s329 = scalar_select %p328, %s16, 1
        %s330 = smul.addr %s329, 4
        %s331 = smul.addr %s330, 4
        %s332 = scalar_lea.vmem %s3, %s331
      $region32: #{accelerator_transformer_layers_forward.1} parent=23 // pred_fallthru
        _
      // Predicated region
      $region33: #{accelerator_transformer_layers_forward.1} parent=23 // pred_check
        %p333 = pneg %p130
      $region34: #{accelerator_transformer_layers_forward.1} parent=23 // pred_check_branch
        %335 = sbr.rel (%p333) target = $region36
      $region35: #{accelerator_transformer_layers_forward.1} parent=23 // pred_region
        %p336 = scmp.lt.s32.totalorder %s16, 1
        %s337 = scalar_select %p336, %s16, 1
        %s338 = smul.addr %s337, 4
        %s339 = smul.addr %s338, 4
        %s340 = scalar_lea.vmem %s4, %s339
      $region36: #{accelerator_transformer_layers_forward.1} parent=23 // pred_fallthru
        _
      // Predicated region
      $region37: #{accelerator_transformer_layers_forward.1} parent=23 // pred_check
        %p341 = pneg %p156
      $region38: #{accelerator_transformer_layers_forward.1} parent=23 // pred_check_branch
        %343 = sbr.rel (%p341) target = $region40
      $region39: #{accelerator_transformer_layers_forward.1} parent=23 // pred_region
        %p344 = scmp.lt.s32.totalorder %s16, 1
        %s345 = scalar_select %p344, %s16, 1
        %s346 = smul.addr %s345, 4
        %s347 = smul.addr %s346, 4
        %s348 = scalar_lea.vmem %s5, %s347
      $region40: #{accelerator_transformer_layers_forward.1} parent=23 // pred_fallthru
        _
      // Predicated region
      $region41: #{accelerator_transformer_layers_forward.1} parent=23 // pred_check
        %p349 = pneg %p182
      $region42: #{accelerator_transformer_layers_forward.1} parent=23 // pred_check_branch
        %351 = sbr.rel (%p349) target = $region44
      $region43: #{accelerator_transformer_layers_forward.1} parent=23 // pred_region
        %p352 = scmp.lt.s32.totalorder %s16, 1
        %s353 = scalar_select %p352, %s16, 1
        %s354 = smul.addr %s353, 4
        %s355 = smul.addr %s354, 4
        %s356 = scalar_lea.vmem %s6, %s355
      $region44: #{accelerator_transformer_layers_forward.1} parent=23 // pred_fallthru
        _
      // Predicated region
      $region45: #{accelerator_transformer_layers_forward.1} parent=23 // pred_check
        %p357 = pneg %p208
      $region46: #{accelerator_transformer_layers_forward.1} parent=23 // pred_check_branch
        %359 = sbr.rel (%p357) target = $region48
      $region47: #{accelerator_transformer_layers_forward.1} parent=23 // pred_region
        %p360 = scmp.lt.s32.totalorder %s16, 1
        %s361 = scalar_select %p360, %s16, 1
        %s362 = smul.addr %s361, 8
        %s363 = smul.addr %s362, 4
        %s364 = scalar_lea.vmem %s7, %s363
      $region48: #{accelerator_transformer_layers_forward.1} parent=23 // pred_fallthru
        _
      // Predicated region
      $region49: #{accelerator_transformer_layers_forward.1} parent=23 // pred_check
        %p365 = pneg %p234
      $region50: #{accelerator_transformer_layers_forward.1} parent=23 // pred_check_branch
        %367 = sbr.rel (%p365) target = $region52
      $region51: #{accelerator_transformer_layers_forward.1} parent=23 // pred_region
        %p368 = scmp.lt.s32.totalorder %s16, 1
        %s369 = scalar_select %p368, %s16, 1
        %s370 = smul.addr %s369, 2
        %s371 = smul.addr %s370, 8
        %s372 = scalar_lea.vmem %s8, %s371
      $region52: #{accelerator_transformer_layers_forward.1} parent=23 // pred_fallthru
        _
      // Predicated region
      $region53: #{accelerator_transformer_layers_forward.1} parent=23 // pred_check
        %p373 = pneg %p260
      $region54: #{accelerator_transformer_layers_forward.1} parent=23 // pred_check_branch
        %375 = sbr.rel (%p373) target = $region56
      $region55: #{accelerator_transformer_layers_forward.1} parent=23 // pred_region
        %p376 = scmp.lt.s32.totalorder %s16, 1
        %s377 = scalar_select %p376, %s16, 1
        %s378 = scalar_lea.vmem %s9, %s377
      $region56: #{accelerator_transformer_layers_forward.1} parent=23 // pred_fallthru
        _
    $region24: #{accelerator_transformer_layers_forward.1} parent=5 // pred_fallthru
      _
    %p379 = scmp.le.s32.totalorder 1, %s16
    %p380 = scmp.lt.s32.totalorder %s16, 3
    %p381 = pnand %p379, %p380
    %p382 = pneg %p381
    // Predicated region
    $region57: #{accelerator_transformer_layers_forward.1} parent=5 // pred_check
      _
    $region58: #{accelerator_transformer_layers_forward.1} parent=5 // pred_check_branch
      %384 = sbr.rel (%p381) target = $region60
    $region59: #{accelerator_transformer_layers_forward.1} parent=5 // pred_region
      %s385 = ssub.s32 %s16, 1
      %p386 = pneg %p37
      %p387 = pneg %p34
      %p388 = pneg %p58
      %p389 = pneg %p55
      %p390 = scmp.lt.s32.totalorder %s21, 1
      %s391 = scalar_select %p390, %s21, 1
      %s392 = smul.addr %s391, 4
      %s393 = smul.addr %s392, 4
      %s394 = scalar_lea.vmem %s2, %s393
      %p395 = pneg %p84
      %p396 = pneg %p81
      %p397 = scmp.lt.s32.totalorder %s21, 1
      %s398 = scalar_select %p397, %s21, 1
      %s399 = smul.addr %s398, 4
      %s400 = smul.addr %s399, 4
      %s401 = scalar_lea.vmem %s3, %s400
      %p402 = pneg %p110
      %p403 = pneg %p107
      %p404 = scmp.lt.s32.totalorder %s21, 1
      %s405 = scalar_select %p404, %s21, 1
      %s406 = smul.addr %s405, 4
      %s407 = smul.addr %s406, 4
      %s408 = scalar_lea.vmem %s4, %s407
      %p409 = pneg %p136
      %p410 = pneg %p133
      %p411 = scmp.lt.s32.totalorder %s21, 1
      %s412 = scalar_select %p411, %s21, 1
      %s413 = smul.addr %s412, 4
      %s414 = smul.addr %s413, 4
      %s415 = scalar_lea.vmem %s5, %s414
      %p416 = pneg %p162
      %p417 = pneg %p159
      %p418 = scmp.lt.s32.totalorder %s21, 1
      %s419 = scalar_select %p418, %s21, 1
      %s420 = smul.addr %s419, 4
      %s421 = smul.addr %s420, 4
      %s422 = scalar_lea.vmem %s6, %s421
      %p423 = pneg %p188
      %p424 = pneg %p185
      %p425 = scmp.lt.s32.totalorder %s21, 1
      %s426 = scalar_select %p425, %s21, 1
      %s427 = smul.addr %s426, 8
      %s428 = smul.addr %s427, 4
      %s429 = scalar_lea.vmem %s7, %s428
      %p430 = pneg %p214
      %p431 = pneg %p211
      %p432 = scmp.lt.s32.totalorder %s21, 1
      %s433 = scalar_select %p432, %s21, 1
      %s434 = smul.addr %s433, 2
      %s435 = smul.addr %s434, 8
      %s436 = scalar_lea.vmem %s8, %s435
      %p437 = pneg %p240
      %p438 = pneg %p237
      %p439 = scmp.lt.s32.totalorder %s21, 1
      %s440 = scalar_select %p439, %s21, 1
      %s441 = scalar_lea.vmem %s9, %s440
      %p442 = pneg %p266
      %p443 = pneg %p263
      %p444 = pneg %p292
      %p445 = pneg %p289
      %p446 = scmp.lt.s32.totalorder %s21, 1
      %s447 = scalar_select %p446, %s21, 1
      %s448 = smul.addr %s447, 2
      %s449 = smul.addr %s448, 8
      %s450 = scalar_lea.vmem %s10, %s449
      %p451 = scmp.lt.s32.totalorder %s21, 1
      %s452 = scalar_select %p451, %s21, 1
      %s453 = smul.addr %s452, 4
      %s454 = smul.addr %s453, 4
      %s455 = scalar_lea.vmem %s2, %s454
      %p456 = scmp.lt.s32.totalorder %s21, 1
      %s457 = scalar_select %p456, %s21, 1
      %s458 = smul.addr %s457, 4
      %s459 = smul.addr %s458, 4
      %s460 = scalar_lea.vmem %s3, %s459
      %p461 = scmp.lt.s32.totalorder %s21, 1
      %s462 = scalar_select %p461, %s21, 1
      %s463 = smul.addr %s462, 4
      %s464 = smul.addr %s463, 4
      %s465 = scalar_lea.vmem %s4, %s464
      %p466 = scmp.lt.s32.totalorder %s21, 1
      %s467 = scalar_select %p466, %s21, 1
      %s468 = smul.addr %s467, 4
      %s469 = smul.addr %s468, 4
      %s470 = scalar_lea.vmem %s5, %s469
      %p471 = scmp.lt.s32.totalorder %s21, 1
      %s472 = scalar_select %p471, %s21, 1
      %s473 = smul.addr %s472, 4
      %s474 = smul.addr %s473, 4
      %s475 = scalar_lea.vmem %s6, %s474
      %p476 = scmp.lt.s32.totalorder %s21, 1
      %s477 = scalar_select %p476, %s21, 1
      %s478 = smul.addr %s477, 8
      %s479 = smul.addr %s478, 4
      %s480 = scalar_lea.vmem %s7, %s479
      %p481 = scmp.lt.s32.totalorder %s21, 1
      %s482 = scalar_select %p481, %s21, 1
      %s483 = smul.addr %s482, 2
      %s484 = smul.addr %s483, 8
      %s485 = scalar_lea.vmem %s8, %s484
      %p486 = scmp.lt.s32.totalorder %s21, 1
      %s487 = scalar_select %p486, %s21, 1
      %s488 = scalar_lea.vmem %s9, %s487
      %p489 = scmp.lt.s32.totalorder %s21, 1
      %s490 = scalar_select %p489, %s21, 1
      %s491 = smul.addr %s490, 2
      %s492 = smul.addr %s491, 8
      %s493 = scalar_lea.vmem %s10, %s492
      %p495 = scmp.eq.s32.totalorder %s21, 0
      // Predicated region
      $region61: #{accelerator_transformer_layers_forward.1} parent=59 // pred_check
        %p496 = pneg %p495
      $region62: #{accelerator_transformer_layers_forward.1} parent=59 // pred_check_branch
        %498 = sbr.rel (%p496) target = $region64
      $region63: #{accelerator_transformer_layers_forward.1} parent=59 // pred_region
        %v499 = vld [vmem:[%s0] sm:$0xff]
        %v500 = vld [vmem:[%s0 + $0x8] sm:$0xff]
        %vm501 = vcmask 261120
        %502 = vst.msk [vmem:[#allocation2] sm:$0xff] %vm501, %v499
        %503 = vst.msk [vmem:[#allocation2 + $0x8] sm:$0xff] %vm501, %v500
      $region64: #{accelerator_transformer_layers_forward.1} parent=59 // pred_fallthru
        _
      %v504 = vld [vmem:[#allocation2] sm:$0xff]
      %v505 = vld [vmem:[#allocation2 + $0x8] sm:$0xff]
      %v506 = vpack.c.bf16 %v505, %v504
      %v507 = vld [vmem:[%s485] sm:$0xff]
      %v508 = vld [vmem:[%s485 + $0x8] sm:$0x1]
      %v509 = vld [vmem:[%s488] sm:$0x1]
      %v510 = vld [vmem:[%s455] sm:$0xf]
      %v511 = vld [vmem:[%s455 + $0x4] sm:$0xf]
      %v512 = vld [vmem:[%s455 + $0x8] sm:$0xf]
      %v513 = vld [vmem:[%s455 + $0xc] sm:$0xf]
      %v514 = vlaneseq
      %v515 = vshrl.u32 %v514, 7
      %v516 = vsub.s32 0, %v515
      %v517 = vrot.slane %v507, %v516
      %v522 = vunpack.c.l.b16 %v510
      %v523 = vunpack.c.l.b16 %v511
      %v524 = vunpack.c.l.b16 %v512
      %v525 = vunpack.c.l.b16 %v513
      %v526 = vpack.c.b16 %v523, %v522
      %v527 = vpack.c.b16 %v525, %v524
      %vm530 = vcmask 261120
      %v532 = vsel %vm530, %v506, 0
      %534 = vmatprep.subr.bf16.mxu0 0
      %535 = vmatpush1.bf16.msra.mxu0 %v526
      %536 = vmatprep.subr.bf16.mxu0 0
      %537 = vmatpush1.bf16.msra.mxu0 %v527
      %538 = vmatprep.subr.bf16.mxu0 0
      %539 = vmatpush1.bf16.msra.mxu0 0
      %540 = vmatprep.subr.bf16.mxu0 0
      %541 = vmatpush1.bf16.msra.mxu0 0
      %542 = vmatprep.subr.bf16.mxu0 0
      %543 = vmatpush1.bf16.msra.mxu0 0
      %544 = vmatprep.subr.bf16.mxu0 0
      %545 = vmatpush1.bf16.msra.mxu0 0
      %546 = vmatprep.subr.bf16.mxu0 0
      %547 = vmatpush1.bf16.msra.mxu0 0
      %548 = vmatprep.subr.bf16.mxu0 0
      %549 = vmatpush1.bf16.msra.mxu0 0
      %550 = vmatprep.subr.bf16.mxu0 0
      %551 = vmatpush1.bf16.msra.mxu0 0
      %552 = vmatprep.subr.bf16.mxu0 0
      %553 = vmatpush1.bf16.msra.mxu0 0
      %554 = vmatprep.subr.bf16.mxu0 0
      %555 = vmatpush1.bf16.msra.mxu0 0
      %556 = vmatprep.subr.bf16.mxu0 0
      %557 = vmatpush1.bf16.msra.mxu0 0
      %558 = vmatprep.subr.bf16.mxu0 0
      %559 = vmatpush1.bf16.msra.mxu0 0
      %560 = vmatprep.subr.bf16.mxu0 0
      %561 = vmatpush1.bf16.msra.mxu0 0
      %562 = vmatprep.subr.bf16.mxu0 0
      %563 = vmatpush1.bf16.msra.mxu0 0
      %564 = vmatprep.subr.bf16.mxu0 0
      %565 = vmatpush1.bf16.msra.mxu0 0
      %566 = vmatprep.mubr.bf16.mxu0 0
      %567 = vmatmul.mubr.bf16.gmra.mrb[0].mxu0 %v532
      %v568 = vpop.f32.mrb[0].mxu0
      %v569 = vadd.f32 %v517, %v568
      %v570 = vpop.f32.mrb[0].mxu0
      %v571 = vpop.f32.mrb[0].mxu0
      %v572 = vadd.f32 %v517, %v571
      %v573 = vpop.f32.mrb[0].mxu0
      %574 = vdwg.mxu0
      %v575 = vld [vmem:[%s460] sm:$0xf]
      %v576 = vld [vmem:[%s460 + $0x4] sm:$0xf]
      %v577 = vld [vmem:[%s460 + $0x8] sm:$0xf]
      %v578 = vld [vmem:[%s460 + $0xc] sm:$0xf]
      %v579 = vlaneseq
      %v580 = vshrl.u32 %v579, 7
      %v581 = vsub.s32 1, %v580
      %v582 = vrot.slane %v507, %v581
      %v587 = vunpack.c.l.b16 %v575
      %v588 = vunpack.c.l.b16 %v576
      %v589 = vunpack.c.l.b16 %v577
      %v590 = vunpack.c.l.b16 %v578
      %v591 = vpack.c.b16 %v588, %v587
      %v592 = vpack.c.b16 %v590, %v589
      %595 = vmatprep.subr.bf16.mxu0 0
      %596 = vmatpush1.bf16.msra.mxu0 %v591
      %597 = vmatprep.subr.bf16.mxu0 0
      %598 = vmatpush1.bf16.msra.mxu0 %v592
      %599 = vmatprep.subr.bf16.mxu0 0
      %600 = vmatpush1.bf16.msra.mxu0 0
      %601 = vmatprep.subr.bf16.mxu0 0
      %602 = vmatpush1.bf16.msra.mxu0 0
      %603 = vmatprep.subr.bf16.mxu0 0
      %604 = vmatpush1.bf16.msra.mxu0 0
      %605 = vmatprep.subr.bf16.mxu0 0
      %606 = vmatpush1.bf16.msra.mxu0 0
      %607 = vmatprep.subr.bf16.mxu0 0
      %608 = vmatpush1.bf16.msra.mxu0 0
      %609 = vmatprep.subr.bf16.mxu0 0
      %610 = vmatpush1.bf16.msra.mxu0 0
      %611 = vmatprep.subr.bf16.mxu0 0
      %612 = vmatpush1.bf16.msra.mxu0 0
      %613 = vmatprep.subr.bf16.mxu0 0
      %614 = vmatpush1.bf16.msra.mxu0 0
      %615 = vmatprep.subr.bf16.mxu0 0
      %616 = vmatpush1.bf16.msra.mxu0 0
      %617 = vmatprep.subr.bf16.mxu0 0
      %618 = vmatpush1.bf16.msra.mxu0 0
      %619 = vmatprep.subr.bf16.mxu0 0
      %620 = vmatpush1.bf16.msra.mxu0 0
      %621 = vmatprep.subr.bf16.mxu0 0
      %622 = vmatpush1.bf16.msra.mxu0 0
      %623 = vmatprep.subr.bf16.mxu0 0
      %624 = vmatpush1.bf16.msra.mxu0 0
      %625 = vmatprep.subr.bf16.mxu0 0
      %626 = vmatpush1.bf16.msra.mxu0 0
      %627 = vmatprep.mubr.bf16.mxu0 0
      %628 = vmatmul.mubr.bf16.gmra.mrb[0].mxu0 %v532
      %v629 = vpop.f32.mrb[0].mxu0
      %v630 = vadd.f32 %v582, %v629
      %v631 = vpop.f32.mrb[0].mxu0
      %v632 = vpop.f32.mrb[0].mxu0
      %v633 = vadd.f32 %v582, %v632
      %v634 = vpop.f32.mrb[0].mxu0
      %635 = vdwg.mxu0
      %v636 = vld [vmem:[%s465] sm:$0xf]
      %v637 = vld [vmem:[%s465 + $0x4] sm:$0xf]
      %v638 = vld [vmem:[%s465 + $0x8] sm:$0xf]
      %v639 = vld [vmem:[%s465 + $0xc] sm:$0xf]
      %v640 = vlaneseq
      %v641 = vshrl.u32 %v640, 7
      %v642 = vsub.s32 2, %v641
      %v643 = vrot.slane %v507, %v642
      %v648 = vunpack.c.l.b16 %v636
      %v649 = vunpack.c.l.b16 %v637
      %v650 = vunpack.c.l.b16 %v638
      %v651 = vunpack.c.l.b16 %v639
      %v652 = vpack.c.b16 %v649, %v648
      %v653 = vpack.c.b16 %v651, %v650
      %656 = vmatprep.subr.bf16.mxu0 0
      %657 = vmatpush1.bf16.msra.mxu0 %v652
      %658 = vmatprep.subr.bf16.mxu0 0
      %659 = vmatpush1.bf16.msra.mxu0 %v653
      %660 = vmatprep.subr.bf16.mxu0 0
      %661 = vmatpush1.bf16.msra.mxu0 0
      %662 = vmatprep.subr.bf16.mxu0 0
      %663 = vmatpush1.bf16.msra.mxu0 0
      %664 = vmatprep.subr.bf16.mxu0 0
      %665 = vmatpush1.bf16.msra.mxu0 0
      %666 = vmatprep.subr.bf16.mxu0 0
      %667 = vmatpush1.bf16.msra.mxu0 0
      %668 = vmatprep.subr.bf16.mxu0 0
      %669 = vmatpush1.bf16.msra.mxu0 0
      %670 = vmatprep.subr.bf16.mxu0 0
      %671 = vmatpush1.bf16.msra.mxu0 0
      %672 = vmatprep.subr.bf16.mxu0 0
      %673 = vmatpush1.bf16.msra.mxu0 0
      %674 = vmatprep.subr.bf16.mxu0 0
      %675 = vmatpush1.bf16.msra.mxu0 0
      %676 = vmatprep.subr.bf16.mxu0 0
      %677 = vmatpush1.bf16.msra.mxu0 0
      %678 = vmatprep.subr.bf16.mxu0 0
      %679 = vmatpush1.bf16.msra.mxu0 0
      %680 = vmatprep.subr.bf16.mxu0 0
      %681 = vmatpush1.bf16.msra.mxu0 0
      %682 = vmatprep.subr.bf16.mxu0 0
      %683 = vmatpush1.bf16.msra.mxu0 0
      %684 = vmatprep.subr.bf16.mxu0 0
      %685 = vmatpush1.bf16.msra.mxu0 0
      %686 = vmatprep.subr.bf16.mxu0 0
      %687 = vmatpush1.bf16.msra.mxu0 0
      %688 = vmatprep.mubr.bf16.mxu0 0
      %689 = vmatmul.mubr.bf16.gmra.mrb[0].mxu0 %v532
      %v690 = vpop.f32.mrb[0].mxu0
      %v691 = vadd.f32 %v643, %v690
      %v692 = vpop.f32.mrb[0].mxu0
      %v693 = vpop.f32.mrb[0].mxu0
      %v694 = vadd.f32 %v643, %v693
      %v695 = vpop.f32.mrb[0].mxu0
      %696 = vdwg.mxu0
      %v697 = vld [vmem:[%s1] sm:$0x1]
      %v698 = vpack.c.bf16 %v569, %v569
      %v699 = vpack.c.bf16 %v630, %v630
      %v700 = vpack.c.bf16 %v691, %v691
      %v702 = vlaneseq
      %v703 = vshrl.u32 %v702, 7
      %v704 = vsub.s32 0, %v703
      %v705 = vrot.slane %v697, %v704
      %vm707 = vcmask 64512
      %v709 = vsel %vm707, %v698, 0
      %v712 = vsel %vm707, %v699, 0
      %714 = vmatprep.subr.bf16.mxu0 0
      %715 = vmatpush1.bf16.xpose.msra.mxu0 %v712
      %716 = vmatprep.subr.bf16.mxu0 0
      %717 = vmatpush1.bf16.xpose.msra.mxu0 0
      %718 = vmatprep.subr.bf16.mxu0 0
      %719 = vmatpush1.bf16.xpose.msra.mxu0 0
      %720 = vmatprep.subr.bf16.mxu0 0
      %721 = vmatpush1.bf16.xpose.msra.mxu0 0
      %722 = vmatprep.subr.bf16.mxu0 0
      %723 = vmatpush1.bf16.xpose.msra.mxu0 0
      %724 = vmatprep.subr.bf16.mxu0 0
      %725 = vmatpush1.bf16.xpose.msra.mxu0 0
      %726 = vmatprep.subr.bf16.mxu0 0
      %727 = vmatpush1.bf16.xpose.msra.mxu0 0
      %728 = vmatprep.subr.bf16.mxu0 0
      %729 = vmatpush1.bf16.xpose.msra.mxu0 0
      %730 = vmatprep.subr.bf16.mxu0 0
      %731 = vmatpush1.bf16.xpose.msra.mxu0 0
      %732 = vmatprep.subr.bf16.mxu0 0
      %733 = vmatpush1.bf16.xpose.msra.mxu0 0
      %734 = vmatprep.subr.bf16.mxu0 0
      %735 = vmatpush1.bf16.xpose.msra.mxu0 0
      %736 = vmatprep.subr.bf16.mxu0 0
      %737 = vmatpush1.bf16.xpose.msra.mxu0 0
      %738 = vmatprep.subr.bf16.mxu0 0
      %739 = vmatpush1.bf16.xpose.msra.mxu0 0
      %740 = vmatprep.subr.bf16.mxu0 0
      %741 = vmatpush1.bf16.xpose.msra.mxu0 0
      %742 = vmatprep.subr.bf16.mxu0 0
      %743 = vmatpush1.bf16.xpose.msra.mxu0 0
      %744 = vmatprep.subr.bf16.mxu0 0
      %745 = vmatpush1.bf16.xpose.msra.mxu0 0
      %746 = vmatprep.mubr.bf16.mxu0 0
      %747 = vmatmul.mubr.bf16.gmra.mrb[0].mxu0 %v709
      %v748 = vpop.f32.mrb[0].mxu0
      %v749 = vadd.f32 %v705, %v748
      %v750 = vpop.f32.mrb[0].mxu0
      %v751 = vpop.f32.mrb[0].mxu0
      %v752 = vpop.f32.mrb[0].mxu0
      %753 = vdwg.mxu0
      %v754 = vsel %vm707, %v749, -inf
      %755 = vmax.xlane.f32.xlu0 %v754
      %v756 = vpop.xlane.xlu0 %755
      %v757 = vsub.f32 %v749, %v756
      %v758 = vmul.f32 %v757, 1.442695
      %v759 = vpow.pop %v758
      %v760 = vsel %vm707, %v759, 0.0
      %761 = vadd.xlane.f32.xlu0 %v760
      %v762 = vpop.xlane.xlu0 %761
      %v763 = vrcp.pop %v762
      %v764 = vmul.f32 %v759, %v763
      %v765 = vpack.c.bf16 %v764, %v764
      %v767 = vsel %vm707, %v765, 0
      %vm769 = vcmask 1043456
      %v771 = vsel %vm769, %v700, 0
      %773 = vmatprep.subr.bf16.mxu0 0
      %774 = vmatpush1.bf16.msra.mxu0 %v771
      %775 = vmatprep.subr.bf16.mxu0 0
      %776 = vmatpush1.bf16.msra.mxu0 0
      %777 = vmatprep.subr.bf16.mxu0 0
      %778 = vmatpush1.bf16.msra.mxu0 0
      %779 = vmatprep.subr.bf16.mxu0 0
      %780 = vmatpush1.bf16.msra.mxu0 0
      %781 = vmatprep.subr.bf16.mxu0 0
      %782 = vmatpush1.bf16.msra.mxu0 0
      %783 = vmatprep.subr.bf16.mxu0 0
      %784 = vmatpush1.bf16.msra.mxu0 0
      %785 = vmatprep.subr.bf16.mxu0 0
      %786 = vmatpush1.bf16.msra.mxu0 0
      %787 = vmatprep.subr.bf16.mxu0 0
      %788 = vmatpush1.bf16.msra.mxu0 0
      %789 = vmatprep.subr.bf16.mxu0 0
      %790 = vmatpush1.bf16.msra.mxu0 0
      %791 = vmatprep.subr.bf16.mxu0 0
      %792 = vmatpush1.bf16.msra.mxu0 0
      %793 = vmatprep.subr.bf16.mxu0 0
      %794 = vmatpush1.bf16.msra.mxu0 0
      %795 = vmatprep.subr.bf16.mxu0 0
      %796 = vmatpush1.bf16.msra.mxu0 0
      %797 = vmatprep.subr.bf16.mxu0 0
      %798 = vmatpush1.bf16.msra.mxu0 0
      %799 = vmatprep.subr.bf16.mxu0 0
      %800 = vmatpush1.bf16.msra.mxu0 0
      %801 = vmatprep.subr.bf16.mxu0 0
      %802 = vmatpush1.bf16.msra.mxu0 0
      %803 = vmatprep.subr.bf16.mxu0 0
      %804 = vmatpush1.bf16.msra.mxu0 0
      %805 = vmatprep.mubr.bf16.mxu0 0
      %806 = vmatmul.mubr.bf16.gmra.mrb[0].mxu0 %v767
      %v807 = vpop.f32.mrb[0].mxu0
      %v808 = vadd.f32 0.0, %v807
      %v809 = vpop.f32.mrb[0].mxu0
      %v810 = vpop.f32.mrb[0].mxu0
      %v811 = vpop.f32.mrb[0].mxu0
      %812 = vdwg.mxu0
      %v813 = vpack.c.bf16 %v808, %v808
      %v814 = vld [vmem:[%s470] sm:$0xf]
      %816 = vrot.lane.b32.xlu0 %v698, 120
      %v817 = vpop.permute.xlu0 %816
      %819 = vrot.lane.b32.xlu0 %v699, 120
      %v820 = vpop.permute.xlu0 %819
      %v822 = vsel %vm707, %v817, 0
      %v825 = vsel %vm707, %v820, 0
      %827 = vmatprep.subr.bf16.mxu0 0
      %828 = vmatpush1.bf16.xpose.msra.mxu0 %v825
      %829 = vmatprep.subr.bf16.mxu0 0
      %830 = vmatpush1.bf16.xpose.msra.mxu0 0
      %831 = vmatprep.subr.bf16.mxu0 0
      %832 = vmatpush1.bf16.xpose.msra.mxu0 0
      %833 = vmatprep.subr.bf16.mxu0 0
      %834 = vmatpush1.bf16.xpose.msra.mxu0 0
      %835 = vmatprep.subr.bf16.mxu0 0
      %836 = vmatpush1.bf16.xpose.msra.mxu0 0
      %837 = vmatprep.subr.bf16.mxu0 0
      %838 = vmatpush1.bf16.xpose.msra.mxu0 0
      %839 = vmatprep.subr.bf16.mxu0 0
      %840 = vmatpush1.bf16.xpose.msra.mxu0 0
      %841 = vmatprep.subr.bf16.mxu0 0
      %842 = vmatpush1.bf16.xpose.msra.mxu0 0
      %843 = vmatprep.subr.bf16.mxu0 0
      %844 = vmatpush1.bf16.xpose.msra.mxu0 0
      %845 = vmatprep.subr.bf16.mxu0 0
      %846 = vmatpush1.bf16.xpose.msra.mxu0 0
      %847 = vmatprep.subr.bf16.mxu0 0
      %848 = vmatpush1.bf16.xpose.msra.mxu0 0
      %849 = vmatprep.subr.bf16.mxu0 0
      %850 = vmatpush1.bf16.xpose.msra.mxu0 0
      %851 = vmatprep.subr.bf16.mxu0 0
      %852 = vmatpush1.bf16.xpose.msra.mxu0 0
      %853 = vmatprep.subr.bf16.mxu0 0
      %854 = vmatpush1.bf16.xpose.msra.mxu0 0
      %855 = vmatprep.subr.bf16.mxu0 0
      %856 = vmatpush1.bf16.xpose.msra.mxu0 0
      %857 = vmatprep.subr.bf16.mxu0 0
      %858 = vmatpush1.bf16.xpose.msra.mxu0 0
      %859 = vmatprep.mubr.bf16.mxu0 0
      %860 = vmatmul.mubr.bf16.gmra.mrb[0].mxu0 %v822
      %v861 = vpop.f32.mrb[0].mxu0
      %v862 = vadd.f32 %v705, %v861
      %v863 = vpop.f32.mrb[0].mxu0
      %v864 = vpop.f32.mrb[0].mxu0
      %v865 = vpop.f32.mrb[0].mxu0
      %866 = vdwg.mxu0
      %v867 = vsel %vm707, %v862, -inf
      %868 = vmax.xlane.f32.xlu0 %v867
      %v869 = vpop.xlane.xlu0 %868
      %v870 = vsub.f32 %v862, %v869
      %v871 = vmul.f32 %v870, 1.442695
      %v872 = vpow.pop %v871
      %v873 = vsel %vm707, %v872, 0.0
      %874 = vadd.xlane.f32.xlu0 %v873
      %v875 = vpop.xlane.xlu0 %874
      %v876 = vrcp.pop %v875
      %v877 = vmul.f32 %v872, %v876
      %v878 = vpack.c.bf16 %v877, %v877
      %880 = vrot.lane.b32.xlu0 %v700, 120
      %v881 = vpop.permute.xlu0 %880
      %v883 = vsel %vm707, %v878, 0
      %v886 = vsel %vm769, %v881, 0
      %888 = vmatprep.subr.bf16.mxu0 0
      %889 = vmatpush1.bf16.msra.mxu0 %v886
      %890 = vmatprep.subr.bf16.mxu0 0
      %891 = vmatpush1.bf16.msra.mxu0 0
      %892 = vmatprep.subr.bf16.mxu0 0
      %893 = vmatpush1.bf16.msra.mxu0 0
      %894 = vmatprep.subr.bf16.mxu0 0
      %895 = vmatpush1.bf16.msra.mxu0 0
      %896 = vmatprep.subr.bf16.mxu0 0
      %897 = vmatpush1.bf16.msra.mxu0 0
      %898 = vmatprep.subr.bf16.mxu0 0
      %899 = vmatpush1.bf16.msra.mxu0 0
      %900 = vmatprep.subr.bf16.mxu0 0
      %901 = vmatpush1.bf16.msra.mxu0 0
      %902 = vmatprep.subr.bf16.mxu0 0
      %903 = vmatpush1.bf16.msra.mxu0 0
      %904 = vmatprep.subr.bf16.mxu0 0
      %905 = vmatpush1.bf16.msra.mxu0 0
      %906 = vmatprep.subr.bf16.mxu0 0
      %907 = vmatpush1.bf16.msra.mxu0 0
      %908 = vmatprep.subr.bf16.mxu0 0
      %909 = vmatpush1.bf16.msra.mxu0 0
      %910 = vmatprep.subr.bf16.mxu0 0
      %911 = vmatpush1.bf16.msra.mxu0 0
      %912 = vmatprep.subr.bf16.mxu0 0
      %913 = vmatpush1.bf16.msra.mxu0 0
      %914 = vmatprep.subr.bf16.mxu0 0
      %915 = vmatpush1.bf16.msra.mxu0 0
      %916 = vmatprep.subr.bf16.mxu0 0
      %917 = vmatpush1.bf16.msra.mxu0 0
      %918 = vmatprep.subr.bf16.mxu0 0
      %919 = vmatpush1.bf16.msra.mxu0 0
      %920 = vmatprep.mubr.bf16.mxu0 0
      %921 = vmatmul.mubr.bf16.gmra.mrb[0].mxu0 %v883
      %v922 = vpop.f32.mrb[0].mxu0
      %v923 = vadd.f32 0.0, %v922
      %v924 = vpop.f32.mrb[0].mxu0
      %v925 = vpop.f32.mrb[0].mxu0
      %v926 = vpop.f32.mrb[0].mxu0
      %927 = vdwg.mxu0
      %v928 = vpack.c.bf16 %v923, %v923
      %s929 = scalar_lea.vmem %s470, 4
      %v930 = vld [vmem:[%s929] sm:$0xf]
      %v932 = vsel %vm707, %v928, 0
      %v935 = vsel %vm769, %v930, 0
      %937 = vmatprep.subr.bf16.mxu0 0
      %938 = vmatpush1.bf16.msra.mxu0 %v935
      %939 = vmatprep.subr.bf16.mxu0 0
      %940 = vmatpush1.bf16.msra.mxu0 0
      %941 = vmatprep.subr.bf16.mxu0 0
      %942 = vmatpush1.bf16.msra.mxu0 0
      %943 = vmatprep.subr.bf16.mxu0 0
      %944 = vmatpush1.bf16.msra.mxu0 0
      %945 = vmatprep.subr.bf16.mxu0 0
      %946 = vmatpush1.bf16.msra.mxu0 0
      %947 = vmatprep.subr.bf16.mxu0 0
      %948 = vmatpush1.bf16.msra.mxu0 0
      %949 = vmatprep.subr.bf16.mxu0 0
      %950 = vmatpush1.bf16.msra.mxu0 0
      %951 = vmatprep.subr.bf16.mxu0 0
      %952 = vmatpush1.bf16.msra.mxu0 0
      %953 = vmatprep.subr.bf16.mxu0 0
      %954 = vmatpush1.bf16.msra.mxu0 0
      %955 = vmatprep.subr.bf16.mxu0 0
      %956 = vmatpush1.bf16.msra.mxu0 0
      %957 = vmatprep.subr.bf16.mxu0 0
      %958 = vmatpush1.bf16.msra.mxu0 0
      %959 = vmatprep.subr.bf16.mxu0 0
      %960 = vmatpush1.bf16.msra.mxu0 0
      %961 = vmatprep.subr.bf16.mxu0 0
      %962 = vmatpush1.bf16.msra.mxu0 0
      %963 = vmatprep.subr.bf16.mxu0 0
      %964 = vmatpush1.bf16.msra.mxu0 0
      %965 = vmatprep.subr.bf16.mxu0 0
      %966 = vmatpush1.bf16.msra.mxu0 0
      %967 = vmatprep.subr.bf16.mxu0 0
      %968 = vmatpush1.bf16.msra.mxu0 0
      %969 = vmatprep.mubr.bf16.mxu0 0
      %970 = vmatmul.mubr.bf16.gmra.mrb[0].mxu0 %v932
      %v971 = vpop.f32.mrb[0].mxu0
      %v972 = vadd.f32 0.0, %v971
      %v973 = vpop.f32.mrb[0].mxu0
      %v974 = vpop.f32.mrb[0].mxu0
      %v975 = vpop.f32.mrb[0].mxu0
      %976 = vdwg.mxu0
      %v978 = vsel %vm707, %v813, 0
      %v981 = vsel %vm769, %v814, 0
      %983 = vmatprep.subr.bf16.mxu0 0
      %984 = vmatpush1.bf16.msra.mxu0 %v981
      %985 = vmatprep.subr.bf16.mxu0 0
      %986 = vmatpush1.bf16.msra.mxu0 0
      %987 = vmatprep.subr.bf16.mxu0 0
      %988 = vmatpush1.bf16.msra.mxu0 0
      %989 = vmatprep.subr.bf16.mxu0 0
      %990 = vmatpush1.bf16.msra.mxu0 0
      %991 = vmatprep.subr.bf16.mxu0 0
      %992 = vmatpush1.bf16.msra.mxu0 0
      %993 = vmatprep.subr.bf16.mxu0 0
      %994 = vmatpush1.bf16.msra.mxu0 0
      %995 = vmatprep.subr.bf16.mxu0 0
      %996 = vmatpush1.bf16.msra.mxu0 0
      %997 = vmatprep.subr.bf16.mxu0 0
      %998 = vmatpush1.bf16.msra.mxu0 0
      %999 = vmatprep.subr.bf16.mxu0 0
      %1000 = vmatpush1.bf16.msra.mxu0 0
      %1001 = vmatprep.subr.bf16.mxu0 0
      %1002 = vmatpush1.bf16.msra.mxu0 0
      %1003 = vmatprep.subr.bf16.mxu0 0
      %1004 = vmatpush1.bf16.msra.mxu0 0
      %1005 = vmatprep.subr.bf16.mxu0 0
      %1006 = vmatpush1.bf16.msra.mxu0 0
      %1007 = vmatprep.subr.bf16.mxu0 0
      %1008 = vmatpush1.bf16.msra.mxu0 0
      %1009 = vmatprep.subr.bf16.mxu0 0
      %1010 = vmatpush1.bf16.msra.mxu0 0
      %1011 = vmatprep.subr.bf16.mxu0 0
      %1012 = vmatpush1.bf16.msra.mxu0 0
      %1013 = vmatprep.subr.bf16.mxu0 0
      %1014 = vmatpush1.bf16.msra.mxu0 0
      %1015 = vmatprep.mubr.bf16.mxu0 0
      %1016 = vmatmul.mubr.bf16.gmra.mrb[0].mxu0 %v978
      %v1017 = vpop.f32.mrb[0].mxu0
      %v1018 = vadd.f32 %v972, %v1017
      %v1019 = vpop.f32.mrb[0].mxu0
      %v1020 = vpop.f32.mrb[0].mxu0
      %v1021 = vpop.f32.mrb[0].mxu0
      %1022 = vdwg.mxu0
      %1023 = vrot.lane.b32.xlu0 %v698, 112
      %v1024 = vpop.permute.xlu0 %1023
      %1025 = vrot.lane.b32.xlu0 %v699, 112
      %v1026 = vpop.permute.xlu0 %1025
      %v1028 = vsel %vm707, %v1024, 0
      %v1031 = vsel %vm707, %v1026, 0
      %1033 = vmatprep.subr.bf16.mxu0 0
      %1034 = vmatpush1.bf16.xpose.msra.mxu0 %v1031
      %1035 = vmatprep.subr.bf16.mxu0 0
      %1036 = vmatpush1.bf16.xpose.msra.mxu0 0
      %1037 = vmatprep.subr.bf16.mxu0 0
      %1038 = vmatpush1.bf16.xpose.msra.mxu0 0
      %1039 = vmatprep.subr.bf16.mxu0 0
      %1040 = vmatpush1.bf16.xpose.msra.mxu0 0
      %1041 = vmatprep.subr.bf16.mxu0 0
      %1042 = vmatpush1.bf16.xpose.msra.mxu0 0
      %1043 = vmatprep.subr.bf16.mxu0 0
      %1044 = vmatpush1.bf16.xpose.msra.mxu0 0
      %1045 = vmatprep.subr.bf16.mxu0 0
      %1046 = vmatpush1.bf16.xpose.msra.mxu0 0
      %1047 = vmatprep.subr.bf16.mxu0 0
      %1048 = vmatpush1.bf16.xpose.msra.mxu0 0
      %1049 = vmatprep.subr.bf16.mxu0 0
      %1050 = vmatpush1.bf16.xpose.msra.mxu0 0
      %1051 = vmatprep.subr.bf16.mxu0 0
      %1052 = vmatpush1.bf16.xpose.msra.mxu0 0
      %1053 = vmatprep.subr.bf16.mxu0 0
      %1054 = vmatpush1.bf16.xpose.msra.mxu0 0
      %1055 = vmatprep.subr.bf16.mxu0 0
      %1056 = vmatpush1.bf16.xpose.msra.mxu0 0
      %1057 = vmatprep.subr.bf16.mxu0 0
      %1058 = vmatpush1.bf16.xpose.msra.mxu0 0
      %1059 = vmatprep.subr.bf16.mxu0 0
      %1060 = vmatpush1.bf16.xpose.msra.mxu0 0
      %1061 = vmatprep.subr.bf16.mxu0 0
      %1062 = vmatpush1.bf16.xpose.msra.mxu0 0
      %1063 = vmatprep.subr.bf16.mxu0 0
      %1064 = vmatpush1.bf16.xpose.msra.mxu0 0
      %1065 = vmatprep.mubr.bf16.mxu0 0
      %1066 = vmatmul.mubr.bf16.gmra.mrb[0].mxu0 %v1028
      %v1067 = vpop.f32.mrb[0].mxu0
      %v1068 = vadd.f32 %v705, %v1067
      %v1069 = vpop.f32.mrb[0].mxu0
      %v1070 = vpop.f32.mrb[0].mxu0
      %v1071 = vpop.f32.mrb[0].mxu0
      %1072 = vdwg.mxu0
      %v1073 = vsel %vm707, %v1068, -inf
      %1074 = vmax.xlane.f32.xlu0 %v1073
      %v1075 = vpop.xlane.xlu0 %1074
      %v1076 = vsub.f32 %v1068, %v1075
      %v1077 = vmul.f32 %v1076, 1.442695
      %v1078 = vpow.pop %v1077
      %v1079 = vsel %vm707, %v1078, 0.0
      %1080 = vadd.xlane.f32.xlu0 %v1079
      %v1081 = vpop.xlane.xlu0 %1080
      %v1082 = vrcp.pop %v1081
      %v1083 = vmul.f32 %v1078, %v1082
      %v1084 = vpack.c.bf16 %v1083, %v1083
      %1085 = vrot.lane.b32.xlu0 %v700, 112
      %v1086 = vpop.permute.xlu0 %1085
      %v1088 = vsel %vm707, %v1084, 0
      %v1091 = vsel %vm769, %v1086, 0
      %1093 = vmatprep.subr.bf16.mxu0 0
      %1094 = vmatpush1.bf16.msra.mxu0 %v1091
      %1095 = vmatprep.subr.bf16.mxu0 0
      %1096 = vmatpush1.bf16.msra.mxu0 0
      %1097 = vmatprep.subr.bf16.mxu0 0
      %1098 = vmatpush1.bf16.msra.mxu0 0
      %1099 = vmatprep.subr.bf16.mxu0 0
      %1100 = vmatpush1.bf16.msra.mxu0 0
      %1101 = vmatprep.subr.bf16.mxu0 0
      %1102 = vmatpush1.bf16.msra.mxu0 0
      %1103 = vmatprep.subr.bf16.mxu0 0
      %1104 = vmatpush1.bf16.msra.mxu0 0
      %1105 = vmatprep.subr.bf16.mxu0 0
      %1106 = vmatpush1.bf16.msra.mxu0 0
      %1107 = vmatprep.subr.bf16.mxu0 0
      %1108 = vmatpush1.bf16.msra.mxu0 0
      %1109 = vmatprep.subr.bf16.mxu0 0
      %1110 = vmatpush1.bf16.msra.mxu0 0
      %1111 = vmatprep.subr.bf16.mxu0 0
      %1112 = vmatpush1.bf16.msra.mxu0 0
      %1113 = vmatprep.subr.bf16.mxu0 0
      %1114 = vmatpush1.bf16.msra.mxu0 0
      %1115 = vmatprep.subr.bf16.mxu0 0
      %1116 = vmatpush1.bf16.msra.mxu0 0
      %1117 = vmatprep.subr.bf16.mxu0 0
      %1118 = vmatpush1.bf16.msra.mxu0 0
      %1119 = vmatprep.subr.bf16.mxu0 0
      %1120 = vmatpush1.bf16.msra.mxu0 0
      %1121 = vmatprep.subr.bf16.mxu0 0
      %1122 = vmatpush1.bf16.msra.mxu0 0
      %1123 = vmatprep.subr.bf16.mxu0 0
      %1124 = vmatpush1.bf16.msra.mxu0 0
      %1125 = vmatprep.mubr.bf16.mxu0 0
      %1126 = vmatmul.mubr.bf16.gmra.mrb[0].mxu0 %v1088
      %v1127 = vpop.f32.mrb[0].mxu0
      %v1128 = vadd.f32 0.0, %v1127
      %v1129 = vpop.f32.mrb[0].mxu0
      %v1130 = vpop.f32.mrb[0].mxu0
      %v1131 = vpop.f32.mrb[0].mxu0
      %1132 = vdwg.mxu0
      %v1133 = vpack.c.bf16 %v1128, %v1128
      %s1134 = scalar_lea.vmem %s470, 8
      %v1135 = vld [vmem:[%s1134] sm:$0xf]
      %v1137 = vsel %vm707, %v1133, 0
      %v1140 = vsel %vm769, %v1135, 0
      %1142 = vmatprep.subr.bf16.mxu0 0
      %1143 = vmatpush1.bf16.msra.mxu0 %v1140
      %1144 = vmatprep.subr.bf16.mxu0 0
      %1145 = vmatpush1.bf16.msra.mxu0 0
      %1146 = vmatprep.subr.bf16.mxu0 0
      %1147 = vmatpush1.bf16.msra.mxu0 0
      %1148 = vmatprep.subr.bf16.mxu0 0
      %1149 = vmatpush1.bf16.msra.mxu0 0
      %1150 = vmatprep.subr.bf16.mxu0 0
      %1151 = vmatpush1.bf16.msra.mxu0 0
      %1152 = vmatprep.subr.bf16.mxu0 0
      %1153 = vmatpush1.bf16.msra.mxu0 0
      %1154 = vmatprep.subr.bf16.mxu0 0
      %1155 = vmatpush1.bf16.msra.mxu0 0
      %1156 = vmatprep.subr.bf16.mxu0 0
      %1157 = vmatpush1.bf16.msra.mxu0 0
      %1158 = vmatprep.subr.bf16.mxu0 0
      %1159 = vmatpush1.bf16.msra.mxu0 0
      %1160 = vmatprep.subr.bf16.mxu0 0
      %1161 = vmatpush1.bf16.msra.mxu0 0
      %1162 = vmatprep.subr.bf16.mxu0 0
      %1163 = vmatpush1.bf16.msra.mxu0 0
      %1164 = vmatprep.subr.bf16.mxu0 0
      %1165 = vmatpush1.bf16.msra.mxu0 0
      %1166 = vmatprep.subr.bf16.mxu0 0
      %1167 = vmatpush1.bf16.msra.mxu0 0
      %1168 = vmatprep.subr.bf16.mxu0 0
      %1169 = vmatpush1.bf16.msra.mxu0 0
      %1170 = vmatprep.subr.bf16.mxu0 0
      %1171 = vmatpush1.bf16.msra.mxu0 0
      %1172 = vmatprep.subr.bf16.mxu0 0
      %1173 = vmatpush1.bf16.msra.mxu0 0
      %1174 = vmatprep.mubr.bf16.mxu0 0
      %1175 = vmatmul.mubr.bf16.gmra.mrb[0].mxu0 %v1137
      %v1176 = vpop.f32.mrb[0].mxu0
      %v1177 = vadd.f32 0.0, %v1176
      %v1178 = vpop.f32.mrb[0].mxu0
      %v1179 = vpop.f32.mrb[0].mxu0
      %v1180 = vpop.f32.mrb[0].mxu0
      %1181 = vdwg.mxu0
      %v1182 = vadd.f32 %v1018, %v1177
      %1183 = vrot.lane.b32.xlu0 %v698, 104
      %v1184 = vpop.permute.xlu0 %1183
      %1185 = vrot.lane.b32.xlu0 %v699, 104
      %v1186 = vpop.permute.xlu0 %1185
      %v1188 = vsel %vm707, %v1184, 0
      %v1191 = vsel %vm707, %v1186, 0
      %1193 = vmatprep.subr.bf16.mxu0 0
      %1194 = vmatpush1.bf16.xpose.msra.mxu0 %v1191
      %1195 = vmatprep.subr.bf16.mxu0 0
      %1196 = vmatpush1.bf16.xpose.msra.mxu0 0
      %1197 = vmatprep.subr.bf16.mxu0 0
      %1198 = vmatpush1.bf16.xpose.msra.mxu0 0
      %1199 = vmatprep.subr.bf16.mxu0 0
      %1200 = vmatpush1.bf16.xpose.msra.mxu0 0
      %1201 = vmatprep.subr.bf16.mxu0 0
      %1202 = vmatpush1.bf16.xpose.msra.mxu0 0
      %1203 = vmatprep.subr.bf16.mxu0 0
      %1204 = vmatpush1.bf16.xpose.msra.mxu0 0
      %1205 = vmatprep.subr.bf16.mxu0 0
      %1206 = vmatpush1.bf16.xpose.msra.mxu0 0
      %1207 = vmatprep.subr.bf16.mxu0 0
      %1208 = vmatpush1.bf16.xpose.msra.mxu0 0
      %1209 = vmatprep.subr.bf16.mxu0 0
      %1210 = vmatpush1.bf16.xpose.msra.mxu0 0
      %1211 = vmatprep.subr.bf16.mxu0 0
      %1212 = vmatpush1.bf16.xpose.msra.mxu0 0
      %1213 = vmatprep.subr.bf16.mxu0 0
      %1214 = vmatpush1.bf16.xpose.msra.mxu0 0
      %1215 = vmatprep.subr.bf16.mxu0 0
      %1216 = vmatpush1.bf16.xpose.msra.mxu0 0
      %1217 = vmatprep.subr.bf16.mxu0 0
      %1218 = vmatpush1.bf16.xpose.msra.mxu0 0
      %1219 = vmatprep.subr.bf16.mxu0 0
      %1220 = vmatpush1.bf16.xpose.msra.mxu0 0
      %1221 = vmatprep.subr.bf16.mxu0 0
      %1222 = vmatpush1.bf16.xpose.msra.mxu0 0
      %1223 = vmatprep.subr.bf16.mxu0 0
      %1224 = vmatpush1.bf16.xpose.msra.mxu0 0
      %1225 = vmatprep.mubr.bf16.mxu0 0
      %1226 = vmatmul.mubr.bf16.gmra.mrb[0].mxu0 %v1188
      %v1227 = vpop.f32.mrb[0].mxu0
      %v1228 = vadd.f32 %v705, %v1227
      %v1229 = vpop.f32.mrb[0].mxu0
      %v1230 = vpop.f32.mrb[0].mxu0
      %v1231 = vpop.f32.mrb[0].mxu0
      %1232 = vdwg.mxu0
      %v1233 = vsel %vm707, %v1228, -inf
      %1234 = vmax.xlane.f32.xlu0 %v1233
      %v1235 = vpop.xlane.xlu0 %1234
      %v1236 = vsub.f32 %v1228, %v1235
      %v1237 = vmul.f32 %v1236, 1.442695
      %v1238 = vpow.pop %v1237
      %v1239 = vsel %vm707, %v1238, 0.0
      %1240 = vadd.xlane.f32.xlu0 %v1239
      %v1241 = vpop.xlane.xlu0 %1240
      %v1242 = vrcp.pop %v1241
      %v1243 = vmul.f32 %v1238, %v1242
      %v1244 = vpack.c.bf16 %v1243, %v1243
      %1245 = vrot.lane.b32.xlu0 %v700, 104
      %v1246 = vpop.permute.xlu0 %1245
      %v1248 = vsel %vm707, %v1244, 0
      %v1251 = vsel %vm769, %v1246, 0
      %1253 = vmatprep.subr.bf16.mxu0 0
      %1254 = vmatpush1.bf16.msra.mxu0 %v1251
      %1255 = vmatprep.subr.bf16.mxu0 0
      %1256 = vmatpush1.bf16.msra.mxu0 0
      %1257 = vmatprep.subr.bf16.mxu0 0
      %1258 = vmatpush1.bf16.msra.mxu0 0
      %1259 = vmatprep.subr.bf16.mxu0 0
      %1260 = vmatpush1.bf16.msra.mxu0 0
      %1261 = vmatprep.subr.bf16.mxu0 0
      %1262 = vmatpush1.bf16.msra.mxu0 0
      %1263 = vmatprep.subr.bf16.mxu0 0
      %1264 = vmatpush1.bf16.msra.mxu0 0
      %1265 = vmatprep.subr.bf16.mxu0 0
      %1266 = vmatpush1.bf16.msra.mxu0 0
      %1267 = vmatprep.subr.bf16.mxu0 0
      %1268 = vmatpush1.bf16.msra.mxu0 0
      %1269 = vmatprep.subr.bf16.mxu0 0
      %1270 = vmatpush1.bf16.msra.mxu0 0
      %1271 = vmatprep.subr.bf16.mxu0 0
      %1272 = vmatpush1.bf16.msra.mxu0 0
      %1273 = vmatprep.subr.bf16.mxu0 0
      %1274 = vmatpush1.bf16.msra.mxu0 0
      %1275 = vmatprep.subr.bf16.mxu0 0
      %1276 = vmatpush1.bf16.msra.mxu0 0
      %1277 = vmatprep.subr.bf16.mxu0 0
      %1278 = vmatpush1.bf16.msra.mxu0 0
      %1279 = vmatprep.subr.bf16.mxu0 0
      %1280 = vmatpush1.bf16.msra.mxu0 0
      %1281 = vmatprep.subr.bf16.mxu0 0
      %1282 = vmatpush1.bf16.msra.mxu0 0
      %1283 = vmatprep.subr.bf16.mxu0 0
      %1284 = vmatpush1.bf16.msra.mxu0 0
      %1285 = vmatprep.mubr.bf16.mxu0 0
      %1286 = vmatmul.mubr.bf16.gmra.mrb[0].mxu0 %v1248
      %v1287 = vpop.f32.mrb[0].mxu0
      %v1288 = vadd.f32 0.0, %v1287
      %v1289 = vpop.f32.mrb[0].mxu0
      %v1290 = vpop.f32.mrb[0].mxu0
      %v1291 = vpop.f32.mrb[0].mxu0
      %1292 = vdwg.mxu0
      %v1293 = vpack.c.bf16 %v1288, %v1288
      %s1294 = scalar_lea.vmem %s470, 12
      %v1295 = vld [vmem:[%s1294] sm:$0xf]
      %v1297 = vsel %vm707, %v1293, 0
      %v1300 = vsel %vm769, %v1295, 0
      %1302 = vmatprep.subr.bf16.mxu0 0
      %1303 = vmatpush1.bf16.msra.mxu0 %v1300
      %1304 = vmatprep.subr.bf16.mxu0 0
      %1305 = vmatpush1.bf16.msra.mxu0 0
      %1306 = vmatprep.subr.bf16.mxu0 0
      %1307 = vmatpush1.bf16.msra.mxu0 0
      %1308 = vmatprep.subr.bf16.mxu0 0
      %1309 = vmatpush1.bf16.msra.mxu0 0
      %1310 = vmatprep.subr.bf16.mxu0 0
      %1311 = vmatpush1.bf16.msra.mxu0 0
      %1312 = vmatprep.subr.bf16.mxu0 0
      %1313 = vmatpush1.bf16.msra.mxu0 0
      %1314 = vmatprep.subr.bf16.mxu0 0
      %1315 = vmatpush1.bf16.msra.mxu0 0
      %1316 = vmatprep.subr.bf16.mxu0 0
      %1317 = vmatpush1.bf16.msra.mxu0 0
      %1318 = vmatprep.subr.bf16.mxu0 0
      %1319 = vmatpush1.bf16.msra.mxu0 0
      %1320 = vmatprep.subr.bf16.mxu0 0
      %1321 = vmatpush1.bf16.msra.mxu0 0
      %1322 = vmatprep.subr.bf16.mxu0 0
      %1323 = vmatpush1.bf16.msra.mxu0 0
      %1324 = vmatprep.subr.bf16.mxu0 0
      %1325 = vmatpush1.bf16.msra.mxu0 0
      %1326 = vmatprep.subr.bf16.mxu0 0
      %1327 = vmatpush1.bf16.msra.mxu0 0
      %1328 = vmatprep.subr.bf16.mxu0 0
      %1329 = vmatpush1.bf16.msra.mxu0 0
      %1330 = vmatprep.subr.bf16.mxu0 0
      %1331 = vmatpush1.bf16.msra.mxu0 0
      %1332 = vmatprep.subr.bf16.mxu0 0
      %1333 = vmatpush1.bf16.msra.mxu0 0
      %1334 = vmatprep.mubr.bf16.mxu0 0
      %1335 = vmatmul.mubr.bf16.gmra.mrb[0].mxu0 %v1297
      %v1336 = vpop.f32.mrb[0].mxu0
      %v1337 = vadd.f32 0.0, %v1336
      %v1338 = vpop.f32.mrb[0].mxu0
      %v1339 = vpop.f32.mrb[0].mxu0
      %v1340 = vpop.f32.mrb[0].mxu0
      %1341 = vdwg.mxu0
      %v1342 = vadd.f32 %v1182, %v1337
      %v1343 = vlaneseq
      %v1344 = vshrl.u32 %v1343, 7
      %v1345 = vsub.s32 3, %v1344
      %v1346 = vrot.slane %v507, %v1345
      %v1347 = vadd.f32 %v1342, %v1346
      %1348 = vst.msk [vmem:[#allocation3] sm:$0xff] %vm530, %v1347
      %s1349 = scalar_lea.vmem %s1, 1
      %v1350 = vld [vmem:[%s1349] sm:$0x1]
      %v1351 = vpack.c.bf16 %v572, %v572
      %v1352 = vpack.c.bf16 %v633, %v633
      %v1353 = vpack.c.bf16 %v694, %v694
      %v1355 = vlaneseq
      %v1356 = vshrl.u32 %v1355, 7
      %v1357 = vsub.s32 0, %v1356
      %v1358 = vrot.slane %v1350, %v1357
      %v1361 = vsel %vm707, %v1351, 0
      %v1364 = vsel %vm707, %v1352, 0
      %1366 = vmatprep.subr.bf16.mxu0 0
      %1367 = vmatpush1.bf16.xpose.msra.mxu0 %v1364
      %1368 = vmatprep.subr.bf16.mxu0 0
      %1369 = vmatpush1.bf16.xpose.msra.mxu0 0
      %1370 = vmatprep.subr.bf16.mxu0 0
      %1371 = vmatpush1.bf16.xpose.msra.mxu0 0
      %1372 = vmatprep.subr.bf16.mxu0 0
      %1373 = vmatpush1.bf16.xpose.msra.mxu0 0
      %1374 = vmatprep.subr.bf16.mxu0 0
      %1375 = vmatpush1.bf16.xpose.msra.mxu0 0
      %1376 = vmatprep.subr.bf16.mxu0 0
      %1377 = vmatpush1.bf16.xpose.msra.mxu0 0
      %1378 = vmatprep.subr.bf16.mxu0 0
      %1379 = vmatpush1.bf16.xpose.msra.mxu0 0
      %1380 = vmatprep.subr.bf16.mxu0 0
      %1381 = vmatpush1.bf16.xpose.msra.mxu0 0
      %1382 = vmatprep.subr.bf16.mxu0 0
      %1383 = vmatpush1.bf16.xpose.msra.mxu0 0
      %1384 = vmatprep.subr.bf16.mxu0 0
      %1385 = vmatpush1.bf16.xpose.msra.mxu0 0
      %1386 = vmatprep.subr.bf16.mxu0 0
      %1387 = vmatpush1.bf16.xpose.msra.mxu0 0
      %1388 = vmatprep.subr.bf16.mxu0 0
      %1389 = vmatpush1.bf16.xpose.msra.mxu0 0
      %1390 = vmatprep.subr.bf16.mxu0 0
      %1391 = vmatpush1.bf16.xpose.msra.mxu0 0
      %1392 = vmatprep.subr.bf16.mxu0 0
      %1393 = vmatpush1.bf16.xpose.msra.mxu0 0
      %1394 = vmatprep.subr.bf16.mxu0 0
      %1395 = vmatpush1.bf16.xpose.msra.mxu0 0
      %1396 = vmatprep.subr.bf16.mxu0 0
      %1397 = vmatpush1.bf16.xpose.msra.mxu0 0
      %1398 = vmatprep.mubr.bf16.mxu0 0
      %1399 = vmatmul.mubr.bf16.gmra.mrb[0].mxu0 %v1361
      %v1400 = vpop.f32.mrb[0].mxu0
      %v1401 = vadd.f32 %v1358, %v1400
      %v1402 = vpop.f32.mrb[0].mxu0
      %v1403 = vpop.f32.mrb[0].mxu0
      %v1404 = vpop.f32.mrb[0].mxu0
      %1405 = vdwg.mxu0
      %v1406 = vsel %vm707, %v1401, -inf
      %1407 = vmax.xlane.f32.xlu0 %v1406
      %v1408 = vpop.xlane.xlu0 %1407
      %v1409 = vsub.f32 %v1401, %v1408
      %v1410 = vmul.f32 %v1409, 1.442695
      %v1411 = vpow.pop %v1410
      %v1412 = vsel %vm707, %v1411, 0.0
      %1413 = vadd.xlane.f32.xlu0 %v1412
      %v1414 = vpop.xlane.xlu0 %1413
      %v1415 = vrcp.pop %v1414
      %v1416 = vmul.f32 %v1411, %v1415
      %v1417 = vpack.c.bf16 %v1416, %v1416
      %v1419 = vsel %vm707, %v1417, 0
      %v1422 = vsel %vm769, %v1353, 0
      %1424 = vmatprep.subr.bf16.mxu0 0
      %1425 = vmatpush1.bf16.msra.mxu0 %v1422
      %1426 = vmatprep.subr.bf16.mxu0 0
      %1427 = vmatpush1.bf16.msra.mxu0 0
      %1428 = vmatprep.subr.bf16.mxu0 0
      %1429 = vmatpush1.bf16.msra.mxu0 0
      %1430 = vmatprep.subr.bf16.mxu0 0
      %1431 = vmatpush1.bf16.msra.mxu0 0
      %1432 = vmatprep.subr.bf16.mxu0 0
      %1433 = vmatpush1.bf16.msra.mxu0 0
      %1434 = vmatprep.subr.bf16.mxu0 0
      %1435 = vmatpush1.bf16.msra.mxu0 0
      %1436 = vmatprep.subr.bf16.mxu0 0
      %1437 = vmatpush1.bf16.msra.mxu0 0
      %1438 = vmatprep.subr.bf16.mxu0 0
      %1439 = vmatpush1.bf16.msra.mxu0 0
      %1440 = vmatprep.subr.bf16.mxu0 0
      %1441 = vmatpush1.bf16.msra.mxu0 0
      %1442 = vmatprep.subr.bf16.mxu0 0
      %1443 = vmatpush1.bf16.msra.mxu0 0
      %1444 = vmatprep.subr.bf16.mxu0 0
      %1445 = vmatpush1.bf16.msra.mxu0 0
      %1446 = vmatprep.subr.bf16.mxu0 0
      %1447 = vmatpush1.bf16.msra.mxu0 0
      %1448 = vmatprep.subr.bf16.mxu0 0
      %1449 = vmatpush1.bf16.msra.mxu0 0
      %1450 = vmatprep.subr.bf16.mxu0 0
      %1451 = vmatpush1.bf16.msra.mxu0 0
      %1452 = vmatprep.subr.bf16.mxu0 0
      %1453 = vmatpush1.bf16.msra.mxu0 0
      %1454 = vmatprep.subr.bf16.mxu0 0
      %1455 = vmatpush1.bf16.msra.mxu0 0
      %1456 = vmatprep.mubr.bf16.mxu0 0
      %1457 = vmatmul.mubr.bf16.gmra.mrb[0].mxu0 %v1419
      %v1458 = vpop.f32.mrb[0].mxu0
      %v1459 = vadd.f32 0.0, %v1458
      %v1460 = vpop.f32.mrb[0].mxu0
      %v1461 = vpop.f32.mrb[0].mxu0
      %v1462 = vpop.f32.mrb[0].mxu0
      %1463 = vdwg.mxu0
      %v1464 = vpack.c.bf16 %v1459, %v1459
      %v1465 = vld [vmem:[%s470] sm:$0xf]
      %1467 = vrot.lane.b32.xlu0 %v1351, 120
      %v1468 = vpop.permute.xlu0 %1467
      %1470 = vrot.lane.b32.xlu0 %v1352, 120
      %v1471 = vpop.permute.xlu0 %1470
      %v1473 = vsel %vm707, %v1468, 0
      %v1476 = vsel %vm707, %v1471, 0
      %1478 = vmatprep.subr.bf16.mxu0 0
      %1479 = vmatpush1.bf16.xpose.msra.mxu0 %v1476
      %1480 = vmatprep.subr.bf16.mxu0 0
      %1481 = vmatpush1.bf16.xpose.msra.mxu0 0
      %1482 = vmatprep.subr.bf16.mxu0 0
      %1483 = vmatpush1.bf16.xpose.msra.mxu0 0
      %1484 = vmatprep.subr.bf16.mxu0 0
      %1485 = vmatpush1.bf16.xpose.msra.mxu0 0
      %1486 = vmatprep.subr.bf16.mxu0 0
      %1487 = vmatpush1.bf16.xpose.msra.mxu0 0
      %1488 = vmatprep.subr.bf16.mxu0 0
      %1489 = vmatpush1.bf16.xpose.msra.mxu0 0
      %1490 = vmatprep.subr.bf16.mxu0 0
      %1491 = vmatpush1.bf16.xpose.msra.mxu0 0
      %1492 = vmatprep.subr.bf16.mxu0 0
      %1493 = vmatpush1.bf16.xpose.msra.mxu0 0
      %1494 = vmatprep.subr.bf16.mxu0 0
      %1495 = vmatpush1.bf16.xpose.msra.mxu0 0
      %1496 = vmatprep.subr.bf16.mxu0 0
      %1497 = vmatpush1.bf16.xpose.msra.mxu0 0
      %1498 = vmatprep.subr.bf16.mxu0 0
      %1499 = vmatpush1.bf16.xpose.msra.mxu0 0
      %1500 = vmatprep.subr.bf16.mxu0 0
      %1501 = vmatpush1.bf16.xpose.msra.mxu0 0
      %1502 = vmatprep.subr.bf16.mxu0 0
      %1503 = vmatpush1.bf16.xpose.msra.mxu0 0
      %1504 = vmatprep.subr.bf16.mxu0 0
      %1505 = vmatpush1.bf16.xpose.msra.mxu0 0
      %1506 = vmatprep.subr.bf16.mxu0 0
      %1507 = vmatpush1.bf16.xpose.msra.mxu0 0
      %1508 = vmatprep.subr.bf16.mxu0 0
      %1509 = vmatpush1.bf16.xpose.msra.mxu0 0
      %1510 = vmatprep.mubr.bf16.mxu0 0
      %1511 = vmatmul.mubr.bf16.gmra.mrb[0].mxu0 %v1473
      %v1512 = vpop.f32.mrb[0].mxu0
      %v1513 = vadd.f32 %v1358, %v1512
      %v1514 = vpop.f32.mrb[0].mxu0
      %v1515 = vpop.f32.mrb[0].mxu0
      %v1516 = vpop.f32.mrb[0].mxu0
      %1517 = vdwg.mxu0
      %v1518 = vsel %vm707, %v1513, -inf
      %1519 = vmax.xlane.f32.xlu0 %v1518
      %v1520 = vpop.xlane.xlu0 %1519
      %v1521 = vsub.f32 %v1513, %v1520
      %v1522 = vmul.f32 %v1521, 1.442695
      %v1523 = vpow.pop %v1522
      %v1524 = vsel %vm707, %v1523, 0.0
      %1525 = vadd.xlane.f32.xlu0 %v1524
      %v1526 = vpop.xlane.xlu0 %1525
      %v1527 = vrcp.pop %v1526
      %v1528 = vmul.f32 %v1523, %v1527
      %v1529 = vpack.c.bf16 %v1528, %v1528
      %1531 = vrot.lane.b32.xlu0 %v1353, 120
      %v1532 = vpop.permute.xlu0 %1531
      %v1534 = vsel %vm707, %v1529, 0
      %v1537 = vsel %vm769, %v1532, 0
      %1539 = vmatprep.subr.bf16.mxu0 0
      %1540 = vmatpush1.bf16.msra.mxu0 %v1537
      %1541 = vmatprep.subr.bf16.mxu0 0
      %1542 = vmatpush1.bf16.msra.mxu0 0
      %1543 = vmatprep.subr.bf16.mxu0 0
      %1544 = vmatpush1.bf16.msra.mxu0 0
      %1545 = vmatprep.subr.bf16.mxu0 0
      %1546 = vmatpush1.bf16.msra.mxu0 0
      %1547 = vmatprep.subr.bf16.mxu0 0
      %1548 = vmatpush1.bf16.msra.mxu0 0
      %1549 = vmatprep.subr.bf16.mxu0 0
      %1550 = vmatpush1.bf16.msra.mxu0 0
      %1551 = vmatprep.subr.bf16.mxu0 0
      %1552 = vmatpush1.bf16.msra.mxu0 0
      %1553 = vmatprep.subr.bf16.mxu0 0
      %1554 = vmatpush1.bf16.msra.mxu0 0
      %1555 = vmatprep.subr.bf16.mxu0 0
      %1556 = vmatpush1.bf16.msra.mxu0 0
      %1557 = vmatprep.subr.bf16.mxu0 0
      %1558 = vmatpush1.bf16.msra.mxu0 0
      %1559 = vmatprep.subr.bf16.mxu0 0
      %1560 = vmatpush1.bf16.msra.mxu0 0
      %1561 = vmatprep.subr.bf16.mxu0 0
      %1562 = vmatpush1.bf16.msra.mxu0 0
      %1563 = vmatprep.subr.bf16.mxu0 0
      %1564 = vmatpush1.bf16.msra.mxu0 0
      %1565 = vmatprep.subr.bf16.mxu0 0
      %1566 = vmatpush1.bf16.msra.mxu0 0
      %1567 = vmatprep.subr.bf16.mxu0 0
      %1568 = vmatpush1.bf16.msra.mxu0 0
      %1569 = vmatprep.subr.bf16.mxu0 0
      %1570 = vmatpush1.bf16.msra.mxu0 0
      %1571 = vmatprep.mubr.bf16.mxu0 0
      %1572 = vmatmul.mubr.bf16.gmra.mrb[0].mxu0 %v1534
      %v1573 = vpop.f32.mrb[0].mxu0
      %v1574 = vadd.f32 0.0, %v1573
      %v1575 = vpop.f32.mrb[0].mxu0
      %v1576 = vpop.f32.mrb[0].mxu0
      %v1577 = vpop.f32.mrb[0].mxu0
      %1578 = vdwg.mxu0
      %v1579 = vpack.c.bf16 %v1574, %v1574
      %v1580 = vld [vmem:[%s929] sm:$0xf]
      %v1582 = vsel %vm707, %v1579, 0
      %v1585 = vsel %vm769, %v1580, 0
      %1587 = vmatprep.subr.bf16.mxu0 0
      %1588 = vmatpush1.bf16.msra.mxu0 %v1585
      %1589 = vmatprep.subr.bf16.mxu0 0
      %1590 = vmatpush1.bf16.msra.mxu0 0
      %1591 = vmatprep.subr.bf16.mxu0 0
      %1592 = vmatpush1.bf16.msra.mxu0 0
      %1593 = vmatprep.subr.bf16.mxu0 0
      %1594 = vmatpush1.bf16.msra.mxu0 0
      %1595 = vmatprep.subr.bf16.mxu0 0
      %1596 = vmatpush1.bf16.msra.mxu0 0
      %1597 = vmatprep.subr.bf16.mxu0 0
      %1598 = vmatpush1.bf16.msra.mxu0 0
      %1599 = vmatprep.subr.bf16.mxu0 0
      %1600 = vmatpush1.bf16.msra.mxu0 0
      %1601 = vmatprep.subr.bf16.mxu0 0
      %1602 = vmatpush1.bf16.msra.mxu0 0
      %1603 = vmatprep.subr.bf16.mxu0 0
      %1604 = vmatpush1.bf16.msra.mxu0 0
      %1605 = vmatprep.subr.bf16.mxu0 0
      %1606 = vmatpush1.bf16.msra.mxu0 0
      %1607 = vmatprep.subr.bf16.mxu0 0
      %1608 = vmatpush1.bf16.msra.mxu0 0
      %1609 = vmatprep.subr.bf16.mxu0 0
      %1610 = vmatpush1.bf16.msra.mxu0 0
      %1611 = vmatprep.subr.bf16.mxu0 0
      %1612 = vmatpush1.bf16.msra.mxu0 0
      %1613 = vmatprep.subr.bf16.mxu0 0
      %1614 = vmatpush1.bf16.msra.mxu0 0
      %1615 = vmatprep.subr.bf16.mxu0 0
      %1616 = vmatpush1.bf16.msra.mxu0 0
      %1617 = vmatprep.subr.bf16.mxu0 0
      %1618 = vmatpush1.bf16.msra.mxu0 0
      %1619 = vmatprep.mubr.bf16.mxu0 0
      %1620 = vmatmul.mubr.bf16.gmra.mrb[0].mxu0 %v1582
      %v1621 = vpop.f32.mrb[0].mxu0
      %v1622 = vadd.f32 0.0, %v1621
      %v1623 = vpop.f32.mrb[0].mxu0
      %v1624 = vpop.f32.mrb[0].mxu0
      %v1625 = vpop.f32.mrb[0].mxu0
      %1626 = vdwg.mxu0
      %v1628 = vsel %vm707, %v1464, 0
      %v1631 = vsel %vm769, %v1465, 0
      %1633 = vmatprep.subr.bf16.mxu0 0
      %1634 = vmatpush1.bf16.msra.mxu0 %v1631
      %1635 = vmatprep.subr.bf16.mxu0 0
      %1636 = vmatpush1.bf16.msra.mxu0 0
      %1637 = vmatprep.subr.bf16.mxu0 0
      %1638 = vmatpush1.bf16.msra.mxu0 0
      %1639 = vmatprep.subr.bf16.mxu0 0
      %1640 = vmatpush1.bf16.msra.mxu0 0
      %1641 = vmatprep.subr.bf16.mxu0 0
      %1642 = vmatpush1.bf16.msra.mxu0 0
      %1643 = vmatprep.subr.bf16.mxu0 0
      %1644 = vmatpush1.bf16.msra.mxu0 0
      %1645 = vmatprep.subr.bf16.mxu0 0
      %1646 = vmatpush1.bf16.msra.mxu0 0
      %1647 = vmatprep.subr.bf16.mxu0 0
      %1648 = vmatpush1.bf16.msra.mxu0 0
      %1649 = vmatprep.subr.bf16.mxu0 0
      %1650 = vmatpush1.bf16.msra.mxu0 0
      %1651 = vmatprep.subr.bf16.mxu0 0
      %1652 = vmatpush1.bf16.msra.mxu0 0
      %1653 = vmatprep.subr.bf16.mxu0 0
      %1654 = vmatpush1.bf16.msra.mxu0 0
      %1655 = vmatprep.subr.bf16.mxu0 0
      %1656 = vmatpush1.bf16.msra.mxu0 0
      %1657 = vmatprep.subr.bf16.mxu0 0
      %1658 = vmatpush1.bf16.msra.mxu0 0
      %1659 = vmatprep.subr.bf16.mxu0 0
      %1660 = vmatpush1.bf16.msra.mxu0 0
      %1661 = vmatprep.subr.bf16.mxu0 0
      %1662 = vmatpush1.bf16.msra.mxu0 0
      %1663 = vmatprep.subr.bf16.mxu0 0
      %1664 = vmatpush1.bf16.msra.mxu0 0
      %1665 = vmatprep.mubr.bf16.mxu0 0
      %1666 = vmatmul.mubr.bf16.gmra.mrb[0].mxu0 %v1628
      %v1667 = vpop.f32.mrb[0].mxu0
      %v1668 = vadd.f32 %v1622, %v1667
      %v1669 = vpop.f32.mrb[0].mxu0
      %v1670 = vpop.f32.mrb[0].mxu0
      %v1671 = vpop.f32.mrb[0].mxu0
      %1672 = vdwg.mxu0
      %1673 = vrot.lane.b32.xlu0 %v1351, 112
      %v1674 = vpop.permute.xlu0 %1673
      %1675 = vrot.lane.b32.xlu0 %v1352, 112
      %v1676 = vpop.permute.xlu0 %1675
      %v1678 = vsel %vm707, %v1674, 0
      %v1681 = vsel %vm707, %v1676, 0
      %1683 = vmatprep.subr.bf16.mxu0 0
      %1684 = vmatpush1.bf16.xpose.msra.mxu0 %v1681
      %1685 = vmatprep.subr.bf16.mxu0 0
      %1686 = vmatpush1.bf16.xpose.msra.mxu0 0
      %1687 = vmatprep.subr.bf16.mxu0 0
      %1688 = vmatpush1.bf16.xpose.msra.mxu0 0
      %1689 = vmatprep.subr.bf16.mxu0 0
      %1690 = vmatpush1.bf16.xpose.msra.mxu0 0
      %1691 = vmatprep.subr.bf16.mxu0 0
      %1692 = vmatpush1.bf16.xpose.msra.mxu0 0
      %1693 = vmatprep.subr.bf16.mxu0 0
      %1694 = vmatpush1.bf16.xpose.msra.mxu0 0
      %1695 = vmatprep.subr.bf16.mxu0 0
      %1696 = vmatpush1.bf16.xpose.msra.mxu0 0
      %1697 = vmatprep.subr.bf16.mxu0 0
      %1698 = vmatpush1.bf16.xpose.msra.mxu0 0
      %1699 = vmatprep.subr.bf16.mxu0 0
      %1700 = vmatpush1.bf16.xpose.msra.mxu0 0
      %1701 = vmatprep.subr.bf16.mxu0 0
      %1702 = vmatpush1.bf16.xpose.msra.mxu0 0
      %1703 = vmatprep.subr.bf16.mxu0 0
      %1704 = vmatpush1.bf16.xpose.msra.mxu0 0
      %1705 = vmatprep.subr.bf16.mxu0 0
      %1706 = vmatpush1.bf16.xpose.msra.mxu0 0
      %1707 = vmatprep.subr.bf16.mxu0 0
      %1708 = vmatpush1.bf16.xpose.msra.mxu0 0
      %1709 = vmatprep.subr.bf16.mxu0 0
      %1710 = vmatpush1.bf16.xpose.msra.mxu0 0
      %1711 = vmatprep.subr.bf16.mxu0 0
      %1712 = vmatpush1.bf16.xpose.msra.mxu0 0
      %1713 = vmatprep.subr.bf16.mxu0 0
      %1714 = vmatpush1.bf16.xpose.msra.mxu0 0
      %1715 = vmatprep.mubr.bf16.mxu0 0
      %1716 = vmatmul.mubr.bf16.gmra.mrb[0].mxu0 %v1678
      %v1717 = vpop.f32.mrb[0].mxu0
      %v1718 = vadd.f32 %v1358, %v1717
      %v1719 = vpop.f32.mrb[0].mxu0
      %v1720 = vpop.f32.mrb[0].mxu0
      %v1721 = vpop.f32.mrb[0].mxu0
      %1722 = vdwg.mxu0
      %v1723 = vsel %vm707, %v1718, -inf
      %1724 = vmax.xlane.f32.xlu0 %v1723
      %v1725 = vpop.xlane.xlu0 %1724
      %v1726 = vsub.f32 %v1718, %v1725
      %v1727 = vmul.f32 %v1726, 1.442695
      %v1728 = vpow.pop %v1727
      %v1729 = vsel %vm707, %v1728, 0.0
      %1730 = vadd.xlane.f32.xlu0 %v1729
      %v1731 = vpop.xlane.xlu0 %1730
      %v1732 = vrcp.pop %v1731
      %v1733 = vmul.f32 %v1728, %v1732
      %v1734 = vpack.c.bf16 %v1733, %v1733
      %1735 = vrot.lane.b32.xlu0 %v1353, 112
      %v1736 = vpop.permute.xlu0 %1735
      %v1738 = vsel %vm707, %v1734, 0
      %v1741 = vsel %vm769, %v1736, 0
      %1743 = vmatprep.subr.bf16.mxu0 0
      %1744 = vmatpush1.bf16.msra.mxu0 %v1741
      %1745 = vmatprep.subr.bf16.mxu0 0
      %1746 = vmatpush1.bf16.msra.mxu0 0
      %1747 = vmatprep.subr.bf16.mxu0 0
      %1748 = vmatpush1.bf16.msra.mxu0 0
      %1749 = vmatprep.subr.bf16.mxu0 0
      %1750 = vmatpush1.bf16.msra.mxu0 0
      %1751 = vmatprep.subr.bf16.mxu0 0
      %1752 = vmatpush1.bf16.msra.mxu0 0
      %1753 = vmatprep.subr.bf16.mxu0 0
      %1754 = vmatpush1.bf16.msra.mxu0 0
      %1755 = vmatprep.subr.bf16.mxu0 0
      %1756 = vmatpush1.bf16.msra.mxu0 0
      %1757 = vmatprep.subr.bf16.mxu0 0
      %1758 = vmatpush1.bf16.msra.mxu0 0
      %1759 = vmatprep.subr.bf16.mxu0 0
      %1760 = vmatpush1.bf16.msra.mxu0 0
      %1761 = vmatprep.subr.bf16.mxu0 0
      %1762 = vmatpush1.bf16.msra.mxu0 0
      %1763 = vmatprep.subr.bf16.mxu0 0
      %1764 = vmatpush1.bf16.msra.mxu0 0
      %1765 = vmatprep.subr.bf16.mxu0 0
      %1766 = vmatpush1.bf16.msra.mxu0 0
      %1767 = vmatprep.subr.bf16.mxu0 0
      %1768 = vmatpush1.bf16.msra.mxu0 0
      %1769 = vmatprep.subr.bf16.mxu0 0
      %1770 = vmatpush1.bf16.msra.mxu0 0
      %1771 = vmatprep.subr.bf16.mxu0 0
      %1772 = vmatpush1.bf16.msra.mxu0 0
      %1773 = vmatprep.subr.bf16.mxu0 0
      %1774 = vmatpush1.bf16.msra.mxu0 0
      %1775 = vmatprep.mubr.bf16.mxu0 0
      %1776 = vmatmul.mubr.bf16.gmra.mrb[0].mxu0 %v1738
      %v1777 = vpop.f32.mrb[0].mxu0
      %v1778 = vadd.f32 0.0, %v1777
      %v1779 = vpop.f32.mrb[0].mxu0
      %v1780 = vpop.f32.mrb[0].mxu0
      %v1781 = vpop.f32.mrb[0].mxu0
      %1782 = vdwg.mxu0
      %v1783 = vpack.c.bf16 %v1778, %v1778
      %v1784 = vld [vmem:[%s1134] sm:$0xf]
      %v1786 = vsel %vm707, %v1783, 0
      %v1789 = vsel %vm769, %v1784, 0
      %1791 = vmatprep.subr.bf16.mxu0 0
      %1792 = vmatpush1.bf16.msra.mxu0 %v1789
      %1793 = vmatprep.subr.bf16.mxu0 0
      %1794 = vmatpush1.bf16.msra.mxu0 0
      %1795 = vmatprep.subr.bf16.mxu0 0
      %1796 = vmatpush1.bf16.msra.mxu0 0
      %1797 = vmatprep.subr.bf16.mxu0 0
      %1798 = vmatpush1.bf16.msra.mxu0 0
      %1799 = vmatprep.subr.bf16.mxu0 0
      %1800 = vmatpush1.bf16.msra.mxu0 0
      %1801 = vmatprep.subr.bf16.mxu0 0
      %1802 = vmatpush1.bf16.msra.mxu0 0
      %1803 = vmatprep.subr.bf16.mxu0 0
      %1804 = vmatpush1.bf16.msra.mxu0 0
      %1805 = vmatprep.subr.bf16.mxu0 0
      %1806 = vmatpush1.bf16.msra.mxu0 0
      %1807 = vmatprep.subr.bf16.mxu0 0
      %1808 = vmatpush1.bf16.msra.mxu0 0
      %1809 = vmatprep.subr.bf16.mxu0 0
      %1810 = vmatpush1.bf16.msra.mxu0 0
      %1811 = vmatprep.subr.bf16.mxu0 0
      %1812 = vmatpush1.bf16.msra.mxu0 0
      %1813 = vmatprep.subr.bf16.mxu0 0
      %1814 = vmatpush1.bf16.msra.mxu0 0
      %1815 = vmatprep.subr.bf16.mxu0 0
      %1816 = vmatpush1.bf16.msra.mxu0 0
      %1817 = vmatprep.subr.bf16.mxu0 0
      %1818 = vmatpush1.bf16.msra.mxu0 0
      %1819 = vmatprep.subr.bf16.mxu0 0
      %1820 = vmatpush1.bf16.msra.mxu0 0
      %1821 = vmatprep.subr.bf16.mxu0 0
      %1822 = vmatpush1.bf16.msra.mxu0 0
      %1823 = vmatprep.mubr.bf16.mxu0 0
      %1824 = vmatmul.mubr.bf16.gmra.mrb[0].mxu0 %v1786
      %v1825 = vpop.f32.mrb[0].mxu0
      %v1826 = vadd.f32 0.0, %v1825
      %v1827 = vpop.f32.mrb[0].mxu0
      %v1828 = vpop.f32.mrb[0].mxu0
      %v1829 = vpop.f32.mrb[0].mxu0
      %1830 = vdwg.mxu0
      %v1831 = vadd.f32 %v1668, %v1826
      %1832 = vrot.lane.b32.xlu0 %v1351, 104
      %v1833 = vpop.permute.xlu0 %1832
      %1834 = vrot.lane.b32.xlu0 %v1352, 104
      %v1835 = vpop.permute.xlu0 %1834
      %v1837 = vsel %vm707, %v1833, 0
      %v1840 = vsel %vm707, %v1835, 0
      %1842 = vmatprep.subr.bf16.mxu0 0
      %1843 = vmatpush1.bf16.xpose.msra.mxu0 %v1840
      %1844 = vmatprep.subr.bf16.mxu0 0
      %1845 = vmatpush1.bf16.xpose.msra.mxu0 0
      %1846 = vmatprep.subr.bf16.mxu0 0
      %1847 = vmatpush1.bf16.xpose.msra.mxu0 0
      %1848 = vmatprep.subr.bf16.mxu0 0
      %1849 = vmatpush1.bf16.xpose.msra.mxu0 0
      %1850 = vmatprep.subr.bf16.mxu0 0
      %1851 = vmatpush1.bf16.xpose.msra.mxu0 0
      %1852 = vmatprep.subr.bf16.mxu0 0
      %1853 = vmatpush1.bf16.xpose.msra.mxu0 0
      %1854 = vmatprep.subr.bf16.mxu0 0
      %1855 = vmatpush1.bf16.xpose.msra.mxu0 0
      %1856 = vmatprep.subr.bf16.mxu0 0
      %1857 = vmatpush1.bf16.xpose.msra.mxu0 0
      %1858 = vmatprep.subr.bf16.mxu0 0
      %1859 = vmatpush1.bf16.xpose.msra.mxu0 0
      %1860 = vmatprep.subr.bf16.mxu0 0
      %1861 = vmatpush1.bf16.xpose.msra.mxu0 0
      %1862 = vmatprep.subr.bf16.mxu0 0
      %1863 = vmatpush1.bf16.xpose.msra.mxu0 0
      %1864 = vmatprep.subr.bf16.mxu0 0
      %1865 = vmatpush1.bf16.xpose.msra.mxu0 0
      %1866 = vmatprep.subr.bf16.mxu0 0
      %1867 = vmatpush1.bf16.xpose.msra.mxu0 0
      %1868 = vmatprep.subr.bf16.mxu0 0
      %1869 = vmatpush1.bf16.xpose.msra.mxu0 0
      %1870 = vmatprep.subr.bf16.mxu0 0
      %1871 = vmatpush1.bf16.xpose.msra.mxu0 0
      %1872 = vmatprep.subr.bf16.mxu0 0
      %1873 = vmatpush1.bf16.xpose.msra.mxu0 0
      %1874 = vmatprep.mubr.bf16.mxu0 0
      %1875 = vmatmul.mubr.bf16.gmra.mrb[0].mxu0 %v1837
      %v1876 = vpop.f32.mrb[0].mxu0
      %v1877 = vadd.f32 %v1358, %v1876
      %v1878 = vpop.f32.mrb[0].mxu0
      %v1879 = vpop.f32.mrb[0].mxu0
      %v1880 = vpop.f32.mrb[0].mxu0
      %1881 = vdwg.mxu0
      %v1882 = vsel %vm707, %v1877, -inf
      %1883 = vmax.xlane.f32.xlu0 %v1882
      %v1884 = vpop.xlane.xlu0 %1883
      %v1885 = vsub.f32 %v1877, %v1884
      %v1886 = vmul.f32 %v1885, 1.442695
      %v1887 = vpow.pop %v1886
      %v1888 = vsel %vm707, %v1887, 0.0
      %1889 = vadd.xlane.f32.xlu0 %v1888
      %v1890 = vpop.xlane.xlu0 %1889
      %v1891 = vrcp.pop %v1890
      %v1892 = vmul.f32 %v1887, %v1891
      %v1893 = vpack.c.bf16 %v1892, %v1892
      %1894 = vrot.lane.b32.xlu0 %v1353, 104
      %v1895 = vpop.permute.xlu0 %1894
      %v1897 = vsel %vm707, %v1893, 0
      %v1900 = vsel %vm769, %v1895, 0
      %1902 = vmatprep.subr.bf16.mxu0 0
      %1903 = vmatpush1.bf16.msra.mxu0 %v1900
      %1904 = vmatprep.subr.bf16.mxu0 0
      %1905 = vmatpush1.bf16.msra.mxu0 0
      %1906 = vmatprep.subr.bf16.mxu0 0
      %1907 = vmatpush1.bf16.msra.mxu0 0
      %1908 = vmatprep.subr.bf16.mxu0 0
      %1909 = vmatpush1.bf16.msra.mxu0 0
      %1910 = vmatprep.subr.bf16.mxu0 0
      %1911 = vmatpush1.bf16.msra.mxu0 0
      %1912 = vmatprep.subr.bf16.mxu0 0
      %1913 = vmatpush1.bf16.msra.mxu0 0
      %1914 = vmatprep.subr.bf16.mxu0 0
      %1915 = vmatpush1.bf16.msra.mxu0 0
      %1916 = vmatprep.subr.bf16.mxu0 0
      %1917 = vmatpush1.bf16.msra.mxu0 0
      %1918 = vmatprep.subr.bf16.mxu0 0
      %1919 = vmatpush1.bf16.msra.mxu0 0
      %1920 = vmatprep.subr.bf16.mxu0 0
      %1921 = vmatpush1.bf16.msra.mxu0 0
      %1922 = vmatprep.subr.bf16.mxu0 0
      %1923 = vmatpush1.bf16.msra.mxu0 0
      %1924 = vmatprep.subr.bf16.mxu0 0
      %1925 = vmatpush1.bf16.msra.mxu0 0
      %1926 = vmatprep.subr.bf16.mxu0 0
      %1927 = vmatpush1.bf16.msra.mxu0 0
      %1928 = vmatprep.subr.bf16.mxu0 0
      %1929 = vmatpush1.bf16.msra.mxu0 0
      %1930 = vmatprep.subr.bf16.mxu0 0
      %1931 = vmatpush1.bf16.msra.mxu0 0
      %1932 = vmatprep.subr.bf16.mxu0 0
      %1933 = vmatpush1.bf16.msra.mxu0 0
      %1934 = vmatprep.mubr.bf16.mxu0 0
      %1935 = vmatmul.mubr.bf16.gmra.mrb[0].mxu0 %v1897
      %v1936 = vpop.f32.mrb[0].mxu0
      %v1937 = vadd.f32 0.0, %v1936
      %v1938 = vpop.f32.mrb[0].mxu0
      %v1939 = vpop.f32.mrb[0].mxu0
      %v1940 = vpop.f32.mrb[0].mxu0
      %1941 = vdwg.mxu0
      %v1942 = vpack.c.bf16 %v1937, %v1937
      %v1943 = vld [vmem:[%s1294] sm:$0xf]
      %v1945 = vsel %vm707, %v1942, 0
      %v1948 = vsel %vm769, %v1943, 0
      %1950 = vmatprep.subr.bf16.mxu0 0
      %1951 = vmatpush1.bf16.msra.mxu0 %v1948
      %1952 = vmatprep.subr.bf16.mxu0 0
      %1953 = vmatpush1.bf16.msra.mxu0 0
      %1954 = vmatprep.subr.bf16.mxu0 0
      %1955 = vmatpush1.bf16.msra.mxu0 0
      %1956 = vmatprep.subr.bf16.mxu0 0
      %1957 = vmatpush1.bf16.msra.mxu0 0
      %1958 = vmatprep.subr.bf16.mxu0 0
      %1959 = vmatpush1.bf16.msra.mxu0 0
      %1960 = vmatprep.subr.bf16.mxu0 0
      %1961 = vmatpush1.bf16.msra.mxu0 0
      %1962 = vmatprep.subr.bf16.mxu0 0
      %1963 = vmatpush1.bf16.msra.mxu0 0
      %1964 = vmatprep.subr.bf16.mxu0 0
      %1965 = vmatpush1.bf16.msra.mxu0 0
      %1966 = vmatprep.subr.bf16.mxu0 0
      %1967 = vmatpush1.bf16.msra.mxu0 0
      %1968 = vmatprep.subr.bf16.mxu0 0
      %1969 = vmatpush1.bf16.msra.mxu0 0
      %1970 = vmatprep.subr.bf16.mxu0 0
      %1971 = vmatpush1.bf16.msra.mxu0 0
      %1972 = vmatprep.subr.bf16.mxu0 0
      %1973 = vmatpush1.bf16.msra.mxu0 0
      %1974 = vmatprep.subr.bf16.mxu0 0
      %1975 = vmatpush1.bf16.msra.mxu0 0
      %1976 = vmatprep.subr.bf16.mxu0 0
      %1977 = vmatpush1.bf16.msra.mxu0 0
      %1978 = vmatprep.subr.bf16.mxu0 0
      %1979 = vmatpush1.bf16.msra.mxu0 0
      %1980 = vmatprep.subr.bf16.mxu0 0
      %1981 = vmatpush1.bf16.msra.mxu0 0
      %1982 = vmatprep.mubr.bf16.mxu0 0
      %1983 = vmatmul.mubr.bf16.gmra.mrb[0].mxu0 %v1945
      %v1984 = vpop.f32.mrb[0].mxu0
      %v1985 = vadd.f32 0.0, %v1984
      %v1986 = vpop.f32.mrb[0].mxu0
      %v1987 = vpop.f32.mrb[0].mxu0
      %v1988 = vpop.f32.mrb[0].mxu0
      %1989 = vdwg.mxu0
      %v1990 = vadd.f32 %v1831, %v1985
      %v1991 = vadd.f32 %v1990, %v1346
      %1992 = vst.msk [vmem:[#allocation3 + $0x8] sm:$0xff] %vm530, %v1991
      %v1993 = vld [vmem:[#allocation3] sm:$0xff]
      %v1994 = vld [vmem:[#allocation3 + $0x8] sm:$0xff]
      %v1995 = vadd.f32 %v504, %v1993
      %v1996 = vadd.f32 %v505, %v1994
      %v1997 = vsel %vm530, %v1995, 0.0
      %1998 = vadd.xlane.f32.xlu0 %v1997
      %v1999 = vpop.xlane.xlu0 %1998
      %v2000 = vsel %vm530, %v1996, 0.0
      %2001 = vadd.xlane.f32.xlu0 %v2000
      %v2002 = vpop.xlane.xlu0 %2001
      %v2003 = vrcp.pop 32.0
      %v2004 = vmul.f32 %v1999, %v2003
      %v2005 = vmul.f32 %v2002, %v2003
      %v2006 = vsub.f32 %v1995, %v2004
      %v2007 = vsub.f32 %v1996, %v2005
      %v2008 = vmul.f32 %v2006, %v2006
      %v2009 = vmul.f32 %v2007, %v2007
      %v2010 = vsel %vm530, %v2008, 0.0
      %2011 = vadd.xlane.f32.xlu0 %v2010
      %v2012 = vpop.xlane.xlu0 %2011
      %v2013 = vsel %vm530, %v2009, 0.0
      %2014 = vadd.xlane.f32.xlu0 %v2013
      %v2015 = vpop.xlane.xlu0 %2014
      %v2016 = vmul.f32 %v2012, %v2003
      %v2017 = vmul.f32 %v2015, %v2003
      %v2018 = vadd.f32 %v2016, 1e-05
      %v2019 = vadd.f32 %v2017, 1e-05
      %v2020 = vrsqrt.pop %v2018
      %v2021 = vrsqrt.pop %v2019
      %v2022 = vmul.f32 %v2006, %v2020
      %v2023 = vmul.f32 %v2007, %v2021
      %v2024 = vlaneseq
      %v2025 = vshrl.u32 %v2024, 7
      %v2026 = vsub.s32 4, %v2025
      %v2027 = vrot.slane %v507, %v2026
      %v2028 = vmul.f32 %v2022, %v2027
      %v2029 = vmul.f32 %v2023, %v2027
      %v2030 = vlaneseq
      %v2031 = vshrl.u32 %v2030, 7
      %v2032 = vsub.s32 5, %v2031
      %v2033 = vrot.slane %v507, %v2032
      %v2034 = vadd.f32 %v2028, %v2033
      %v2035 = vadd.f32 %v2029, %v2033
      %v2036 = vpack.c.bf16 %v2035, %v2034
      %v2037 = vld [vmem:[%s475] sm:$0xf]
      %v2038 = vld [vmem:[%s475 + $0x4] sm:$0xf]
      %v2039 = vld [vmem:[%s475 + $0x8] sm:$0xf]
      %v2040 = vld [vmem:[%s475 + $0xc] sm:$0xf]
      %v2042 = vlaneseq
      %v2043 = vshrl.u32 %v2042, 7
      %v2044 = vsub.s32 0, %v2043
      %v2045 = vrot.slane %v509, %v2044
      %v2051 = vunpack.c.l.b16 %v2037
      %v2052 = vunpack.c.l.b16 %v2038
      %v2053 = vunpack.c.l.b16 %v2039
      %v2054 = vunpack.c.l.b16 %v2040
      %v2055 = vpack.c.b16 %v2052, %v2051
      %v2056 = vpack.c.b16 %v2054, %v2053
      %v2060 = vsel %vm530, %v2036, 0
      %2062 = vmatprep.subr.bf16.mxu0 0
      %2063 = vmatpush1.bf16.msra.mxu0 %v2055
      %2064 = vmatprep.subr.bf16.mxu0 0
      %2065 = vmatpush1.bf16.msra.mxu0 %v2056
      %2066 = vmatprep.subr.bf16.mxu0 0
      %2067 = vmatpush1.bf16.msra.mxu0 0
      %2068 = vmatprep.subr.bf16.mxu0 0
      %2069 = vmatpush1.bf16.msra.mxu0 0
      %2070 = vmatprep.subr.bf16.mxu0 0
      %2071 = vmatpush1.bf16.msra.mxu0 0
      %2072 = vmatprep.subr.bf16.mxu0 0
      %2073 = vmatpush1.bf16.msra.mxu0 0
      %2074 = vmatprep.subr.bf16.mxu0 0
      %2075 = vmatpush1.bf16.msra.mxu0 0
      %2076 = vmatprep.subr.bf16.mxu0 0
      %2077 = vmatpush1.bf16.msra.mxu0 0
      %2078 = vmatprep.subr.bf16.mxu0 0
      %2079 = vmatpush1.bf16.msra.mxu0 0
      %2080 = vmatprep.subr.bf16.mxu0 0
      %2081 = vmatpush1.bf16.msra.mxu0 0
      %2082 = vmatprep.subr.bf16.mxu0 0
      %2083 = vmatpush1.bf16.msra.mxu0 0
      %2084 = vmatprep.subr.bf16.mxu0 0
      %2085 = vmatpush1.bf16.msra.mxu0 0
      %2086 = vmatprep.subr.bf16.mxu0 0
      %2087 = vmatpush1.bf16.msra.mxu0 0
      %2088 = vmatprep.subr.bf16.mxu0 0
      %2089 = vmatpush1.bf16.msra.mxu0 0
      %2090 = vmatprep.subr.bf16.mxu0 0
      %2091 = vmatpush1.bf16.msra.mxu0 0
      %2092 = vmatprep.subr.bf16.mxu0 0
      %2093 = vmatpush1.bf16.msra.mxu0 0
      %2094 = vmatprep.mubr.bf16.mxu0 0
      %2095 = vmatmul.mubr.bf16.gmra.mrb[0].mxu0 %v2060
      %v2096 = vpop.f32.mrb[0].mxu0
      %v2097 = vadd.f32 %v2045, %v2096
      %v2098 = vpop.f32.mrb[0].mxu0
      %v2099 = vpop.f32.mrb[0].mxu0
      %v2100 = vadd.f32 %v2045, %v2099
      %v2101 = vpop.f32.mrb[0].mxu0
      %2102 = vdwg.mxu0
      %v2103 = vmul.f32 %v2097, 0.5
      %v2104 = vmul.f32 %v2100, 0.5
      %v2105 = vmul.f32 %v2097, 0.044715
      %v2106 = vmul.f32 %v2100, 0.044715
      %v2107 = vmul.f32 %v2105, %v2097
      %v2108 = vmul.f32 %v2106, %v2100
      %v2109 = vmul.f32 %v2107, %v2097
      %v2110 = vmul.f32 %v2108, %v2100
      %v2111 = vadd.f32 %v2097, %v2109
      %v2112 = vadd.f32 %v2100, %v2110
      %v2113 = vmul.f32 %v2111, 0.7978846
      %v2114 = vmul.f32 %v2112, 0.7978846
      %v2115 = vtanh.pop %v2113
      %v2116 = vtanh.pop %v2114
      %v2117 = vadd.f32 %v2115, 1.0
      %v2118 = vadd.f32 %v2116, 1.0
      %v2119 = vmul.f32 %v2103, %v2117
      %v2120 = vmul.f32 %v2104, %v2118
      %v2121 = vpack.c.bf16 %v2120, %v2119
      %v2122 = vld [vmem:[%s480] sm:$0xf]
      %v2123 = vld [vmem:[%s480 + $0x4] sm:$0xf]
      %v2124 = vld [vmem:[%s480 + $0x8] sm:$0xf]
      %v2125 = vld [vmem:[%s480 + $0xc] sm:$0xf]
      %v2126 = vld [vmem:[%s480 + $0x10] sm:$0xf]
      %v2127 = vld [vmem:[%s480 + $0x14] sm:$0xf]
      %v2128 = vld [vmem:[%s480 + $0x18] sm:$0xf]
      %v2129 = vld [vmem:[%s480 + $0x1c] sm:$0xf]
      %v2130 = vlaneseq
      %v2131 = vshrl.u32 %v2130, 7
      %v2132 = vsub.s32 0, %v2131
      %v2133 = vrot.slane %v508, %v2132
      %v2142 = vunpack.c.l.b16 %v2122
      %v2143 = vunpack.c.l.b16 %v2123
      %v2144 = vunpack.c.l.b16 %v2124
      %v2145 = vunpack.c.l.b16 %v2125
      %v2146 = vunpack.c.l.b16 %v2126
      %v2147 = vunpack.c.l.b16 %v2127
      %v2148 = vunpack.c.l.b16 %v2128
      %v2149 = vunpack.c.l.b16 %v2129
      %v2150 = vpack.c.b16 %v2143, %v2142
      %v2151 = vpack.c.b16 %v2145, %v2144
      %v2152 = vpack.c.b16 %v2147, %v2146
      %v2153 = vpack.c.b16 %v2149, %v2148
      %vm2158 = vcmask 523264
      %v2160 = vsel %vm2158, %v2121, 0
      %2162 = vmatprep.subr.bf16.mxu0 0
      %2163 = vmatpush1.bf16.msra.mxu0 %v2150
      %2164 = vmatprep.subr.bf16.mxu0 0
      %2165 = vmatpush1.bf16.msra.mxu0 %v2151
      %2166 = vmatprep.subr.bf16.mxu0 0
      %2167 = vmatpush1.bf16.msra.mxu0 %v2152
      %2168 = vmatprep.subr.bf16.mxu0 0
      %2169 = vmatpush1.bf16.msra.mxu0 %v2153
      %2170 = vmatprep.subr.bf16.mxu0 0
      %2171 = vmatpush1.bf16.msra.mxu0 0
      %2172 = vmatprep.subr.bf16.mxu0 0
      %2173 = vmatpush1.bf16.msra.mxu0 0
      %2174 = vmatprep.subr.bf16.mxu0 0
      %2175 = vmatpush1.bf16.msra.mxu0 0
      %2176 = vmatprep.subr.bf16.mxu0 0
      %2177 = vmatpush1.bf16.msra.mxu0 0
      %2178 = vmatprep.subr.bf16.mxu0 0
      %2179 = vmatpush1.bf16.msra.mxu0 0
      %2180 = vmatprep.subr.bf16.mxu0 0
      %2181 = vmatpush1.bf16.msra.mxu0 0
      %2182 = vmatprep.subr.bf16.mxu0 0
      %2183 = vmatpush1.bf16.msra.mxu0 0
      %2184 = vmatprep.subr.bf16.mxu0 0
      %2185 = vmatpush1.bf16.msra.mxu0 0
      %2186 = vmatprep.subr.bf16.mxu0 0
      %2187 = vmatpush1.bf16.msra.mxu0 0
      %2188 = vmatprep.subr.bf16.mxu0 0
      %2189 = vmatpush1.bf16.msra.mxu0 0
      %2190 = vmatprep.subr.bf16.mxu0 0
      %2191 = vmatpush1.bf16.msra.mxu0 0
      %2192 = vmatprep.subr.bf16.mxu0 0
      %2193 = vmatpush1.bf16.msra.mxu0 0
      %2194 = vmatprep.mubr.bf16.mxu0 0
      %2195 = vmatmul.mubr.bf16.gmra.mrb[0].mxu0 %v2160
      %v2196 = vpop.f32.mrb[0].mxu0
      %v2197 = vadd.f32 %v2133, %v2196
      %v2198 = vpop.f32.mrb[0].mxu0
      %v2199 = vpop.f32.mrb[0].mxu0
      %v2200 = vadd.f32 %v2133, %v2199
      %v2201 = vpop.f32.mrb[0].mxu0
      %2202 = vdwg.mxu0
      %v2203 = vadd.f32 %v2034, %v2197
      %v2204 = vadd.f32 %v2035, %v2200
      %v2205 = vsel %vm530, %v2203, 0.0
      %2206 = vadd.xlane.f32.xlu0 %v2205
      %v2207 = vpop.xlane.xlu0 %2206
      %v2208 = vsel %vm530, %v2204, 0.0
      %2209 = vadd.xlane.f32.xlu0 %v2208
      %v2210 = vpop.xlane.xlu0 %2209
      %v2211 = vmul.f32 %v2207, %v2003
      %v2212 = vmul.f32 %v2210, %v2003
      %v2213 = vsub.f32 %v2203, %v2211
      %v2214 = vsub.f32 %v2204, %v2212
      %v2215 = vmul.f32 %v2213, %v2213
      %v2216 = vmul.f32 %v2214, %v2214
      %v2217 = vsel %vm530, %v2215, 0.0
      %2218 = vadd.xlane.f32.xlu0 %v2217
      %v2219 = vpop.xlane.xlu0 %2218
      %v2220 = vsel %vm530, %v2216, 0.0
      %2221 = vadd.xlane.f32.xlu0 %v2220
      %v2222 = vpop.xlane.xlu0 %2221
      %v2223 = vmul.f32 %v2219, %v2003
      %v2224 = vmul.f32 %v2222, %v2003
      %v2225 = vadd.f32 %v2223, 1e-05
      %v2226 = vadd.f32 %v2224, 1e-05
      %v2227 = vrsqrt.pop %v2225
      %v2228 = vrsqrt.pop %v2226
      %v2229 = vmul.f32 %v2213, %v2227
      %v2230 = vmul.f32 %v2214, %v2228
      %v2231 = vlaneseq
      %v2232 = vshrl.u32 %v2231, 7
      %v2233 = vsub.s32 6, %v2232
      %v2234 = vrot.slane %v507, %v2233
      %v2235 = vmul.f32 %v2229, %v2234
      %v2236 = vmul.f32 %v2230, %v2234
      %v2237 = vlaneseq
      %v2238 = vshrl.u32 %v2237, 7
      %v2239 = vsub.s32 7, %v2238
      %v2240 = vrot.slane %v507, %v2239
      %v2241 = vadd.f32 %v2235, %v2240
      %v2242 = vadd.f32 %v2236, %v2240
      %2243 = vst.msk [vmem:[#allocation2] sm:$0xff] %vm530, %v2241
      %2244 = vst.msk [vmem:[#allocation2 + $0x8] sm:$0xff] %vm530, %v2242
      %2245 = vst.msk [vmem:[%s493] sm:$0xff] %vm530, %v2241
      %2246 = vst.msk [vmem:[%s493 + $0x8] sm:$0xff] %vm530, %v2242
      %p2247 = scmp.lt.s32.totalorder %s21, 1
      %s2248 = scalar_select %p2247, %s21, 1
      %s2249 = smul.addr %s2248, 2
      %s2250 = smul.addr %s2249, 8
      %s2251 = scalar_lea.vmem %s10, %s2250
      // Predicated region
      $region65: #{accelerator_transformer_layers_forward.1} parent=59 // pred_check
        %p2252 = pneg %p289
      $region66: #{accelerator_transformer_layers_forward.1} parent=59 // pred_check_branch
        %2254 = sbr.rel (%p2252) target = $region68
      $region67: #{accelerator_transformer_layers_forward.1} parent=59 // pred_region
        _
      $region68: #{accelerator_transformer_layers_forward.1} parent=59 // pred_fallthru
        _
    $region60: #{accelerator_transformer_layers_forward.1} parent=5 // pred_fallthru
      _
    %p2255 = scmp.le.s32.totalorder 2, %s16
    // Predicated region
    $region69: #{accelerator_transformer_layers_forward.1} parent=5 // pred_check
      %p2256 = pneg %p2255
    $region70: #{accelerator_transformer_layers_forward.1} parent=5 // pred_check_branch
      %2258 = sbr.rel (%p2256) target = $region72
    $region71: #{accelerator_transformer_layers_forward.1} parent=5 // pred_region
      %s2259 = ssub.s32 %s16, 2
      // Predicated region
      $region73: #{accelerator_transformer_layers_forward.1} parent=71 // pred_check
        %p2260 = pneg %p295
      $region74: #{accelerator_transformer_layers_forward.1} parent=71 // pred_check_branch
        %2262 = sbr.rel (%p2260) target = $region76
      $region75: #{accelerator_transformer_layers_forward.1} parent=71 // pred_region
        %p2263 = scmp.lt.s32.totalorder %s22, 1
        %s2264 = scalar_select %p2263, %s22, 1
        %s2265 = smul.addr %s2264, 2
        %s2266 = smul.addr %s2265, 8
        %s2267 = scalar_lea.vmem %s10, %s2266
      $region76: #{accelerator_transformer_layers_forward.1} parent=71 // pred_fallthru
        _
    $region72: #{accelerator_transformer_layers_forward.1} parent=5 // pred_fallthru
      _
  $region6: #{accelerator_transformer_layers_forward.1} parent=0 // loop_footer
    %s20 = sadd.s32 1, %s16
  $region7: #{accelerator_transformer_layers_forward.1} parent=0 // loop_footer_branch
    %15 = sbr.rel target = $region3
  $region8: #{accelerator_transformer_layers_forward.1} parent=0 // loop_exit
    _

</llo_original>
